<compile_context>
chip_gen: v7x
topology: tpu7x:2x2x1
jax: 0.10.0
libtpu: 0.0.40
codegen_flags: <defaults>
</compile_context>

<pallas_src>
import functools

import jax
import jax.numpy as jnp
import numpy as np
from jax.experimental import pallas as pl
from jax.experimental.pallas import tpu as pltpu

EPS = 1e-5  # torch nn.LayerNorm default


# ----------------------------- in-kernel helpers -----------------------------

def _layer_norm(x, gamma, beta):
    # x: (S, D) f32; gamma/beta: (1, D). Biased variance, like torch LayerNorm.
    mean = jnp.mean(x, axis=-1, keepdims=True)
    var = jnp.mean((x - mean) ** 2, axis=-1, keepdims=True)
    return (x - mean) * jax.lax.rsqrt(var + EPS) * gamma + beta


# --------------------------------- kernels -----------------------------------

def qkv_proj_kernel(x_ref, wqkv_ref, bqkv_ref, q_ref, k_ref, v_ref):
    # One wide MXU matmul: (S, D) @ (D, 3D) -> (S, 3D), f32 accumulation.
    x = x_ref[0].astype(jnp.bfloat16)                               # (S, D)
    qkv = jnp.dot(x, wqkv_ref[...], preferred_element_type=jnp.float32)
    qkv = qkv + bqkv_ref[...]                                       # (S, 3D) f32
    d = q_ref.shape[-1]
    q_ref[0] = qkv[:, 0 * d:1 * d].astype(jnp.bfloat16)
    k_ref[0] = qkv[:, 1 * d:2 * d].astype(jnp.bfloat16)
    v_ref[0] = qkv[:, 2 * d:3 * d].astype(jnp.bfloat16)


def sdpa_kernel(q_ref, k_ref, v_ref, ctx_ref, attn_ref, *, scale):
    # One grid step = all head-blocks of one batch element.
    q = q_ref[0]                                                    # (H, S, dph) bf16
    k = k_ref[0]
    v = v_ref[0]
    # Batched contraction over the last dims -> no explicit transpose of K.
    scores = jnp.einsum("hqd,hkd->hqk", q, k,
                        preferred_element_type=jnp.float32) * scale  # (H, S, S) f32
    scores = scores - jnp.max(scores, axis=-1, keepdims=True)
    e = jnp.exp(scores)
    attn = e * pl.reciprocal(jnp.sum(e, axis=-1, keepdims=True), approx=True)
    attn_ref[0] = attn                                              # f32 (module output)
    ctx = jnp.einsum("hqk,hkd->hqd", attn.astype(jnp.bfloat16), v,
                     preferred_element_type=jnp.float32)            # (H, S, dph) f32
    ctx_ref[0] = ctx.astype(jnp.bfloat16)


def out_ffn_kernel(x_ref, ctx_ref, wo_ref, bo_ref, g1_ref, bln1_ref,
                   w1_ref, b1_ref, w2_ref, b2_ref, g2_ref, bln2_ref, out_ref):
    # Fused: final attention linear + residual + LN1 + position-wise FFN + residual + LN2.
    x = x_ref[0]                                                    # (S, D) f32 residual
    ctx = ctx_ref[0]                                                # (S, D) bf16
    proj = jnp.dot(ctx, wo_ref[...], preferred_element_type=jnp.float32) + bo_ref[...]
    a = _layer_norm(x + proj, g1_ref[...], bln1_ref[...])           # (S, D) f32

    h = jnp.dot(a.astype(jnp.bfloat16), w1_ref[...],
                preferred_element_type=jnp.float32) + b1_ref[...]
    h = jnp.maximum(h, 0.0)                                         # ReLU (f32)
    y = jnp.dot(h.astype(jnp.bfloat16), w2_ref[...],
                preferred_element_type=jnp.float32) + b2_ref[...]
    out_ref[0] = _layer_norm(a + y, g2_ref[...], bln2_ref[...])


# ------------------------------ pallas wrappers -------------------------------

def _full_spec(shape):
    zeros = (0,) * len(shape)
    return pl.BlockSpec(tuple(shape), lambda b: zeros)


def _batched_spec(shape):
    zeros = (0,) * len(shape)
    return pl.BlockSpec((1,) + tuple(shape), lambda b: (b,) + zeros)


def encoder_layer_forward(x, params, num_heads):
    B, S, D = x.shape
    dph = D // num_heads
    ffn_dim = params["w1"].shape[1]
    bf16 = jnp.bfloat16

    cparams = pltpu.CompilerParams(
        dimension_semantics=("parallel",),          # batch axis -> megacore / v7x 2-TC
        vmem_limit_bytes=64 * 1024 * 1024,
    )

    # Fused QKV weights (one wide matmul) + bf16 MXU operands; biases/LN stay f32.
    wqkv = jnp.concatenate([params["wq"], params["wk"], params["wv"]], axis=1).astype(bf16)
    bqkv = jnp.concatenate([params["bq"], params["bk"], params["bv"]], axis=1)
    wo = params["wo"].astype(bf16)
    w1 = params["w1"].astype(bf16)
    w2 = params["w2"].astype(bf16)

    # ---- fused Q/K/V projection (per-batch grid) ----
    q, k, v = pl.pallas_call(
        qkv_proj_kernel,
        out_shape=[jax.ShapeDtypeStruct((B, S, D), bf16)] * 3,
        grid_spec=pltpu.PrefetchScalarGridSpec(
            num_scalar_prefetch=0,
            grid=(B,),
            in_specs=[_batched_spec((S, D)),
                      _full_spec((D, 3 * D)),
                      _full_spec((1, 3 * D))],
            out_specs=[_batched_spec((S, D))] * 3,
        ),
        compiler_params=cparams,
    )(x, wqkv, bqkv)

    # ---- head split: identical to torch .view (contiguous -> metadata-only reshape) ----
    qh = q.reshape(B, num_heads, S, dph)
    kh = k.reshape(B, num_heads, S, dph)
    vh = v.reshape(B, num_heads, S, dph)

    # ---- scaled dot-product attention, all heads of one batch per grid step ----
    scale = float(dph) ** -0.5
    ctx_h, attn_h = pl.pallas_call(
        functools.partial(sdpa_kernel, scale=scale),
        out_shape=[
            jax.ShapeDtypeStruct((B, num_heads, S, dph), bf16),
            jax.ShapeDtypeStruct((B, num_heads, S, S), jnp.float32),
        ],
        grid_spec=pltpu.PrefetchScalarGridSpec(
            num_scalar_prefetch=0,
            grid=(B,),
            in_specs=[_batched_spec((num_heads, S, dph))] * 3,
            out_specs=[_batched_spec((num_heads, S, dph)),
                       _batched_spec((num_heads, S, S))],
        ),
        compiler_params=cparams,
    )(qh, kh, vh)

    # ---- merge heads back (contiguous -> free) ----
    ctx = ctx_h.reshape(B, S, D)
    attention = attn_h.reshape(B * num_heads, S, S)

    # ---- fused: out-proj + residual + LN1 + FFN (1x1 convs) + residual + LN2 ----
    output = pl.pallas_call(
        out_ffn_kernel,
        out_shape=jax.ShapeDtypeStruct((B, S, D), jnp.float32),
        grid_spec=pltpu.PrefetchScalarGridSpec(
            num_scalar_prefetch=0,
            grid=(B,),
            in_specs=[
                _batched_spec((S, D)), _batched_spec((S, D)),
                _full_spec((D, D)), _full_spec((1, D)),
                _full_spec((1, D)), _full_spec((1, D)),
                _full_spec((D, ffn_dim)), _full_spec((1, ffn_dim)),
                _full_spec((ffn_dim, D)), _full_spec((1, D)),
                _full_spec((1, D)), _full_spec((1, D)),
            ],
            out_specs=_batched_spec((S, D)),
        ),
        compiler_params=cparams,
    )(x, ctx, wo, params["bo"], params["ln1_g"], params["ln1_b"],
      w1, params["b1"], w2, params["b2"], params["ln2_g"], params["ln2_b"])

    return output, attention


# -------------------------- pure-JAX f32 reference -----------------------------

def encoder_layer_reference(x, params, num_heads):
    B, S, D = x.shape
    dph = D // num_heads

    def ln(v, g, b):
        m = jnp.mean(v, -1, keepdims=True)
        var = jnp.mean((v - m) ** 2, -1, keepdims=True)
        return (v - m) * jax.lax.rsqrt(var + EPS) * g + b

    q = x @ params["wq"] + params["bq"]
    k = x @ params["wk"] + params["bk"]
    v = x @ params["wv"] + params["bv"]
    qh = q.reshape(B * num_heads, S, dph)
    kh = k.reshape(B * num_heads, S, dph)
    vh = v.reshape(B * num_heads, S, dph)
    scores = jnp.einsum("bqd,bkd->bqk", qh, kh) * (float(dph) ** -0.5)
    attn = jax.nn.softmax(scores, axis=-1)
    ctx = jnp.einsum("bqk,bkd->bqd", attn, vh).reshape(B, S, D)
    a = ln(x + ctx @ params["wo"] + params["bo"], params["ln1_g"], params["ln1_b"])
    h = jax.nn.relu(a @ params["w1"] + params["b1"])
    y = h @ params["w2"] + params["b2"]
    out = ln(a + y, params["ln2_g"], params["ln2_b"])
    return out, attn


# -------------------------- deterministic parameters ---------------------------

def init_params(key, model_dim, ffn_dim):
    ks = jax.random.split(key, 6)
    std = 0.02
    f32 = jnp.float32
    return {
        "wq": std * jax.random.normal(ks[0], (model_dim, model_dim), f32),
        "bq": jnp.zeros((1, model_dim), f32),
        "wk": std * jax.random.normal(ks[1], (model_dim, model_dim), f32),
        "bk": jnp.zeros((1, model_dim), f32),
        "wv": std * jax.random.normal(ks[2], (model_dim, model_dim), f32),
        "bv": jnp.zeros((1, model_dim), f32),
        "wo": std * jax.random.normal(ks[3], (model_dim, model_dim), f32),
        "bo": jnp.zeros((1, model_dim), f32),
        "ln1_g": jnp.ones((1, model_dim), f32),
        "ln1_b": jnp.zeros((1, model_dim), f32),
        # Conv1d(model_dim, ffn_dim, 1) weight stored as (D, ffn)
        "w1": std * jax.random.normal(ks[4], (model_dim, ffn_dim), f32),
        "b1": jnp.zeros((1, ffn_dim), f32),
        # Conv1d(ffn_dim, model_dim, 1) weight stored as (ffn, D)
        "w2": std * jax.random.normal(ks[5], (ffn_dim, model_dim), f32),
        "b2": jnp.zeros((1, model_dim), f32),
        "ln2_g": jnp.ones((1, model_dim), f32),
        "ln2_b": jnp.zeros((1, model_dim), f32),
    }


# ------------------------------------ main -------------------------------------

if __name__ == "__main__":
    # Small but lane-aligned demo shapes (model_dim multiple of 128 keeps all
    # matmul/QKV-slice lane offsets aligned, per the performance review).
    B, S, MODEL_DIM, NUM_HEADS, FFN_DIM = 2, 8, 128, 4, 256

    key = jax.random.PRNGKey(0)
    kx, kp = jax.random.split(key)
    x = jax.random.normal(kx, (B, S, MODEL_DIM), jnp.float32)
    params = init_params(kp, MODEL_DIM, FFN_DIM)

    fwd = jax.jit(functools.partial(encoder_layer_forward, num_heads=NUM_HEADS))
    output, attention = fwd(x, params)
    jax.block_until_ready((output, attention))

    assert output.shape == (B, S, MODEL_DIM)
    assert attention.shape == (B * NUM_HEADS, S, S)

    # Loose tolerance: MXU operands are bf16 (f32 accumulation / LN / softmax).
    ref_out, ref_attn = encoder_layer_reference(x, params, NUM_HEADS)
    np.testing.assert_allclose(np.asarray(output), np.asarray(ref_out),
                               rtol=3e-2, atol=3e-2)
    np.testing.assert_allclose(np.asarray(attention), np.asarray(ref_attn),
                               rtol=3e-2, atol=3e-3)

    print("KERNEL_OK")
</pallas_src>

<mosaic_0001>
module attributes {stable_mosaic.version = 11 : i64} {
  func.func @qkv_proj_kernel(%arg0: i32, %arg1: memref<1x8x128xf32, #tpu.memory_space<vmem>>, %arg2: memref<128x384xbf16, #tpu.memory_space<vmem>>, %arg3: memref<1x384xf32, #tpu.memory_space<vmem>>, %arg4: memref<1x8x128xbf16, #tpu.memory_space<vmem>>, %arg5: memref<1x8x128xbf16, #tpu.memory_space<vmem>>, %arg6: memref<1x8x128xbf16, #tpu.memory_space<vmem>>) attributes {dimension_semantics = [#tpu.dimension_semantics<parallel>], iteration_bounds = array<i64: 2>, scalar_prefetch = 0 : i64, scratch_operands = 0 : i64, tpu.core_type = #tpu.core_type<tc>, window_params = [{transform_indices = @transform_0, window_bounds = array<i64: 1, 8, 128>}, {pipeline_mode = #tpu.pipeline_mode<synchronous>, transform_indices = @transform_1, window_bounds = array<i64: 128, 384>}, {pipeline_mode = #tpu.pipeline_mode<synchronous>, transform_indices = @transform_2, window_bounds = array<i64: 1, 384>}, {transform_indices = @transform_3, window_bounds = array<i64: 1, 8, 128>}, {transform_indices = @transform_4, window_bounds = array<i64: 1, 8, 128>}, {transform_indices = @transform_5, window_bounds = array<i64: 1, 8, 128>}]} {
    %c0 = arith.constant 0 : index
    %c0_0 = arith.constant 0 : index
    %c0_1 = arith.constant 0 : index
    %0 = vector.load %arg1[%c0, %c0_0, %c0_1] : memref<1x8x128xf32, #tpu.memory_space<vmem>>, vector<1x8x128xf32>
    %1 = vector.shape_cast %0 : vector<1x8x128xf32> to vector<8x128xf32>
    %2 = arith.truncf %1 : vector<8x128xf32> to vector<8x128xbf16>
    %c0_2 = arith.constant 0 : index
    %c0_3 = arith.constant 0 : index
    %3 = vector.load %arg2[%c0_2, %c0_3] : memref<128x384xbf16, #tpu.memory_space<vmem>>, vector<128x384xbf16>
    %cst = arith.constant dense<0.000000e+00> : vector<8x384xf32>
    %4 = tpu.matmul %2, %3, %cst {dimension_numbers = #tpu.dot_dimension_numbers<[1], [0], [0], [1], [0, 0, 1, 1], [], []>} : vector<8x128xbf16>, vector<128x384xbf16>, vector<8x384xf32> -> vector<8x384xf32>
    %c0_4 = arith.constant 0 : index
    %c0_5 = arith.constant 0 : index
    %5 = vector.load %arg3[%c0_4, %c0_5] : memref<1x384xf32, #tpu.memory_space<vmem>>, vector<1x384xf32>
    %6 = vector.broadcast %5 : vector<1x384xf32> to vector<8x384xf32>
    %7 = arith.addf %4, %6 : vector<8x384xf32>
    %8 = vector.extract_strided_slice %7 {offsets = [0, 0], sizes = [8, 128], strides = [1, 1]} : vector<8x384xf32> to vector<8x128xf32>
    %9 = arith.truncf %8 : vector<8x128xf32> to vector<8x128xbf16>
    %c0_6 = arith.constant 0 : index
    %c0_7 = arith.constant 0 : index
    %c0_8 = arith.constant 0 : index
    %10 = vector.load %arg4[%c0_6, %c0_7, %c0_8] : memref<1x8x128xbf16, #tpu.memory_space<vmem>>, vector<1x8x128xbf16>
    %11 = vector.shape_cast %10 : vector<1x8x128xbf16> to vector<8x128xbf16>
    %12 = vector.shape_cast %9 : vector<8x128xbf16> to vector<1x8x128xbf16>
    tpu.vector_store %arg4[%c0_6, %c0_7, %c0_8], %12 {strides = array<i32>} : memref<1x8x128xbf16, #tpu.memory_space<vmem>>, vector<1x8x128xbf16>,
    %13 = vector.extract_strided_slice %7 {offsets = [0, 128], sizes = [8, 128], strides = [1, 1]} : vector<8x384xf32> to vector<8x128xf32>
    %14 = arith.truncf %13 : vector<8x128xf32> to vector<8x128xbf16>
    %c0_9 = arith.constant 0 : index
    %c0_10 = arith.constant 0 : index
    %c0_11 = arith.constant 0 : index
    %15 = vector.load %arg5[%c0_9, %c0_10, %c0_11] : memref<1x8x128xbf16, #tpu.memory_space<vmem>>, vector<1x8x128xbf16>
    %16 = vector.shape_cast %15 : vector<1x8x128xbf16> to vector<8x128xbf16>
    %17 = vector.shape_cast %14 : vector<8x128xbf16> to vector<1x8x128xbf16>
    tpu.vector_store %arg5[%c0_9, %c0_10, %c0_11], %17 {strides = array<i32>} : memref<1x8x128xbf16, #tpu.memory_space<vmem>>, vector<1x8x128xbf16>,
    %18 = vector.extract_strided_slice %7 {offsets = [0, 256], sizes = [8, 128], strides = [1, 1]} : vector<8x384xf32> to vector<8x128xf32>
    %19 = arith.truncf %18 : vector<8x128xf32> to vector<8x128xbf16>
    %c0_12 = arith.constant 0 : index
    %c0_13 = arith.constant 0 : index
    %c0_14 = arith.constant 0 : index
    %20 = vector.load %arg6[%c0_12, %c0_13, %c0_14] : memref<1x8x128xbf16, #tpu.memory_space<vmem>>, vector<1x8x128xbf16>
    %21 = vector.shape_cast %20 : vector<1x8x128xbf16> to vector<8x128xbf16>
    %22 = vector.shape_cast %19 : vector<8x128xbf16> to vector<1x8x128xbf16>
    tpu.vector_store %arg6[%c0_12, %c0_13, %c0_14], %22 {strides = array<i32>} : memref<1x8x128xbf16, #tpu.memory_space<vmem>>, vector<1x8x128xbf16>,
    return
  }
  func.func @transform_0(%arg0: i32) -> (i32, i32, i32) {
    %c0_i32 = arith.constant 0 : i32
    %c0_i32_0 = arith.constant 0 : i32
    %c0_i32_1 = arith.constant 0 : i32
    return %arg0, %c0_i32, %c0_i32_0 : i32, i32, i32
  }
  func.func @transform_1(%arg0: i32) -> (i32, i32) {
    %c0_i32 = arith.constant 0 : i32
    %c0_i32_0 = arith.constant 0 : i32
    %c0_i32_1 = arith.constant 0 : i32
    return %c0_i32, %c0_i32_0 : i32, i32
  }
  func.func @transform_2(%arg0: i32) -> (i32, i32) {
    %c0_i32 = arith.constant 0 : i32
    %c0_i32_0 = arith.constant 0 : i32
    %c0_i32_1 = arith.constant 0 : i32
    return %c0_i32, %c0_i32_0 : i32, i32
  }
  func.func @transform_3(%arg0: i32) -> (i32, i32, i32) {
    %c0_i32 = arith.constant 0 : i32
    %c0_i32_0 = arith.constant 0 : i32
    %c0_i32_1 = arith.constant 0 : i32
    return %arg0, %c0_i32, %c0_i32_0 : i32, i32, i32
  }
  func.func @transform_4(%arg0: i32) -> (i32, i32, i32) {
    %c0_i32 = arith.constant 0 : i32
    %c0_i32_0 = arith.constant 0 : i32
    %c0_i32_1 = arith.constant 0 : i32
    return %arg0, %c0_i32, %c0_i32_0 : i32, i32, i32
  }
  func.func @transform_5(%arg0: i32) -> (i32, i32, i32) {
    %c0_i32 = arith.constant 0 : i32
    %c0_i32_0 = arith.constant 0 : i32
    %c0_i32_1 = arith.constant 0 : i32
    return %arg0, %c0_i32, %c0_i32_0 : i32, i32, i32
  }
}

module attributes {stable_mosaic.version = 11 : i64} {
  func.func @sdpa_kernel(%arg0: i32, %arg1: memref<1x4x8x32xbf16, #tpu.memory_space<vmem>>, %arg2: memref<1x4x8x32xbf16, #tpu.memory_space<vmem>>, %arg3: memref<1x4x8x32xbf16, #tpu.memory_space<vmem>>, %arg4: memref<1x4x8x32xbf16, #tpu.memory_space<vmem>>, %arg5: memref<1x4x8x8xf32, #tpu.memory_space<vmem>>) attributes {dimension_semantics = [#tpu.dimension_semantics<parallel>], iteration_bounds = array<i64: 2>, scalar_prefetch = 0 : i64, scratch_operands = 0 : i64, tpu.core_type = #tpu.core_type<tc>, window_params = [{transform_indices = @transform_0, window_bounds = array<i64: 1, 4, 8, 32>}, {transform_indices = @transform_1, window_bounds = array<i64: 1, 4, 8, 32>}, {transform_indices = @transform_2, window_bounds = array<i64: 1, 4, 8, 32>}, {transform_indices = @transform_3, window_bounds = array<i64: 1, 4, 8, 32>}, {transform_indices = @transform_4, window_bounds = array<i64: 1, 4, 8, 8>}]} {
    %c0 = arith.constant 0 : index
    %c0_0 = arith.constant 0 : index
    %c0_1 = arith.constant 0 : index
    %c0_2 = arith.constant 0 : index
    %0 = vector.load %arg1[%c0, %c0_0, %c0_1, %c0_2] : memref<1x4x8x32xbf16, #tpu.memory_space<vmem>>, vector<1x4x8x32xbf16>
    %1 = vector.shape_cast %0 : vector<1x4x8x32xbf16> to vector<4x8x32xbf16>
    %c0_3 = arith.constant 0 : index
    %c0_4 = arith.constant 0 : index
    %c0_5 = arith.constant 0 : index
    %c0_6 = arith.constant 0 : index
    %2 = vector.load %arg2[%c0_3, %c0_4, %c0_5, %c0_6] : memref<1x4x8x32xbf16, #tpu.memory_space<vmem>>, vector<1x4x8x32xbf16>
    %3 = vector.shape_cast %2 : vector<1x4x8x32xbf16> to vector<4x8x32xbf16>
    %c0_7 = arith.constant 0 : index
    %c0_8 = arith.constant 0 : index
    %c0_9 = arith.constant 0 : index
    %c0_10 = arith.constant 0 : index
    %4 = vector.load %arg3[%c0_7, %c0_8, %c0_9, %c0_10] : memref<1x4x8x32xbf16, #tpu.memory_space<vmem>>, vector<1x4x8x32xbf16>
    %5 = vector.shape_cast %4 : vector<1x4x8x32xbf16> to vector<4x8x32xbf16>
    "tpu.trace_start"() <{level = 10 : i32, message = "hqd,hkd->hqk"}> : () -> ()
    %cst = arith.constant dense<0.000000e+00> : vector<4x8x8xf32>
    %6 = tpu.matmul %1, %3, %cst {dimension_numbers = #tpu.dot_dimension_numbers<[2], [2], [1], [1], [0, 0, 0, 1, 1, 1], [0], [0]>} : vector<4x8x32xbf16>, vector<4x8x32xbf16>, vector<4x8x8xf32> -> vector<4x8x8xf32>
    "tpu.trace_stop"() : () -> ()
    %cst_11 = arith.constant 0.176776692 : f32
    %7 = vector.broadcast %cst_11 : f32 to vector<4x8x8xf32>
    %8 = arith.mulf %6, %7 : vector<4x8x8xf32>
    %cst_12 = arith.constant dense<0xFF800000> : vector<4x8xf32>
    %9 = vector.multi_reduction <maximumf>, %8, %cst_12 [2] : vector<4x8x8xf32> to vector<4x8xf32>
    %10 = vector.shape_cast %9 : vector<4x8xf32> to vector<4x8x1xf32>
    %11 = vector.broadcast %10 : vector<4x8x1xf32> to vector<4x8x8xf32>
    %12 = arith.subf %8, %11 : vector<4x8x8xf32>
    %13 = math.exp %12 : vector<4x8x8xf32>
    %cst_13 = arith.constant dense<0.000000e+00> : vector<4x8xf32>
    %14 = vector.multi_reduction <add>, %13, %cst_13 [2] : vector<4x8x8xf32> to vector<4x8xf32>
    %15 = vector.shape_cast %14 : vector<4x8xf32> to vector<4x8x1xf32>
    %16 = tpu.reciprocal %15 {approx = true} : vector<4x8x1xf32> -> vector<4x8x1xf32>
    %17 = vector.broadcast %16 : vector<4x8x1xf32> to vector<4x8x8xf32>
    %18 = arith.mulf %13, %17 : vector<4x8x8xf32>
    %c0_14 = arith.constant 0 : index
    %c0_15 = arith.constant 0 : index
    %c0_16 = arith.constant 0 : index
    %c0_17 = arith.constant 0 : index
    %19 = vector.load %arg5[%c0_14, %c0_15, %c0_16, %c0_17] : memref<1x4x8x8xf32, #tpu.memory_space<vmem>>, vector<1x4x8x8xf32>
    %20 = vector.shape_cast %19 : vector<1x4x8x8xf32> to vector<4x8x8xf32>
    %21 = vector.shape_cast %18 : vector<4x8x8xf32> to vector<1x4x8x8xf32>
    tpu.vector_store %arg5[%c0_14, %c0_15, %c0_16, %c0_17], %21 {strides = array<i32>} : memref<1x4x8x8xf32, #tpu.memory_space<vmem>>, vector<1x4x8x8xf32>,
    %22 = arith.truncf %18 : vector<4x8x8xf32> to vector<4x8x8xbf16>
    "tpu.trace_start"() <{level = 10 : i32, message = "hqk,hkd->hqd"}> : () -> ()
    %cst_18 = arith.constant dense<0.000000e+00> : vector<4x8x32xf32>
    %23 = tpu.matmul %22, %5, %cst_18 {dimension_numbers = #tpu.dot_dimension_numbers<[2], [1], [1], [2], [0, 0, 0, 1, 1, 2], [0], [0]>} : vector<4x8x8xbf16>, vector<4x8x32xbf16>, vector<4x8x32xf32> -> vector<4x8x32xf32>
    "tpu.trace_stop"() : () -> ()
    %24 = arith.truncf %23 : vector<4x8x32xf32> to vector<4x8x32xbf16>
    %c0_19 = arith.constant 0 : index
    %c0_20 = arith.constant 0 : index
    %c0_21 = arith.constant 0 : index
    %c0_22 = arith.constant 0 : index
    %25 = vector.load %arg4[%c0_19, %c0_20, %c0_21, %c0_22] : memref<1x4x8x32xbf16, #tpu.memory_space<vmem>>, vector<1x4x8x32xbf16>
    %26 = vector.shape_cast %25 : vector<1x4x8x32xbf16> to vector<4x8x32xbf16>
    %27 = vector.shape_cast %24 : vector<4x8x32xbf16> to vector<1x4x8x32xbf16>
    tpu.vector_store %arg4[%c0_19, %c0_20, %c0_21, %c0_22], %27 {strides = array<i32>} : memref<1x4x8x32xbf16, #tpu.memory_space<vmem>>, vector<1x4x8x32xbf16>,
    return
  }
  func.func @transform_0(%arg0: i32) -> (i32, i32, i32, i32) {
    %c0_i32 = arith.constant 0 : i32
    %c0_i32_0 = arith.constant 0 : i32
    %c0_i32_1 = arith.constant 0 : i32
    %c0_i32_2 = arith.constant 0 : i32
    return %arg0, %c0_i32, %c0_i32_0, %c0_i32_1 : i32, i32, i32, i32
  }
  func.func @transform_1(%arg0: i32) -> (i32, i32, i32, i32) {
    %c0_i32 = arith.constant 0 : i32
    %c0_i32_0 = arith.constant 0 : i32
    %c0_i32_1 = arith.constant 0 : i32
    %c0_i32_2 = arith.constant 0 : i32
    return %arg0, %c0_i32, %c0_i32_0, %c0_i32_1 : i32, i32, i32, i32
  }
  func.func @transform_2(%arg0: i32) -> (i32, i32, i32, i32) {
    %c0_i32 = arith.constant 0 : i32
    %c0_i32_0 = arith.constant 0 : i32
    %c0_i32_1 = arith.constant 0 : i32
    %c0_i32_2 = arith.constant 0 : i32
    return %arg0, %c0_i32, %c0_i32_0, %c0_i32_1 : i32, i32, i32, i32
  }
  func.func @transform_3(%arg0: i32) -> (i32, i32, i32, i32) {
    %c0_i32 = arith.constant 0 : i32
    %c0_i32_0 = arith.constant 0 : i32
    %c0_i32_1 = arith.constant 0 : i32
    %c0_i32_2 = arith.constant 0 : i32
    return %arg0, %c0_i32, %c0_i32_0, %c0_i32_1 : i32, i32, i32, i32
  }
  func.func @transform_4(%arg0: i32) -> (i32, i32, i32, i32) {
    %c0_i32 = arith.constant 0 : i32
    %c0_i32_0 = arith.constant 0 : i32
    %c0_i32_1 = arith.constant 0 : i32
    %c0_i32_2 = arith.constant 0 : i32
    return %arg0, %c0_i32, %c0_i32_0, %c0_i32_1 : i32, i32, i32, i32
  }
}

module attributes {stable_mosaic.version = 11 : i64} {
  func.func @out_ffn_kernel(%arg0: i32, %arg1: memref<1x8x128xf32, #tpu.memory_space<vmem>>, %arg2: memref<1x8x128xbf16, #tpu.memory_space<vmem>>, %arg3: memref<128x128xbf16, #tpu.memory_space<vmem>>, %arg4: memref<1x128xf32, #tpu.memory_space<vmem>>, %arg5: memref<1x128xf32, #tpu.memory_space<vmem>>, %arg6: memref<1x128xf32, #tpu.memory_space<vmem>>, %arg7: memref<128x256xbf16, #tpu.memory_space<vmem>>, %arg8: memref<1x256xf32, #tpu.memory_space<vmem>>, %arg9: memref<256x128xbf16, #tpu.memory_space<vmem>>, %arg10: memref<1x128xf32, #tpu.memory_space<vmem>>, %arg11: memref<1x128xf32, #tpu.memory_space<vmem>>, %arg12: memref<1x128xf32, #tpu.memory_space<vmem>>, %arg13: memref<1x8x128xf32, #tpu.memory_space<vmem>>) attributes {dimension_semantics = [#tpu.dimension_semantics<parallel>], iteration_bounds = array<i64: 2>, scalar_prefetch = 0 : i64, scratch_operands = 0 : i64, tpu.core_type = #tpu.core_type<tc>, window_params = [{transform_indices = @transform_0, window_bounds = array<i64: 1, 8, 128>}, {transform_indices = @transform_1, window_bounds = array<i64: 1, 8, 128>}, {pipeline_mode = #tpu.pipeline_mode<synchronous>, transform_indices = @transform_2, window_bounds = array<i64: 128, 128>}, {pipeline_mode = #tpu.pipeline_mode<synchronous>, transform_indices = @transform_3, window_bounds = array<i64: 1, 128>}, {pipeline_mode = #tpu.pipeline_mode<synchronous>, transform_indices = @transform_4, window_bounds = array<i64: 1, 128>}, {pipeline_mode = #tpu.pipeline_mode<synchronous>, transform_indices = @transform_5, window_bounds = array<i64: 1, 128>}, {pipeline_mode = #tpu.pipeline_mode<synchronous>, transform_indices = @transform_6, window_bounds = array<i64: 128, 256>}, {pipeline_mode = #tpu.pipeline_mode<synchronous>, transform_indices = @transform_7, window_bounds = array<i64: 1, 256>}, {pipeline_mode = #tpu.pipeline_mode<synchronous>, transform_indices = @transform_8, window_bounds = array<i64: 256, 128>}, {pipeline_mode = #tpu.pipeline_mode<synchronous>, transform_indices = @transform_9, window_bounds = array<i64: 1, 128>}, {pipeline_mode = #tpu.pipeline_mode<synchronous>, transform_indices = @transform_10, window_bounds = array<i64: 1, 128>}, {pipeline_mode = #tpu.pipeline_mode<synchronous>, transform_indices = @transform_11, window_bounds = array<i64: 1, 128>}, {transform_indices = @transform_12, window_bounds = array<i64: 1, 8, 128>}]} {
    %c0 = arith.constant 0 : index
    %c0_0 = arith.constant 0 : index
    %c0_1 = arith.constant 0 : index
    %0 = vector.load %arg1[%c0, %c0_0, %c0_1] : memref<1x8x128xf32, #tpu.memory_space<vmem>>, vector<1x8x128xf32>
    %1 = vector.shape_cast %0 : vector<1x8x128xf32> to vector<8x128xf32>
    %c0_2 = arith.constant 0 : index
    %c0_3 = arith.constant 0 : index
    %c0_4 = arith.constant 0 : index
    %2 = vector.load %arg2[%c0_2, %c0_3, %c0_4] : memref<1x8x128xbf16, #tpu.memory_space<vmem>>, vector<1x8x128xbf16>
    %3 = vector.shape_cast %2 : vector<1x8x128xbf16> to vector<8x128xbf16>
    %c0_5 = arith.constant 0 : index
    %c0_6 = arith.constant 0 : index
    %4 = vector.load %arg3[%c0_5, %c0_6] : memref<128x128xbf16, #tpu.memory_space<vmem>>, vector<128x128xbf16>
    %cst = arith.constant dense<0.000000e+00> : vector<8x128xf32>
    %5 = tpu.matmul %3, %4, %cst {dimension_numbers = #tpu.dot_dimension_numbers<[1], [0], [0], [1], [0, 0, 1, 1], [], []>} : vector<8x128xbf16>, vector<128x128xbf16>, vector<8x128xf32> -> vector<8x128xf32>
    %c0_7 = arith.constant 0 : index
    %c0_8 = arith.constant 0 : index
    %6 = vector.load %arg4[%c0_7, %c0_8] : memref<1x128xf32, #tpu.memory_space<vmem>>, vector<1x128xf32>
    %7 = vector.broadcast %6 : vector<1x128xf32> to vector<8x128xf32>
    %8 = arith.addf %5, %7 : vector<8x128xf32>
    %9 = arith.addf %1, %8 : vector<8x128xf32>
    %c0_9 = arith.constant 0 : index
    %c0_10 = arith.constant 0 : index
    %10 = vector.load %arg5[%c0_9, %c0_10] : memref<1x128xf32, #tpu.memory_space<vmem>>, vector<1x128xf32>
    %c0_11 = arith.constant 0 : index
    %c0_12 = arith.constant 0 : index
    %11 = vector.load %arg6[%c0_11, %c0_12] : memref<1x128xf32, #tpu.memory_space<vmem>>, vector<1x128xf32>
    %cst_13 = arith.constant dense<0.000000e+00> : vector<8xf32>
    %12 = vector.multi_reduction <add>, %9, %cst_13 [1] : vector<8x128xf32> to vector<8xf32>
    %13 = vector.shape_cast %12 : vector<8xf32> to vector<8x1xf32>
    %cst_14 = arith.constant 1.280000e+02 : f32
    %14 = vector.broadcast %cst_14 : f32 to vector<8x1xf32>
    %15 = arith.divf %13, %14 : vector<8x1xf32>
    %16 = vector.broadcast %15 : vector<8x1xf32> to vector<8x128xf32>
    %17 = arith.subf %9, %16 : vector<8x128xf32>
    %18 = arith.mulf %17, %17 : vector<8x128xf32>
    %cst_15 = arith.constant dense<0.000000e+00> : vector<8xf32>
    %19 = vector.multi_reduction <add>, %18, %cst_15 [1] : vector<8x128xf32> to vector<8xf32>
    %20 = vector.shape_cast %19 : vector<8xf32> to vector<8x1xf32>
    %cst_16 = arith.constant 1.280000e+02 : f32
    %21 = vector.broadcast %cst_16 : f32 to vector<8x1xf32>
    %22 = arith.divf %20, %21 : vector<8x1xf32>
    %23 = vector.broadcast %15 : vector<8x1xf32> to vector<8x128xf32>
    %24 = arith.subf %9, %23 : vector<8x128xf32>
    %cst_17 = arith.constant 9.99999974E-6 : f32
    %25 = vector.broadcast %cst_17 : f32 to vector<8x1xf32>
    %26 = arith.addf %22, %25 : vector<8x1xf32>
    %27 = math.rsqrt %26 : vector<8x1xf32>
    %28 = vector.broadcast %27 : vector<8x1xf32> to vector<8x128xf32>
    %29 = arith.mulf %24, %28 : vector<8x128xf32>
    %30 = vector.broadcast %10 : vector<1x128xf32> to vector<8x128xf32>
    %31 = arith.mulf %29, %30 : vector<8x128xf32>
    %32 = vector.broadcast %11 : vector<1x128xf32> to vector<8x128xf32>
    %33 = arith.addf %31, %32 : vector<8x128xf32>
    %34 = arith.truncf %33 : vector<8x128xf32> to vector<8x128xbf16>
    %c0_18 = arith.constant 0 : index
    %c0_19 = arith.constant 0 : index
    %35 = vector.load %arg7[%c0_18, %c0_19] : memref<128x256xbf16, #tpu.memory_space<vmem>>, vector<128x256xbf16>
    %cst_20 = arith.constant dense<0.000000e+00> : vector<8x256xf32>
    %36 = tpu.matmul %34, %35, %cst_20 {dimension_numbers = #tpu.dot_dimension_numbers<[1], [0], [0], [1], [0, 0, 1, 1], [], []>} : vector<8x128xbf16>, vector<128x256xbf16>, vector<8x256xf32> -> vector<8x256xf32>
    %c0_21 = arith.constant 0 : index
    %c0_22 = arith.constant 0 : index
    %37 = vector.load %arg8[%c0_21, %c0_22] : memref<1x256xf32, #tpu.memory_space<vmem>>, vector<1x256xf32>
    %38 = vector.broadcast %37 : vector<1x256xf32> to vector<8x256xf32>
    %39 = arith.addf %36, %38 : vector<8x256xf32>
    %cst_23 = arith.constant 0.000000e+00 : f32
    %40 = vector.broadcast %cst_23 : f32 to vector<8x256xf32>
    %41 = arith.maximumf %39, %40 : vector<8x256xf32>
    %42 = arith.truncf %41 : vector<8x256xf32> to vector<8x256xbf16>
    %c0_24 = arith.constant 0 : index
    %c0_25 = arith.constant 0 : index
    %43 = vector.load %arg9[%c0_24, %c0_25] : memref<256x128xbf16, #tpu.memory_space<vmem>>, vector<256x128xbf16>
    %cst_26 = arith.constant dense<0.000000e+00> : vector<8x128xf32>
    %44 = tpu.matmul %42, %43, %cst_26 {dimension_numbers = #tpu.dot_dimension_numbers<[1], [0], [0], [1], [0, 0, 1, 1], [], []>} : vector<8x256xbf16>, vector<256x128xbf16>, vector<8x128xf32> -> vector<8x128xf32>
    %c0_27 = arith.constant 0 : index
    %c0_28 = arith.constant 0 : index
    %45 = vector.load %arg10[%c0_27, %c0_28] : memref<1x128xf32, #tpu.memory_space<vmem>>, vector<1x128xf32>
    %46 = vector.broadcast %45 : vector<1x128xf32> to vector<8x128xf32>
    %47 = arith.addf %44, %46 : vector<8x128xf32>
    %48 = arith.addf %33, %47 : vector<8x128xf32>
    %c0_29 = arith.constant 0 : index
    %c0_30 = arith.constant 0 : index
    %49 = vector.load %arg11[%c0_29, %c0_30] : memref<1x128xf32, #tpu.memory_space<vmem>>, vector<1x128xf32>
    %c0_31 = arith.constant 0 : index
    %c0_32 = arith.constant 0 : index
    %50 = vector.load %arg12[%c0_31, %c0_32] : memref<1x128xf32, #tpu.memory_space<vmem>>, vector<1x128xf32>
    %cst_33 = arith.constant dense<0.000000e+00> : vector<8xf32>
    %51 = vector.multi_reduction <add>, %48, %cst_33 [1] : vector<8x128xf32> to vector<8xf32>
    %52 = vector.shape_cast %51 : vector<8xf32> to vector<8x1xf32>
    %cst_34 = arith.constant 1.280000e+02 : f32
    %53 = vector.broadcast %cst_34 : f32 to vector<8x1xf32>
    %54 = arith.divf %52, %53 : vector<8x1xf32>
    %55 = vector.broadcast %54 : vector<8x1xf32> to vector<8x128xf32>
    %56 = arith.subf %48, %55 : vector<8x128xf32>
    %57 = arith.mulf %56, %56 : vector<8x128xf32>
    %cst_35 = arith.constant dense<0.000000e+00> : vector<8xf32>
    %58 = vector.multi_reduction <add>, %57, %cst_35 [1] : vector<8x128xf32> to vector<8xf32>
    %59 = vector.shape_cast %58 : vector<8xf32> to vector<8x1xf32>
    %cst_36 = arith.constant 1.280000e+02 : f32
    %60 = vector.broadcast %cst_36 : f32 to vector<8x1xf32>
    %61 = arith.divf %59, %60 : vector<8x1xf32>
    %62 = vector.broadcast %54 : vector<8x1xf32> to vector<8x128xf32>
    %63 = arith.subf %48, %62 : vector<8x128xf32>
    %cst_37 = arith.constant 9.99999974E-6 : f32
    %64 = vector.broadcast %cst_37 : f32 to vector<8x1xf32>
    %65 = arith.addf %61, %64 : vector<8x1xf32>
    %66 = math.rsqrt %65 : vector<8x1xf32>
    %67 = vector.broadcast %66 : vector<8x1xf32> to vector<8x128xf32>
    %68 = arith.mulf %63, %67 : vector<8x128xf32>
    %69 = vector.broadcast %49 : vector<1x128xf32> to vector<8x128xf32>
    %70 = arith.mulf %68, %69 : vector<8x128xf32>
    %71 = vector.broadcast %50 : vector<1x128xf32> to vector<8x128xf32>
    %72 = arith.addf %70, %71 : vector<8x128xf32>
    %c0_38 = arith.constant 0 : index
    %c0_39 = arith.constant 0 : index
    %c0_40 = arith.constant 0 : index
    %73 = vector.load %arg13[%c0_38, %c0_39, %c0_40] : memref<1x8x128xf32, #tpu.memory_space<vmem>>, vector<1x8x128xf32>
    %74 = vector.shape_cast %73 : vector<1x8x128xf32> to vector<8x128xf32>
    %75 = vector.shape_cast %72 : vector<8x128xf32> to vector<1x8x128xf32>
    tpu.vector_store %arg13[%c0_38, %c0_39, %c0_40], %75 {strides = array<i32>} : memref<1x8x128xf32, #tpu.memory_space<vmem>>, vector<1x8x128xf32>,
    return
  }
  func.func @transform_0(%arg0: i32) -> (i32, i32, i32) {
    %c0_i32 = arith.constant 0 : i32
    %c0_i32_0 = arith.constant 0 : i32
    %c0_i32_1 = arith.constant 0 : i32
    return %arg0, %c0_i32, %c0_i32_0 : i32, i32, i32
  }
  func.func @transform_1(%arg0: i32) -> (i32, i32, i32) {
    %c0_i32 = arith.constant 0 : i32
    %c0_i32_0 = arith.constant 0 : i32
    %c0_i32_1 = arith.constant 0 : i32
    return %arg0, %c0_i32, %c0_i32_0 : i32, i32, i32
  }
  func.func @transform_2(%arg0: i32) -> (i32, i32) {
    %c0_i32 = arith.constant 0 : i32
    %c0_i32_0 = arith.constant 0 : i32
    %c0_i32_1 = arith.constant 0 : i32
    return %c0_i32, %c0_i32_0 : i32, i32
  }
  func.func @transform_3(%arg0: i32) -> (i32, i32) {
    %c0_i32 = arith.constant 0 : i32
    %c0_i32_0 = arith.constant 0 : i32
    %c0_i32_1 = arith.constant 0 : i32
    return %c0_i32, %c0_i32_0 : i32, i32
  }
  func.func @transform_4(%arg0: i32) -> (i32, i32) {
    %c0_i32 = arith.constant 0 : i32
    %c0_i32_0 = arith.constant 0 : i32
    %c0_i32_1 = arith.constant 0 : i32
    return %c0_i32, %c0_i32_0 : i32, i32
  }
  func.func @transform_5(%arg0: i32) -> (i32, i32) {
    %c0_i32 = arith.constant 0 : i32
    %c0_i32_0 = arith.constant 0 : i32
    %c0_i32_1 = arith.constant 0 : i32
    return %c0_i32, %c0_i32_0 : i32, i32
  }
  func.func @transform_6(%arg0: i32) -> (i32, i32) {
    %c0_i32 = arith.constant 0 : i32
    %c0_i32_0 = arith.constant 0 : i32
    %c0_i32_1 = arith.constant 0 : i32
    return %c0_i32, %c0_i32_0 : i32, i32
  }
  func.func @transform_7(%arg0: i32) -> (i32, i32) {
    %c0_i32 = arith.constant 0 : i32
    %c0_i32_0 = arith.constant 0 : i32
    %c0_i32_1 = arith.constant 0 : i32
    return %c0_i32, %c0_i32_0 : i32, i32
  }
  func.func @transform_8(%arg0: i32) -> (i32, i32) {
    %c0_i32 = arith.constant 0 : i32
    %c0_i32_0 = arith.constant 0 : i32
    %c0_i32_1 = arith.constant 0 : i32
    return %c0_i32, %c0_i32_0 : i32, i32
  }
  func.func @transform_9(%arg0: i32) -> (i32, i32) {
    %c0_i32 = arith.constant 0 : i32
    %c0_i32_0 = arith.constant 0 : i32
    %c0_i32_1 = arith.constant 0 : i32
    return %c0_i32, %c0_i32_0 : i32, i32
  }
  func.func @transform_10(%arg0: i32) -> (i32, i32) {
    %c0_i32 = arith.constant 0 : i32
    %c0_i32_0 = arith.constant 0 : i32
    %c0_i32_1 = arith.constant 0 : i32
    return %c0_i32, %c0_i32_0 : i32, i32
  }
  func.func @transform_11(%arg0: i32) -> (i32, i32) {
    %c0_i32 = arith.constant 0 : i32
    %c0_i32_0 = arith.constant 0 : i32
    %c0_i32_1 = arith.constant 0 : i32
    return %c0_i32, %c0_i32_0 : i32, i32
  }
  func.func @transform_12(%arg0: i32) -> (i32, i32, i32) {
    %c0_i32 = arith.constant 0 : i32
    %c0_i32_0 = arith.constant 0 : i32
    %c0_i32_1 = arith.constant 0 : i32
    return %arg0, %c0_i32, %c0_i32_0 : i32, i32, i32
  }
}

</mosaic_0001>

<llo_original>
// kernel: encoder_layer_forward.3
$region0: #{encoder_layer_forward.3}
  #allocation0 [shape = 'u32[]', space=smem, size = 0x4, offset = 0x4, fixed_abs, tag = 'smem constant byte address 0x4 - core index']
  #allocation1 [shape = 'u32[144,128]{1,0:T(1,128)}', space=vmem, size = 0x12000, scoped, tag = 'internal scratch']
  %s0 = inlined_call_operand.hbm [shape: f32[2,8,128], index: 0, kind: input, shape index: {}]
  %s1 = inlined_call_operand.hbm [shape: bf16[128,384], index: 1, kind: input, shape index: {}]
  %s2 = inlined_call_operand.hbm [shape: f32[1,384], index: 2, kind: input, shape index: {}]
  %s3 = inlined_call_operand.hbm [shape: bf16[2,8,128], index: 3, kind: output, shape index: {0}]
  %s4 = inlined_call_operand.hbm [shape: bf16[2,8,128], index: 4, kind: output, shape index: {1}]
  %s5 = inlined_call_operand.hbm [shape: bf16[2,8,128], index: 5, kind: output, shape index: {2}]
  %6 = xla_tuple %s3, %s4, %s5
  %s7 = sld [smem:[#allocation0]]
  $region73: #{encoder_layer_forward.3} parent=0
    _
  %s9 = ssub.s32 1, %s7
  %s10 = scalar_select 0, %s9, %s7
  $region1: #{encoder_layer_forward.3} parent=0
    #allocation2 [shape = 'u8[8192]{0}', space=vmem, size = 0x2000, scoped, tag = 'input window, operand 0']
    #allocation3 [shape = 's32[2]{0}', space=sflag, size = 0x8, scoped, tag = 'scoped memory for encoder_layer_forward.3']
    #allocation4 [shape = 's32[2]{0}', space=sflag, size = 0x8, scoped, tag = 'scoped memory for encoder_layer_forward.3']
    #allocation5 [shape = 'u8[98304]{0}', space=vmem, size = 0x18000, scoped, tag = 'input window, operand 1, single buffered']
    #allocation6 [shape = 's32[1]{0}', space=sflag, size = 0x4, scoped, tag = 'scoped memory for encoder_layer_forward.3']
    #allocation7 [shape = 'u8[1536]{0}', space=vmem, size = 0x800, scoped, tag = 'input window, operand 2, single buffered']
    #allocation8 [shape = 'u8[4096]{0}', space=vmem, size = 0x1000, scoped, tag = 'output window, operand 0']
    #allocation9 [shape = 'u8[4096]{0}', space=vmem, size = 0x1000, scoped, tag = 'output window, operand 1']
    #allocation10 [shape = 's32[2]{0}', space=sflag, size = 0x8, scoped, tag = 'scoped memory for encoder_layer_forward.3']
    #allocation11 [shape = 'u8[4096]{0}', space=vmem, size = 0x1000, scoped, tag = 'output window, operand 2']
    %11 = vsyncpa [#allocation3], 0
    %s12 = scalar_lea.sflag [#allocation3], 1
    %13 = vsyncpa %s12, 0
    %14 = vsyncpa [#allocation6], 0
    %15 = vsyncpa [#allocation4], 0
    %s16 = scalar_lea.sflag [#allocation4], 1
    %17 = vsyncpa %s16, 0
    %18 = vsyncpa [#allocation10], 0
    %s19 = scalar_lea.sflag [#allocation10], 1
    %20 = vsyncpa %s19, 0
    loop: start=0, step=1, limit=4
    $region2: #{encoder_layer_forward.3} parent=1 // loop_pre_header
      _
    $region3: #{encoder_layer_forward.3} parent=1 // loop_header
      %s22 = sphi 0, %s26
      %p23 = scmp.ge.s32.totalorder %s22, 4
      %s32 = sphi 0, %s34
      %s35 = sphi 0, %s32
      %s36 = sphi 0, %s35
      %s52 = sphi 0, %s36
      %s56 = sphi 0, %s56
      %s58 = sphi 0, %s56
      %s59 = sphi 0, %s58
      %s73 = sphi 0, %s59
      %s77 = sphi 0, %s77
      %s79 = sphi 0, %s77
      %s80 = sphi 0, %s79
      %s94 = sphi 0, %s80
      %s100 = sphi 0, %s102
      %s103 = sphi 0, %s100
      %s104 = sphi 0, %s103
      %s120 = sphi 0, %s104
      %s126 = sphi 0, %s128
      %s129 = sphi 0, %s126
      %s130 = sphi 0, %s129
      %s146 = sphi 0, %s130
      %s152 = sphi 0, %s154
      %s155 = sphi 0, %s152
      %s156 = sphi 0, %s155
      %s172 = sphi 0, %s156
    $region4: #{encoder_layer_forward.3} parent=1 // loop_header_branch
      %25 = sbr.rel (%p23) target = $region8
    $region5: #{encoder_layer_forward.3} parent=1 // loop_body
      %s27 = ssub.s32 %s22, 1
      %s28 = ssub.s32 %s22, 2
      %s29 = sadd.s32 %s22, 1
      %s30 = ssub.s32 %s22, %s29
      %p31 = scmp.eq.s32.totalorder %s30, 0
      %s33 = sadd.s32 %s32, 1
      %s34 = scalar_select %p31, %s32, %s33
      %p37 = pneg %p31
      %p38 = scmp.eq.s32.totalorder %s22, 1
      %p39 = por %p37, %p38
      %p40 = scmp.ne.s32.totalorder %s32, %s35
      %p41 = scmp.eq.s32.totalorder %s22, 0
      %p42 = por %p40, %p41
      %p43 = scmp.ne.s32.totalorder %s32, %s35
      %p44 = scmp.eq.s32.totalorder %s27, 1
      %p45 = por %p43, %p44
      %p46 = scmp.ne.s32.totalorder %s35, %s36
      %p47 = scmp.eq.s32.totalorder %s27, 0
      %p48 = por %p46, %p47
      %p49 = scmp.ne.s32.totalorder %s35, %s36
      %p50 = scmp.eq.s32.totalorder %s28, 1
      %p51 = por %p49, %p50
      %p53 = scmp.ne.s32.totalorder %s36, %s52
      %p54 = scmp.eq.s32.totalorder %s28, 0
      %p55 = por %p53, %p54
      %s57 = sadd.s32 %s56, 1
      %p60 = scmp.eq.s32.totalorder %s22, 1
      %p61 = scmp.ne.s32.totalorder %s56, %s58
      %p62 = scmp.eq.s32.totalorder %s22, 0
      %p63 = por %p61, %p62
      %p64 = scmp.ne.s32.totalorder %s56, %s58
      %p65 = scmp.eq.s32.totalorder %s27, 1
      %p66 = por %p64, %p65
      %p67 = scmp.ne.s32.totalorder %s58, %s59
      %p68 = scmp.eq.s32.totalorder %s27, 0
      %p69 = por %p67, %p68
      %p70 = scmp.ne.s32.totalorder %s58, %s59
      %p71 = scmp.eq.s32.totalorder %s28, 1
      %p72 = por %p70, %p71
      %p74 = scmp.ne.s32.totalorder %s59, %s73
      %p75 = scmp.eq.s32.totalorder %s28, 0
      %p76 = por %p74, %p75
      %s78 = sadd.s32 %s77, 1
      %p81 = scmp.eq.s32.totalorder %s22, 1
      %p82 = scmp.ne.s32.totalorder %s77, %s79
      %p83 = scmp.eq.s32.totalorder %s22, 0
      %p84 = por %p82, %p83
      %p85 = scmp.ne.s32.totalorder %s77, %s79
      %p86 = scmp.eq.s32.totalorder %s27, 1
      %p87 = por %p85, %p86
      %p88 = scmp.ne.s32.totalorder %s79, %s80
      %p89 = scmp.eq.s32.totalorder %s27, 0
      %p90 = por %p88, %p89
      %p91 = scmp.ne.s32.totalorder %s79, %s80
      %p92 = scmp.eq.s32.totalorder %s28, 1
      %p93 = por %p91, %p92
      %p95 = scmp.ne.s32.totalorder %s80, %s94
      %p96 = scmp.eq.s32.totalorder %s28, 0
      %p97 = por %p95, %p96
      %s98 = ssub.s32 %s22, %s29
      %p99 = scmp.eq.s32.totalorder %s98, 0
      %s101 = sadd.s32 %s100, 1
      %s102 = scalar_select %p99, %s100, %s101
      %p105 = pneg %p99
      %p106 = scmp.eq.s32.totalorder %s22, 1
      %p107 = por %p105, %p106
      %p108 = scmp.ne.s32.totalorder %s100, %s103
      %p109 = scmp.eq.s32.totalorder %s22, 0
      %p110 = por %p108, %p109
      %p111 = scmp.ne.s32.totalorder %s100, %s103
      %p112 = scmp.eq.s32.totalorder %s27, 1
      %p113 = por %p111, %p112
      %p114 = scmp.ne.s32.totalorder %s103, %s104
      %p115 = scmp.eq.s32.totalorder %s27, 0
      %p116 = por %p114, %p115
      %p117 = scmp.ne.s32.totalorder %s103, %s104
      %p118 = scmp.eq.s32.totalorder %s28, 1
      %p119 = por %p117, %p118
      %p121 = scmp.ne.s32.totalorder %s104, %s120
      %p122 = scmp.eq.s32.totalorder %s28, 0
      %p123 = por %p121, %p122
      %s124 = ssub.s32 %s22, %s29
      %p125 = scmp.eq.s32.totalorder %s124, 0
      %s127 = sadd.s32 %s126, 1
      %s128 = scalar_select %p125, %s126, %s127
      %p131 = pneg %p125
      %p132 = scmp.eq.s32.totalorder %s22, 1
      %p133 = por %p131, %p132
      %p134 = scmp.ne.s32.totalorder %s126, %s129
      %p135 = scmp.eq.s32.totalorder %s22, 0
      %p136 = por %p134, %p135
      %p137 = scmp.ne.s32.totalorder %s126, %s129
      %p138 = scmp.eq.s32.totalorder %s27, 1
      %p139 = por %p137, %p138
      %p140 = scmp.ne.s32.totalorder %s129, %s130
      %p141 = scmp.eq.s32.totalorder %s27, 0
      %p142 = por %p140, %p141
      %p143 = scmp.ne.s32.totalorder %s129, %s130
      %p144 = scmp.eq.s32.totalorder %s28, 1
      %p145 = por %p143, %p144
      %p147 = scmp.ne.s32.totalorder %s130, %s146
      %p148 = scmp.eq.s32.totalorder %s28, 0
      %p149 = por %p147, %p148
      %s150 = ssub.s32 %s22, %s29
      %p151 = scmp.eq.s32.totalorder %s150, 0
      %s153 = sadd.s32 %s152, 1
      %s154 = scalar_select %p151, %s152, %s153
      %p157 = pneg %p151
      %p158 = scmp.eq.s32.totalorder %s22, 1
      %p159 = por %p157, %p158
      %p160 = scmp.ne.s32.totalorder %s152, %s155
      %p161 = scmp.eq.s32.totalorder %s22, 0
      %p162 = por %p160, %p161
      %p163 = scmp.ne.s32.totalorder %s152, %s155
      %p164 = scmp.eq.s32.totalorder %s27, 1
      %p165 = por %p163, %p164
      %p166 = scmp.ne.s32.totalorder %s155, %s156
      %p167 = scmp.eq.s32.totalorder %s27, 0
      %p168 = por %p166, %p167
      %p169 = scmp.ne.s32.totalorder %s155, %s156
      %p170 = scmp.eq.s32.totalorder %s28, 1
      %p171 = por %p169, %p170
      %p173 = scmp.ne.s32.totalorder %s156, %s172
      %p174 = scmp.eq.s32.totalorder %s28, 0
      %p175 = por %p173, %p174
      %p176 = scmp.le.s32.totalorder 1, %s22
      %p177 = scmp.lt.s32.totalorder %s22, 3
      %p178 = pnand %p176, %p177
      %p179 = pneg %p178
      // Predicated region
      $region9: #{encoder_layer_forward.3} parent=5 // pred_check
        _
      $region10: #{encoder_layer_forward.3} parent=5 // pred_check_branch
        %181 = sbr.rel (%p178) target = $region12
      $region11: #{encoder_layer_forward.3} parent=5 // pred_region
        %s182 = ssub.s32 %s22, 1
        // Predicated region
        $region13: #{encoder_layer_forward.3} parent=11 // pred_check
          %p183 = pneg %p69
        $region14: #{encoder_layer_forward.3} parent=11 // pred_check_branch
          %185 = sbr.rel (%p183) target = $region16
        $region15: #{encoder_layer_forward.3} parent=11 // pred_region
          %s187 = ssub.s32 3072, 3072
          %188 = vsyncadd [#allocation6], %s187
          %s189 = sshll.u32 [#allocation5], 4
          %s190 = int_to_ptr.vmem [resolvable:$true] %s189
          %195 = dma.hbm_to_vmem [thread:$0]  %s1, 3072, %s190, [#allocation6], 192, 192, 12
        $region16: #{encoder_layer_forward.3} parent=11 // pred_fallthru
          _
        // Predicated region
        $region17: #{encoder_layer_forward.3} parent=11 // pred_check
          %p196 = pneg %p90
        $region18: #{encoder_layer_forward.3} parent=11 // pred_check_branch
          %198 = sbr.rel (%p196) target = $region20
        $region19: #{encoder_layer_forward.3} parent=11 // pred_region
          %s200 = ssub.s32 48, 48
          %201 = vsyncadd [#allocation6], %s200
          %s203 = sshll.u32 [#allocation7], 4
          %s204 = int_to_ptr.vmem [resolvable:$true] %s203
          %206 = dma.hbm_to_vmem [thread:$0]  %s2, 48, %s204, [#allocation6]
        $region20: #{encoder_layer_forward.3} parent=11 // pred_fallthru
          _
      $region12: #{encoder_layer_forward.3} parent=5 // pred_fallthru
        _
      %p207 = scmp.lt.s32.totalorder %s22, 2
      // Predicated region
      $region21: #{encoder_layer_forward.3} parent=5 // pred_check
        %p208 = pneg %p207
      $region22: #{encoder_layer_forward.3} parent=5 // pred_check_branch
        %210 = sbr.rel (%p208) target = $region24
      $region23: #{encoder_layer_forward.3} parent=5 // pred_region
        // Predicated region
        $region25: #{encoder_layer_forward.3} parent=23 // pred_check
          %p211 = pneg %p42
        $region26: #{encoder_layer_forward.3} parent=23 // pred_check_branch
          %213 = sbr.rel (%p211) target = $region28
        $region27: #{encoder_layer_forward.3} parent=23 // pred_region
          %s214 = sand.u32 %s32, 1
          %s215 = scalar_lea.sflag [#allocation3], %s214
          %s216 = sand.u32 %s32, 1
          %s217 = smul.addr %s216, 8
          %s218 = scalar_lea.vmem [#allocation2], %s217
          %s220 = ssub.s32 128, 128
          %221 = vsyncadd %s215, %s220
          %s222 = smul.addr %s22, 128
          %s223 = scalar_lea.hbm %s0, %s222
          %s225 = sshll.u32 %s218, 4
          %s226 = int_to_ptr.vmem [resolvable:$true] %s225
          %228 = dma.hbm_to_vmem [thread:$0]  %s223, 128, %s226, %s215
        $region28: #{encoder_layer_forward.3} parent=23 // pred_fallthru
          _
      $region24: #{encoder_layer_forward.3} parent=5 // pred_fallthru
        _
      %p229 = scmp.le.s32.totalorder 1, %s22
      %p230 = scmp.lt.s32.totalorder %s22, 3
      %p231 = pnand %p229, %p230
      %p232 = pneg %p231
      // Predicated region
      $region29: #{encoder_layer_forward.3} parent=5 // pred_check
        _
      $region30: #{encoder_layer_forward.3} parent=5 // pred_check_branch
        %234 = sbr.rel (%p231) target = $region32
      $region31: #{encoder_layer_forward.3} parent=5 // pred_region
        %s235 = ssub.s32 %s22, 1
        %s236 = sand.u32 %s35, 1
        %s237 = scalar_lea.sflag [#allocation3], %s236
        %s238 = sand.u32 %s35, 1
        %s239 = smul.addr %s238, 8
        %s240 = scalar_lea.vmem [#allocation2], %s239
        // Predicated region
        $region33: #{encoder_layer_forward.3} parent=31 // pred_check
          %p241 = pneg %p48
        $region34: #{encoder_layer_forward.3} parent=31 // pred_check_branch
          %243 = sbr.rel (%p241) target = $region36
        $region35: #{encoder_layer_forward.3} parent=31 // pred_region
          %244 = dma.done %s237, 128
        $region36: #{encoder_layer_forward.3} parent=31 // pred_fallthru
          _
        // Predicated region
        $region37: #{encoder_layer_forward.3} parent=31 // pred_check
          %p245 = pneg %p69
        $region38: #{encoder_layer_forward.3} parent=31 // pred_check_branch
          %247 = sbr.rel (%p245) target = $region40
        $region39: #{encoder_layer_forward.3} parent=31 // pred_region
          %248 = dma.done [#allocation6], 3072
        $region40: #{encoder_layer_forward.3} parent=31 // pred_fallthru
          _
        // Predicated region
        $region41: #{encoder_layer_forward.3} parent=31 // pred_check
          %p249 = pneg %p90
        $region42: #{encoder_layer_forward.3} parent=31 // pred_check_branch
          %251 = sbr.rel (%p249) target = $region44
        $region43: #{encoder_layer_forward.3} parent=31 // pred_region
          %252 = dma.done [#allocation6], 48
        $region44: #{encoder_layer_forward.3} parent=31 // pred_fallthru
          _
        %s253 = sand.u32 %s35, 1
        %s254 = scalar_lea.sflag [#allocation3], %s253
        %s255 = sand.u32 %s35, 1
        %s256 = smul.addr %s255, 8
        %s257 = scalar_lea.vmem [#allocation2], %s256
        %p258 = pneg %p48
        %p259 = pneg %p45
        %p260 = pneg %p69
        %p261 = pneg %p66
        %p262 = pneg %p90
        %p263 = pneg %p87
        %p264 = pneg %p116
        %p265 = pneg %p113
        %s266 = sand.u32 %s103, 1
        %s267 = scalar_lea.sflag [#allocation4], %s266
        %s268 = sand.u32 %s103, 1
        %s269 = smul.addr %s268, 4
        %s270 = scalar_lea.vmem [#allocation8], %s269
        %p271 = pneg %p142
        %p272 = pneg %p139
        %s273 = sand.u32 %s27, 1
        %s274 = scalar_lea.sflag [#allocation10], %s273
        %s275 = sand.u32 %s129, 1
        %s276 = smul.addr %s275, 4
        %s277 = scalar_lea.vmem [#allocation9], %s276
        %p278 = pneg %p168
        %p279 = pneg %p165
        %s280 = sand.u32 %s27, 1
        %s281 = scalar_lea.sflag [#allocation10], %s280
        %s282 = sand.u32 %s155, 1
        %s283 = smul.addr %s282, 4
        %s284 = scalar_lea.vmem [#allocation11], %s283
        %v286 = vld [vmem:[%s240] sm:$0xff]
        %v287 = vpack.c.bf16 %v286, %v286
        %v288 = vld [vmem:[#allocation5] sm:$0xff]
        %v289 = vld [vmem:[#allocation5 + $0x8] sm:$0xf]
        %v290 = vld [vmem:[#allocation5 + $0xc] sm:$0xff]
        %v291 = vld [vmem:[#allocation5 + $0x14] sm:$0xf]
        %v292 = vld [vmem:[#allocation5 + $0x18] sm:$0xff]
        %v293 = vld [vmem:[#allocation5 + $0x20] sm:$0xf]
        %v294 = vld [vmem:[#allocation5 + $0x24] sm:$0xff]
        %v295 = vld [vmem:[#allocation5 + $0x2c] sm:$0xf]
        %v296 = vld [vmem:[#allocation5 + $0x30] sm:$0xff]
        %v297 = vld [vmem:[#allocation5 + $0x38] sm:$0xf]
        %v298 = vld [vmem:[#allocation5 + $0x3c] sm:$0xff]
        %v299 = vld [vmem:[#allocation5 + $0x44] sm:$0xf]
        %v300 = vld [vmem:[#allocation5 + $0x48] sm:$0xff]
        %v301 = vld [vmem:[#allocation5 + $0x50] sm:$0xf]
        %v302 = vld [vmem:[#allocation5 + $0x54] sm:$0xff]
        %v303 = vld [vmem:[#allocation5 + $0x5c] sm:$0xf]
        %v304 = vld [vmem:[#allocation5 + $0x60] sm:$0xff]
        %v305 = vld [vmem:[#allocation5 + $0x68] sm:$0xf]
        %v306 = vld [vmem:[#allocation5 + $0x6c] sm:$0xff]
        %v307 = vld [vmem:[#allocation5 + $0x74] sm:$0xf]
        %v308 = vld [vmem:[#allocation5 + $0x78] sm:$0xff]
        %v309 = vld [vmem:[#allocation5 + $0x80] sm:$0xf]
        %v310 = vld [vmem:[#allocation5 + $0x84] sm:$0xff]
        %v311 = vld [vmem:[#allocation5 + $0x8c] sm:$0xf]
        %v312 = vld [vmem:[#allocation5 + $0x90] sm:$0xff]
        %v313 = vld [vmem:[#allocation5 + $0x98] sm:$0xf]
        %v314 = vld [vmem:[#allocation5 + $0x9c] sm:$0xff]
        %v315 = vld [vmem:[#allocation5 + $0xa4] sm:$0xf]
        %v316 = vld [vmem:[#allocation5 + $0xa8] sm:$0xff]
        %v317 = vld [vmem:[#allocation5 + $0xb0] sm:$0xf]
        %v318 = vld [vmem:[#allocation5 + $0xb4] sm:$0xff]
        %v319 = vld [vmem:[#allocation5 + $0xbc] sm:$0xf]
        %v320 = vld [vmem:[#allocation7] sm:$0x7]
        %v322 = vlaneseq
        %v323 = vshrl.u32 %v322, 7
        %v324 = vsub.s32 0, %v323
        %v325 = vrot.slane %v320, %v324
        %v326 = vlaneseq
        %v327 = vshrl.u32 %v326, 7
        %v328 = vsub.s32 1, %v327
        %v329 = vrot.slane %v320, %v328
        %v330 = vlaneseq
        %v331 = vshrl.u32 %v330, 7
        %v332 = vsub.s32 2, %v331
        %v333 = vrot.slane %v320, %v332
        %v369 = vunpack.c.l.b16 %v288
        %v370 = vunpack.c.h.b16 %v288
        %v371 = vunpack.c.l.b16 %v289
        %v372 = vunpack.c.l.b16 %v290
        %v373 = vunpack.c.h.b16 %v290
        %v374 = vunpack.c.l.b16 %v291
        %v375 = vunpack.c.l.b16 %v292
        %v376 = vunpack.c.h.b16 %v292
        %v377 = vunpack.c.l.b16 %v293
        %v378 = vunpack.c.l.b16 %v294
        %v379 = vunpack.c.h.b16 %v294
        %v380 = vunpack.c.l.b16 %v295
        %v381 = vunpack.c.l.b16 %v296
        %v382 = vunpack.c.h.b16 %v296
        %v383 = vunpack.c.l.b16 %v297
        %v384 = vunpack.c.l.b16 %v298
        %v385 = vunpack.c.h.b16 %v298
        %v386 = vunpack.c.l.b16 %v299
        %v387 = vunpack.c.l.b16 %v300
        %v388 = vunpack.c.h.b16 %v300
        %v389 = vunpack.c.l.b16 %v301
        %v390 = vunpack.c.l.b16 %v302
        %v391 = vunpack.c.h.b16 %v302
        %v392 = vunpack.c.l.b16 %v303
        %v393 = vunpack.c.l.b16 %v304
        %v394 = vunpack.c.h.b16 %v304
        %v395 = vunpack.c.l.b16 %v305
        %v396 = vunpack.c.l.b16 %v306
        %v397 = vunpack.c.h.b16 %v306
        %v398 = vunpack.c.l.b16 %v307
        %v399 = vunpack.c.l.b16 %v308
        %v400 = vunpack.c.h.b16 %v308
        %v401 = vunpack.c.l.b16 %v309
        %v402 = vunpack.c.l.b16 %v310
        %v403 = vunpack.c.h.b16 %v310
        %v404 = vunpack.c.l.b16 %v311
        %v405 = vunpack.c.l.b16 %v312
        %v406 = vunpack.c.h.b16 %v312
        %v407 = vunpack.c.l.b16 %v313
        %v408 = vunpack.c.l.b16 %v314
        %v409 = vunpack.c.h.b16 %v314
        %v410 = vunpack.c.l.b16 %v315
        %v411 = vunpack.c.l.b16 %v316
        %v412 = vunpack.c.h.b16 %v316
        %v413 = vunpack.c.l.b16 %v317
        %v414 = vunpack.c.l.b16 %v318
        %v415 = vunpack.c.h.b16 %v318
        %v416 = vunpack.c.l.b16 %v319
        %v417 = vpack.c.b16 %v372, %v369
        %v418 = vpack.c.b16 %v373, %v370
        %v419 = vpack.c.b16 %v374, %v371
        %v420 = vpack.c.b16 %v378, %v375
        %v421 = vpack.c.b16 %v379, %v376
        %v422 = vpack.c.b16 %v380, %v377
        %v423 = vpack.c.b16 %v384, %v381
        %v424 = vpack.c.b16 %v385, %v382
        %v425 = vpack.c.b16 %v386, %v383
        %v426 = vpack.c.b16 %v390, %v387
        %v427 = vpack.c.b16 %v391, %v388
        %v428 = vpack.c.b16 %v392, %v389
        %v429 = vpack.c.b16 %v396, %v393
        %v430 = vpack.c.b16 %v397, %v394
        %v431 = vpack.c.b16 %v398, %v395
        %v432 = vpack.c.b16 %v402, %v399
        %v433 = vpack.c.b16 %v403, %v400
        %v434 = vpack.c.b16 %v404, %v401
        %v435 = vpack.c.b16 %v408, %v405
        %v436 = vpack.c.b16 %v409, %v406
        %v437 = vpack.c.b16 %v410, %v407
        %v438 = vpack.c.b16 %v414, %v411
        %v439 = vpack.c.b16 %v415, %v412
        %v440 = vpack.c.b16 %v416, %v413
        %465 = vmatprep.subr.bf16.mxu0 %v418
        %466 = vmatpush1.bf16.msra.mxu0 %v417
        %467 = vmatprep.subr.bf16.mxu0 %v421
        %468 = vmatpush1.bf16.msra.mxu0 %v420
        %469 = vmatprep.subr.bf16.mxu0 %v424
        %470 = vmatpush1.bf16.msra.mxu0 %v423
        %471 = vmatprep.subr.bf16.mxu0 %v427
        %472 = vmatpush1.bf16.msra.mxu0 %v426
        %473 = vmatprep.subr.bf16.mxu0 %v430
        %474 = vmatpush1.bf16.msra.mxu0 %v429
        %475 = vmatprep.subr.bf16.mxu0 %v433
        %476 = vmatpush1.bf16.msra.mxu0 %v432
        %477 = vmatprep.subr.bf16.mxu0 %v436
        %478 = vmatpush1.bf16.msra.mxu0 %v435
        %479 = vmatprep.subr.bf16.mxu0 %v439
        %480 = vmatpush1.bf16.msra.mxu0 %v438
        %481 = vmatprep.subr.bf16.mxu0 0
        %482 = vmatpush1.bf16.msra.mxu0 0
        %483 = vmatprep.subr.bf16.mxu0 0
        %484 = vmatpush1.bf16.msra.mxu0 0
        %485 = vmatprep.subr.bf16.mxu0 0
        %486 = vmatpush1.bf16.msra.mxu0 0
        %487 = vmatprep.subr.bf16.mxu0 0
        %488 = vmatpush1.bf16.msra.mxu0 0
        %489 = vmatprep.subr.bf16.mxu0 0
        %490 = vmatpush1.bf16.msra.mxu0 0
        %491 = vmatprep.subr.bf16.mxu0 0
        %492 = vmatpush1.bf16.msra.mxu0 0
        %493 = vmatprep.subr.bf16.mxu0 0
        %494 = vmatpush1.bf16.msra.mxu0 0
        %495 = vmatprep.subr.bf16.mxu0 0
        %496 = vmatpush1.bf16.msra.mxu0 0
        %497 = vmatprep.mubr.bf16.mxu0 0
        %498 = vmatmul.mubr.bf16.gmra.mrb[0].mxu0 %v287
        %v499 = vpop.f32.mrb[0].mxu0
        %v500 = vadd.f32 %v325, %v499
        %v501 = vpop.f32.mrb[0].mxu0
        %v502 = vadd.f32 %v329, %v501
        %v503 = vpop.f32.mrb[0].mxu0
        %v504 = vpop.f32.mrb[0].mxu0
        %505 = vdwg.mxu0
        %506 = vmatprep.subr.bf16.mxu0 0
        %507 = vmatpush1.bf16.msra.mxu0 %v419
        %508 = vmatprep.subr.bf16.mxu0 0
        %509 = vmatpush1.bf16.msra.mxu0 %v422
        %510 = vmatprep.subr.bf16.mxu0 0
        %511 = vmatpush1.bf16.msra.mxu0 %v425
        %512 = vmatprep.subr.bf16.mxu0 0
        %513 = vmatpush1.bf16.msra.mxu0 %v428
        %514 = vmatprep.subr.bf16.mxu0 0
        %515 = vmatpush1.bf16.msra.mxu0 %v431
        %516 = vmatprep.subr.bf16.mxu0 0
        %517 = vmatpush1.bf16.msra.mxu0 %v434
        %518 = vmatprep.subr.bf16.mxu0 0
        %519 = vmatpush1.bf16.msra.mxu0 %v437
        %520 = vmatprep.subr.bf16.mxu0 0
        %521 = vmatpush1.bf16.msra.mxu0 %v440
        %522 = vmatprep.subr.bf16.mxu0 0
        %523 = vmatpush1.bf16.msra.mxu0 0
        %524 = vmatprep.subr.bf16.mxu0 0
        %525 = vmatpush1.bf16.msra.mxu0 0
        %526 = vmatprep.subr.bf16.mxu0 0
        %527 = vmatpush1.bf16.msra.mxu0 0
        %528 = vmatprep.subr.bf16.mxu0 0
        %529 = vmatpush1.bf16.msra.mxu0 0
        %530 = vmatprep.subr.bf16.mxu0 0
        %531 = vmatpush1.bf16.msra.mxu0 0
        %532 = vmatprep.subr.bf16.mxu0 0
        %533 = vmatpush1.bf16.msra.mxu0 0
        %534 = vmatprep.subr.bf16.mxu0 0
        %535 = vmatpush1.bf16.msra.mxu0 0
        %536 = vmatprep.subr.bf16.mxu0 0
        %537 = vmatpush1.bf16.msra.mxu0 0
        %538 = vmatprep.mubr.bf16.mxu0 0
        %539 = vmatmul.mubr.bf16.gmra.mrb[0].mxu0 %v287
        %v540 = vpop.f32.mrb[0].mxu0
        %v541 = vadd.f32 %v333, %v540
        %v542 = vpop.f32.mrb[0].mxu0
        %v543 = vpop.f32.mrb[0].mxu0
        %v544 = vpop.f32.mrb[0].mxu0
        %545 = vdwg.mxu0
        %v546 = vpack.c.bf16 %v500, %v500
        %547 = vst [vmem:[%s270] sm:$0xf] %v546
        %v548 = vpack.c.bf16 %v502, %v502
        %549 = vst [vmem:[%s277] sm:$0xf] %v548
        %v550 = vpack.c.bf16 %v541, %v541
        %551 = vst [vmem:[%s284] sm:$0xf] %v550
        %s552 = sand.u32 %s103, 1
        %s553 = scalar_lea.sflag [#allocation4], %s552
        %s554 = sand.u32 %s103, 1
        %s555 = smul.addr %s554, 4
        %s556 = scalar_lea.vmem [#allocation8], %s555
        %s557 = sand.u32 %s27, 1
        %s558 = scalar_lea.sflag [#allocation10], %s557
        %s559 = sand.u32 %s129, 1
        %s560 = smul.addr %s559, 4
        %s561 = scalar_lea.vmem [#allocation9], %s560
        %s562 = sand.u32 %s27, 1
        %s563 = scalar_lea.sflag [#allocation10], %s562
        %s564 = sand.u32 %s155, 1
        %s565 = smul.addr %s564, 4
        %s566 = scalar_lea.vmem [#allocation11], %s565
        // Predicated region
        $region45: #{encoder_layer_forward.3} parent=31 // pred_check
          %p567 = pneg %p113
        $region46: #{encoder_layer_forward.3} parent=31 // pred_check_branch
          %569 = sbr.rel (%p567) target = $region48
        $region47: #{encoder_layer_forward.3} parent=31 // pred_region
          %s571 = ssub.s32 64, 64
          %572 = vsyncadd %s553, %s571
          %s573 = smul.addr %s27, 64
          %s574 = scalar_lea.hbm %s3, %s573
          %s576 = sshll.u32 %s556, 4
          %s577 = int_to_ptr.vmem [resolvable:$true] %s576
          %579 = dma.vmem_to_hbm [thread:$0]  %s577, 64, %s574, %s553
        $region48: #{encoder_layer_forward.3} parent=31 // pred_fallthru
          _
        // Predicated region
        $region49: #{encoder_layer_forward.3} parent=31 // pred_check
          %p580 = pneg %p139
        $region50: #{encoder_layer_forward.3} parent=31 // pred_check_branch
          %582 = sbr.rel (%p580) target = $region52
        $region51: #{encoder_layer_forward.3} parent=31 // pred_region
          %s584 = ssub.s32 64, 64
          %585 = vsyncadd %s558, %s584
          %s586 = smul.addr %s27, 64
          %s587 = scalar_lea.hbm %s4, %s586
          %s589 = sshll.u32 %s561, 4
          %s590 = int_to_ptr.vmem [resolvable:$true] %s589
          %592 = dma.vmem_to_hbm [thread:$0]  %s590, 64, %s587, %s558
        $region52: #{encoder_layer_forward.3} parent=31 // pred_fallthru
          _
        // Predicated region
        $region53: #{encoder_layer_forward.3} parent=31 // pred_check
          %p593 = pneg %p165
        $region54: #{encoder_layer_forward.3} parent=31 // pred_check_branch
          %595 = sbr.rel (%p593) target = $region56
        $region55: #{encoder_layer_forward.3} parent=31 // pred_region
          %s597 = ssub.s32 64, 64
          %598 = vsyncadd %s563, %s597
          %s599 = smul.addr %s27, 64
          %s600 = scalar_lea.hbm %s5, %s599
          %s602 = sshll.u32 %s566, 4
          %s603 = int_to_ptr.vmem [resolvable:$true] %s602
          %605 = dma.vmem_to_hbm [thread:$0]  %s603, 64, %s600, %s563
        $region56: #{encoder_layer_forward.3} parent=31 // pred_fallthru
          _
      $region32: #{encoder_layer_forward.3} parent=5 // pred_fallthru
        _
      %p606 = scmp.le.s32.totalorder 2, %s22
      // Predicated region
      $region57: #{encoder_layer_forward.3} parent=5 // pred_check
        %p607 = pneg %p606
      $region58: #{encoder_layer_forward.3} parent=5 // pred_check_branch
        %609 = sbr.rel (%p607) target = $region60
      $region59: #{encoder_layer_forward.3} parent=5 // pred_region
        %s610 = ssub.s32 %s22, 2
        // Predicated region
        $region61: #{encoder_layer_forward.3} parent=59 // pred_check
          %p611 = pneg %p119
        $region62: #{encoder_layer_forward.3} parent=59 // pred_check_branch
          %613 = sbr.rel (%p611) target = $region64
        $region63: #{encoder_layer_forward.3} parent=59 // pred_region
          %s614 = sand.u32 %s104, 1
          %s615 = scalar_lea.sflag [#allocation4], %s614
          %s616 = sand.u32 %s104, 1
          %s617 = smul.addr %s616, 4
          %s618 = scalar_lea.vmem [#allocation8], %s617
          %619 = dma.done %s615, 64
        $region64: #{encoder_layer_forward.3} parent=59 // pred_fallthru
          _
        // Predicated region
        $region65: #{encoder_layer_forward.3} parent=59 // pred_check
          %p620 = pneg %p145
        $region66: #{encoder_layer_forward.3} parent=59 // pred_check_branch
          %622 = sbr.rel (%p620) target = $region68
        $region67: #{encoder_layer_forward.3} parent=59 // pred_region
          %s623 = sand.u32 %s28, 1
          %s624 = scalar_lea.sflag [#allocation10], %s623
          %s625 = sand.u32 %s130, 1
          %s626 = smul.addr %s625, 4
          %s627 = scalar_lea.vmem [#allocation9], %s626
          %628 = dma.done %s624, 64
        $region68: #{encoder_layer_forward.3} parent=59 // pred_fallthru
          _
        // Predicated region
        $region69: #{encoder_layer_forward.3} parent=59 // pred_check
          %p629 = pneg %p171
        $region70: #{encoder_layer_forward.3} parent=59 // pred_check_branch
          %631 = sbr.rel (%p629) target = $region72
        $region71: #{encoder_layer_forward.3} parent=59 // pred_region
          %s632 = sand.u32 %s28, 1
          %s633 = scalar_lea.sflag [#allocation10], %s632
          %s634 = sand.u32 %s156, 1
          %s635 = smul.addr %s634, 4
          %s636 = scalar_lea.vmem [#allocation11], %s635
          %637 = dma.done %s633, 64
        $region72: #{encoder_layer_forward.3} parent=59 // pred_fallthru
          _
      $region60: #{encoder_layer_forward.3} parent=5 // pred_fallthru
        _
    $region6: #{encoder_layer_forward.3} parent=1 // loop_footer
      %s26 = sadd.s32 1, %s22
    $region7: #{encoder_layer_forward.3} parent=1 // loop_footer_branch
      %21 = sbr.rel target = $region3
    $region8: #{encoder_layer_forward.3} parent=1 // loop_exit
      _
    %638 = vsyncpa [#allocation3], 1
    %s639 = scalar_lea.sflag [#allocation3], 1
    %640 = vsyncpa %s639, 1
    %641 = vsyncpa [#allocation6], 1
    %642 = vsyncpa [#allocation4], 1
    %s643 = scalar_lea.sflag [#allocation4], 1
    %644 = vsyncpa %s643, 1
    %645 = vsyncpa [#allocation10], 1
    %s646 = scalar_lea.sflag [#allocation10], 1
    %647 = vsyncpa %s646, 1

// kernel: encoder_layer_forward.4
$region0: #{encoder_layer_forward.4}
  #allocation0 [shape = 'u32[]', space=smem, size = 0x4, offset = 0x4, fixed_abs, tag = 'smem constant byte address 0x4 - core index']
  #allocation1 [shape = 'u32[144,128]{1,0:T(1,128)}', space=vmem, size = 0x12000, scoped, tag = 'internal scratch']
  %s0 = inlined_call_operand.hbm [shape: bf16[2,4,8,32], index: 0, kind: input, shape index: {}]
  %s1 = inlined_call_operand.hbm [shape: bf16[2,4,8,32], index: 1, kind: input, shape index: {}]
  %s2 = inlined_call_operand.hbm [shape: bf16[2,4,8,32], index: 2, kind: input, shape index: {}]
  %s3 = inlined_call_operand.hbm [shape: bf16[2,4,8,32], index: 3, kind: output, shape index: {0}]
  %s4 = inlined_call_operand.hbm [shape: f32[2,4,8,8], index: 4, kind: output, shape index: {1}]
  %5 = xla_tuple %s3, %s4
  %s6 = sld [smem:[#allocation0]]
  $region65: #{encoder_layer_forward.4} parent=0
    _
  %s8 = ssub.s32 1, %s6
  %s9 = scalar_select 0, %s8, %s6
  $region1: #{encoder_layer_forward.4} parent=0
    #allocation2 [shape = 'u8[16384]{0}', space=vmem, size = 0x4000, scoped, tag = 'input window, operand 0']
    #allocation3 [shape = 's32[2]{0}', space=sflag, size = 0x8, scoped, tag = 'scoped memory for encoder_layer_forward.4']
    #allocation4 [shape = 's32[2]{0}', space=sflag, size = 0x8, scoped, tag = 'scoped memory for encoder_layer_forward.4']
    #allocation5 [shape = 'u8[16384]{0}', space=vmem, size = 0x4000, scoped, tag = 'input window, operand 1']
    #allocation6 [shape = 's32[2]{0}', space=sflag, size = 0x8, scoped, tag = 'scoped memory for encoder_layer_forward.4']
    #allocation7 [shape = 'u8[16384]{0}', space=vmem, size = 0x4000, scoped, tag = 'input window, operand 2']
    #allocation8 [shape = 'u8[16384]{0}', space=vmem, size = 0x4000, scoped, tag = 'output window, operand 0']
    #allocation9 [shape = 'u8[32768]{0}', space=vmem, size = 0x8000, scoped, tag = 'output window, operand 1']
    #allocation10 [shape = 's32[2]{0}', space=sflag, size = 0x8, scoped, tag = 'scoped memory for encoder_layer_forward.4']
    %10 = vsyncpa [#allocation3], 0
    %s11 = scalar_lea.sflag [#allocation3], 1
    %12 = vsyncpa %s11, 0
    %13 = vsyncpa [#allocation6], 0
    %s14 = scalar_lea.sflag [#allocation6], 1
    %15 = vsyncpa %s14, 0
    %16 = vsyncpa [#allocation4], 0
    %s17 = scalar_lea.sflag [#allocation4], 1
    %18 = vsyncpa %s17, 0
    %19 = vsyncpa [#allocation10], 0
    %s20 = scalar_lea.sflag [#allocation10], 1
    %21 = vsyncpa %s20, 0
    loop: start=0, step=1, limit=4
    $region2: #{encoder_layer_forward.4} parent=1 // loop_pre_header
      _
    $region3: #{encoder_layer_forward.4} parent=1 // loop_header
      %s23 = sphi 0, %s27
      %p24 = scmp.ge.s32.totalorder %s23, 4
      %s33 = sphi 0, %s35
      %s36 = sphi 0, %s33
      %s37 = sphi 0, %s36
      %s53 = sphi 0, %s37
      %s59 = sphi 0, %s61
      %s62 = sphi 0, %s59
      %s63 = sphi 0, %s62
      %s79 = sphi 0, %s63
      %s85 = sphi 0, %s87
      %s88 = sphi 0, %s85
      %s89 = sphi 0, %s88
      %s105 = sphi 0, %s89
      %s111 = sphi 0, %s113
      %s114 = sphi 0, %s111
      %s115 = sphi 0, %s114
      %s131 = sphi 0, %s115
      %s137 = sphi 0, %s139
      %s140 = sphi 0, %s137
      %s141 = sphi 0, %s140
      %s157 = sphi 0, %s141
    $region4: #{encoder_layer_forward.4} parent=1 // loop_header_branch
      %26 = sbr.rel (%p24) target = $region8
    $region5: #{encoder_layer_forward.4} parent=1 // loop_body
      %s28 = ssub.s32 %s23, 1
      %s29 = ssub.s32 %s23, 2
      %s30 = sadd.s32 %s23, 1
      %s31 = ssub.s32 %s23, %s30
      %p32 = scmp.eq.s32.totalorder %s31, 0
      %s34 = sadd.s32 %s33, 1
      %s35 = scalar_select %p32, %s33, %s34
      %p38 = pneg %p32
      %p39 = scmp.eq.s32.totalorder %s23, 1
      %p40 = por %p38, %p39
      %p41 = scmp.ne.s32.totalorder %s33, %s36
      %p42 = scmp.eq.s32.totalorder %s23, 0
      %p43 = por %p41, %p42
      %p44 = scmp.ne.s32.totalorder %s33, %s36
      %p45 = scmp.eq.s32.totalorder %s28, 1
      %p46 = por %p44, %p45
      %p47 = scmp.ne.s32.totalorder %s36, %s37
      %p48 = scmp.eq.s32.totalorder %s28, 0
      %p49 = por %p47, %p48
      %p50 = scmp.ne.s32.totalorder %s36, %s37
      %p51 = scmp.eq.s32.totalorder %s29, 1
      %p52 = por %p50, %p51
      %p54 = scmp.ne.s32.totalorder %s37, %s53
      %p55 = scmp.eq.s32.totalorder %s29, 0
      %p56 = por %p54, %p55
      %s57 = ssub.s32 %s23, %s30
      %p58 = scmp.eq.s32.totalorder %s57, 0
      %s60 = sadd.s32 %s59, 1
      %s61 = scalar_select %p58, %s59, %s60
      %p64 = pneg %p58
      %p65 = scmp.eq.s32.totalorder %s23, 1
      %p66 = por %p64, %p65
      %p67 = scmp.ne.s32.totalorder %s59, %s62
      %p68 = scmp.eq.s32.totalorder %s23, 0
      %p69 = por %p67, %p68
      %p70 = scmp.ne.s32.totalorder %s59, %s62
      %p71 = scmp.eq.s32.totalorder %s28, 1
      %p72 = por %p70, %p71
      %p73 = scmp.ne.s32.totalorder %s62, %s63
      %p74 = scmp.eq.s32.totalorder %s28, 0
      %p75 = por %p73, %p74
      %p76 = scmp.ne.s32.totalorder %s62, %s63
      %p77 = scmp.eq.s32.totalorder %s29, 1
      %p78 = por %p76, %p77
      %p80 = scmp.ne.s32.totalorder %s63, %s79
      %p81 = scmp.eq.s32.totalorder %s29, 0
      %p82 = por %p80, %p81
      %s83 = ssub.s32 %s23, %s30
      %p84 = scmp.eq.s32.totalorder %s83, 0
      %s86 = sadd.s32 %s85, 1
      %s87 = scalar_select %p84, %s85, %s86
      %p90 = pneg %p84
      %p91 = scmp.eq.s32.totalorder %s23, 1
      %p92 = por %p90, %p91
      %p93 = scmp.ne.s32.totalorder %s85, %s88
      %p94 = scmp.eq.s32.totalorder %s23, 0
      %p95 = por %p93, %p94
      %p96 = scmp.ne.s32.totalorder %s85, %s88
      %p97 = scmp.eq.s32.totalorder %s28, 1
      %p98 = por %p96, %p97
      %p99 = scmp.ne.s32.totalorder %s88, %s89
      %p100 = scmp.eq.s32.totalorder %s28, 0
      %p101 = por %p99, %p100
      %p102 = scmp.ne.s32.totalorder %s88, %s89
      %p103 = scmp.eq.s32.totalorder %s29, 1
      %p104 = por %p102, %p103
      %p106 = scmp.ne.s32.totalorder %s89, %s105
      %p107 = scmp.eq.s32.totalorder %s29, 0
      %p108 = por %p106, %p107
      %s109 = ssub.s32 %s23, %s30
      %p110 = scmp.eq.s32.totalorder %s109, 0
      %s112 = sadd.s32 %s111, 1
      %s113 = scalar_select %p110, %s111, %s112
      %p116 = pneg %p110
      %p117 = scmp.eq.s32.totalorder %s23, 1
      %p118 = por %p116, %p117
      %p119 = scmp.ne.s32.totalorder %s111, %s114
      %p120 = scmp.eq.s32.totalorder %s23, 0
      %p121 = por %p119, %p120
      %p122 = scmp.ne.s32.totalorder %s111, %s114
      %p123 = scmp.eq.s32.totalorder %s28, 1
      %p124 = por %p122, %p123
      %p125 = scmp.ne.s32.totalorder %s114, %s115
      %p126 = scmp.eq.s32.totalorder %s28, 0
      %p127 = por %p125, %p126
      %p128 = scmp.ne.s32.totalorder %s114, %s115
      %p129 = scmp.eq.s32.totalorder %s29, 1
      %p130 = por %p128, %p129
      %p132 = scmp.ne.s32.totalorder %s115, %s131
      %p133 = scmp.eq.s32.totalorder %s29, 0
      %p134 = por %p132, %p133
      %s135 = ssub.s32 %s23, %s30
      %p136 = scmp.eq.s32.totalorder %s135, 0
      %s138 = sadd.s32 %s137, 1
      %s139 = scalar_select %p136, %s137, %s138
      %p142 = pneg %p136
      %p143 = scmp.eq.s32.totalorder %s23, 1
      %p144 = por %p142, %p143
      %p145 = scmp.ne.s32.totalorder %s137, %s140
      %p146 = scmp.eq.s32.totalorder %s23, 0
      %p147 = por %p145, %p146
      %p148 = scmp.ne.s32.totalorder %s137, %s140
      %p149 = scmp.eq.s32.totalorder %s28, 1
      %p150 = por %p148, %p149
      %p151 = scmp.ne.s32.totalorder %s140, %s141
      %p152 = scmp.eq.s32.totalorder %s28, 0
      %p153 = por %p151, %p152
      %p154 = scmp.ne.s32.totalorder %s140, %s141
      %p155 = scmp.eq.s32.totalorder %s29, 1
      %p156 = por %p154, %p155
      %p158 = scmp.ne.s32.totalorder %s141, %s157
      %p159 = scmp.eq.s32.totalorder %s29, 0
      %p160 = por %p158, %p159
      %p161 = scmp.le.s32.totalorder 1, %s23
      %p162 = scmp.lt.s32.totalorder %s23, 3
      %p163 = pnand %p161, %p162
      %p164 = pneg %p163
      // Predicated region
      $region9: #{encoder_layer_forward.4} parent=5 // pred_check
        _
      $region10: #{encoder_layer_forward.4} parent=5 // pred_check_branch
        %166 = sbr.rel (%p163) target = $region12
      $region11: #{encoder_layer_forward.4} parent=5 // pred_region
        %s167 = ssub.s32 %s23, 1
      $region12: #{encoder_layer_forward.4} parent=5 // pred_fallthru
        _
      %p168 = scmp.lt.s32.totalorder %s23, 2
      // Predicated region
      $region13: #{encoder_layer_forward.4} parent=5 // pred_check
        %p169 = pneg %p168
      $region14: #{encoder_layer_forward.4} parent=5 // pred_check_branch
        %171 = sbr.rel (%p169) target = $region16
      $region15: #{encoder_layer_forward.4} parent=5 // pred_region
        // Predicated region
        $region17: #{encoder_layer_forward.4} parent=15 // pred_check
          %p172 = pneg %p43
        $region18: #{encoder_layer_forward.4} parent=15 // pred_check_branch
          %174 = sbr.rel (%p172) target = $region20
        $region19: #{encoder_layer_forward.4} parent=15 // pred_region
          %s175 = sand.u32 %s33, 1
          %s176 = scalar_lea.sflag [#allocation3], %s175
          %s177 = sand.u32 %s33, 1
          %s178 = smul.addr %s177, 16
          %s179 = scalar_lea.vmem [#allocation2], %s178
          %s181 = ssub.s32 256, 256
          %182 = vsyncadd %s176, %s181
          %s183 = smul.addr %s23, 4
          %s184 = smul.addr %s183, 64
          %s185 = scalar_lea.hbm %s0, %s184
          %s186 = sshll.u32 %s179, 4
          %s187 = int_to_ptr.vmem [resolvable:$true] %s186
          %192 = dma.hbm_to_vmem [thread:$0]  %s185, 256, %s187, %s176, 64, 64, 4
        $region20: #{encoder_layer_forward.4} parent=15 // pred_fallthru
          _
        // Predicated region
        $region21: #{encoder_layer_forward.4} parent=15 // pred_check
          %p193 = pneg %p69
        $region22: #{encoder_layer_forward.4} parent=15 // pred_check_branch
          %195 = sbr.rel (%p193) target = $region24
        $region23: #{encoder_layer_forward.4} parent=15 // pred_region
          %s196 = sand.u32 %s23, 1
          %s197 = scalar_lea.sflag [#allocation6], %s196
          %s198 = sand.u32 %s59, 1
          %s199 = smul.addr %s198, 16
          %s200 = scalar_lea.vmem [#allocation5], %s199
          %s202 = ssub.s32 256, 256
          %203 = vsyncadd %s197, %s202
          %s204 = smul.addr %s23, 4
          %s205 = smul.addr %s204, 64
          %s206 = scalar_lea.hbm %s1, %s205
          %s207 = sshll.u32 %s200, 4
          %s208 = int_to_ptr.vmem [resolvable:$true] %s207
          %213 = dma.hbm_to_vmem [thread:$0]  %s206, 256, %s208, %s197, 64, 64, 4
        $region24: #{encoder_layer_forward.4} parent=15 // pred_fallthru
          _
        // Predicated region
        $region25: #{encoder_layer_forward.4} parent=15 // pred_check
          %p214 = pneg %p95
        $region26: #{encoder_layer_forward.4} parent=15 // pred_check_branch
          %216 = sbr.rel (%p214) target = $region28
        $region27: #{encoder_layer_forward.4} parent=15 // pred_region
          %s217 = sand.u32 %s23, 1
          %s218 = scalar_lea.sflag [#allocation6], %s217
          %s219 = sand.u32 %s85, 1
          %s220 = smul.addr %s219, 16
          %s221 = scalar_lea.vmem [#allocation7], %s220
          %s223 = ssub.s32 256, 256
          %224 = vsyncadd %s218, %s223
          %s225 = smul.addr %s23, 4
          %s226 = smul.addr %s225, 64
          %s227 = scalar_lea.hbm %s2, %s226
          %s228 = sshll.u32 %s221, 4
          %s229 = int_to_ptr.vmem [resolvable:$true] %s228
          %234 = dma.hbm_to_vmem [thread:$0]  %s227, 256, %s229, %s218, 64, 64, 4
        $region28: #{encoder_layer_forward.4} parent=15 // pred_fallthru
          _
      $region16: #{encoder_layer_forward.4} parent=5 // pred_fallthru
        _
      %p235 = scmp.le.s32.totalorder 1, %s23
      %p236 = scmp.lt.s32.totalorder %s23, 3
      %p237 = pnand %p235, %p236
      %p238 = pneg %p237
      // Predicated region
      $region29: #{encoder_layer_forward.4} parent=5 // pred_check
        _
      $region30: #{encoder_layer_forward.4} parent=5 // pred_check_branch
        %240 = sbr.rel (%p237) target = $region32
      $region31: #{encoder_layer_forward.4} parent=5 // pred_region
        %s241 = ssub.s32 %s23, 1
        %s242 = sand.u32 %s36, 1
        %s243 = scalar_lea.sflag [#allocation3], %s242
        %s244 = sand.u32 %s36, 1
        %s245 = smul.addr %s244, 16
        %s246 = scalar_lea.vmem [#allocation2], %s245
        // Predicated region
        $region33: #{encoder_layer_forward.4} parent=31 // pred_check
          %p247 = pneg %p49
        $region34: #{encoder_layer_forward.4} parent=31 // pred_check_branch
          %249 = sbr.rel (%p247) target = $region36
        $region35: #{encoder_layer_forward.4} parent=31 // pred_region
          %250 = dma.done %s243, 256
        $region36: #{encoder_layer_forward.4} parent=31 // pred_fallthru
          _
        %s251 = sand.u32 %s28, 1
        %s252 = scalar_lea.sflag [#allocation6], %s251
        %s253 = sand.u32 %s62, 1
        %s254 = smul.addr %s253, 16
        %s255 = scalar_lea.vmem [#allocation5], %s254
        // Predicated region
        $region37: #{encoder_layer_forward.4} parent=31 // pred_check
          %p256 = pneg %p75
        $region38: #{encoder_layer_forward.4} parent=31 // pred_check_branch
          %258 = sbr.rel (%p256) target = $region40
        $region39: #{encoder_layer_forward.4} parent=31 // pred_region
          %259 = dma.done %s252, 256
        $region40: #{encoder_layer_forward.4} parent=31 // pred_fallthru
          _
        %s260 = sand.u32 %s28, 1
        %s261 = scalar_lea.sflag [#allocation6], %s260
        %s262 = sand.u32 %s88, 1
        %s263 = smul.addr %s262, 16
        %s264 = scalar_lea.vmem [#allocation7], %s263
        // Predicated region
        $region41: #{encoder_layer_forward.4} parent=31 // pred_check
          %p265 = pneg %p101
        $region42: #{encoder_layer_forward.4} parent=31 // pred_check_branch
          %267 = sbr.rel (%p265) target = $region44
        $region43: #{encoder_layer_forward.4} parent=31 // pred_region
          %268 = dma.done %s261, 256
        $region44: #{encoder_layer_forward.4} parent=31 // pred_fallthru
          _
        %s269 = sand.u32 %s36, 1
        %s270 = scalar_lea.sflag [#allocation3], %s269
        %s271 = sand.u32 %s36, 1
        %s272 = smul.addr %s271, 16
        %s273 = scalar_lea.vmem [#allocation2], %s272
        %p274 = pneg %p49
        %p275 = pneg %p46
        %s276 = sand.u32 %s28, 1
        %s277 = scalar_lea.sflag [#allocation6], %s276
        %s278 = sand.u32 %s62, 1
        %s279 = smul.addr %s278, 16
        %s280 = scalar_lea.vmem [#allocation5], %s279
        %p281 = pneg %p75
        %p282 = pneg %p72
        %s283 = sand.u32 %s28, 1
        %s284 = scalar_lea.sflag [#allocation6], %s283
        %s285 = sand.u32 %s88, 1
        %s286 = smul.addr %s285, 16
        %s287 = scalar_lea.vmem [#allocation7], %s286
        %p288 = pneg %p101
        %p289 = pneg %p98
        %p290 = pneg %p127
        %p291 = pneg %p124
        %s292 = sand.u32 %s114, 1
        %s293 = scalar_lea.sflag [#allocation4], %s292
        %s294 = sand.u32 %s114, 1
        %s295 = smul.addr %s294, 16
        %s296 = scalar_lea.vmem [#allocation8], %s295
        %p297 = pneg %p153
        %p298 = pneg %p150
        %s299 = sand.u32 %s140, 1
        %s300 = scalar_lea.sflag [#allocation10], %s299
        %s301 = sand.u32 %s140, 1
        %s302 = smul.addr %s301, 32
        %s303 = scalar_lea.vmem [#allocation9], %s302
        %v305 = vld [vmem:[%s246] sm:$0xf]
        %v306 = vld [vmem:[%s246 + $0x4] sm:$0xf]
        %v307 = vld [vmem:[%s246 + $0x8] sm:$0xf]
        %v308 = vld [vmem:[%s246 + $0xc] sm:$0xf]
        %v309 = vld [vmem:[%s255] sm:$0xf]
        %v310 = vld [vmem:[%s255 + $0x4] sm:$0xf]
        %v311 = vld [vmem:[%s255 + $0x8] sm:$0xf]
        %v312 = vld [vmem:[%s255 + $0xc] sm:$0xf]
        %v313 = vld [vmem:[%s264] sm:$0xf]
        %v314 = vld [vmem:[%s264 + $0x4] sm:$0xf]
        %v315 = vld [vmem:[%s264 + $0x8] sm:$0xf]
        %v316 = vld [vmem:[%s264 + $0xc] sm:$0xf]
        %vm317 = vcmask 261120
        %v319 = vsel %vm317, %v305, 0
        %v322 = vsel %vm317, %v309, 0
        %324 = vmatprep.subr.bf16.mxu0 0
        %325 = vmatpush1.bf16.xpose.msra.mxu0 %v322
        %326 = vmatprep.subr.bf16.mxu0 0
        %327 = vmatpush1.bf16.xpose.msra.mxu0 0
        %328 = vmatprep.subr.bf16.mxu0 0
        %329 = vmatpush1.bf16.xpose.msra.mxu0 0
        %330 = vmatprep.subr.bf16.mxu0 0
        %331 = vmatpush1.bf16.xpose.msra.mxu0 0
        %332 = vmatprep.subr.bf16.mxu0 0
        %333 = vmatpush1.bf16.xpose.msra.mxu0 0
        %334 = vmatprep.subr.bf16.mxu0 0
        %335 = vmatpush1.bf16.xpose.msra.mxu0 0
        %336 = vmatprep.subr.bf16.mxu0 0
        %337 = vmatpush1.bf16.xpose.msra.mxu0 0
        %338 = vmatprep.subr.bf16.mxu0 0
        %339 = vmatpush1.bf16.xpose.msra.mxu0 0
        %340 = vmatprep.subr.bf16.mxu0 0
        %341 = vmatpush1.bf16.xpose.msra.mxu0 0
        %342 = vmatprep.subr.bf16.mxu0 0
        %343 = vmatpush1.bf16.xpose.msra.mxu0 0
        %344 = vmatprep.subr.bf16.mxu0 0
        %345 = vmatpush1.bf16.xpose.msra.mxu0 0
        %346 = vmatprep.subr.bf16.mxu0 0
        %347 = vmatpush1.bf16.xpose.msra.mxu0 0
        %348 = vmatprep.subr.bf16.mxu0 0
        %349 = vmatpush1.bf16.xpose.msra.mxu0 0
        %350 = vmatprep.subr.bf16.mxu0 0
        %351 = vmatpush1.bf16.xpose.msra.mxu0 0
        %352 = vmatprep.subr.bf16.mxu0 0
        %353 = vmatpush1.bf16.xpose.msra.mxu0 0
        %354 = vmatprep.subr.bf16.mxu0 0
        %355 = vmatpush1.bf16.xpose.msra.mxu0 0
        %356 = vmatprep.mubr.bf16.mxu0 0
        %357 = vmatmul.mubr.bf16.gmra.mrb[0].mxu0 %v319
        %v358 = vpop.f32.mrb[0].mxu0
        %v359 = vadd.f32 0.0, %v358
        %v360 = vpop.f32.mrb[0].mxu0
        %v361 = vpop.f32.mrb[0].mxu0
        %v362 = vpop.f32.mrb[0].mxu0
        %363 = vdwg.mxu0
        %v365 = vsel %vm317, %v306, 0
        %v368 = vsel %vm317, %v310, 0
        %370 = vmatprep.subr.bf16.mxu0 0
        %371 = vmatpush1.bf16.xpose.msra.mxu0 %v368
        %372 = vmatprep.subr.bf16.mxu0 0
        %373 = vmatpush1.bf16.xpose.msra.mxu0 0
        %374 = vmatprep.subr.bf16.mxu0 0
        %375 = vmatpush1.bf16.xpose.msra.mxu0 0
        %376 = vmatprep.subr.bf16.mxu0 0
        %377 = vmatpush1.bf16.xpose.msra.mxu0 0
        %378 = vmatprep.subr.bf16.mxu0 0
        %379 = vmatpush1.bf16.xpose.msra.mxu0 0
        %380 = vmatprep.subr.bf16.mxu0 0
        %381 = vmatpush1.bf16.xpose.msra.mxu0 0
        %382 = vmatprep.subr.bf16.mxu0 0
        %383 = vmatpush1.bf16.xpose.msra.mxu0 0
        %384 = vmatprep.subr.bf16.mxu0 0
        %385 = vmatpush1.bf16.xpose.msra.mxu0 0
        %386 = vmatprep.subr.bf16.mxu0 0
        %387 = vmatpush1.bf16.xpose.msra.mxu0 0
        %388 = vmatprep.subr.bf16.mxu0 0
        %389 = vmatpush1.bf16.xpose.msra.mxu0 0
        %390 = vmatprep.subr.bf16.mxu0 0
        %391 = vmatpush1.bf16.xpose.msra.mxu0 0
        %392 = vmatprep.subr.bf16.mxu0 0
        %393 = vmatpush1.bf16.xpose.msra.mxu0 0
        %394 = vmatprep.subr.bf16.mxu0 0
        %395 = vmatpush1.bf16.xpose.msra.mxu0 0
        %396 = vmatprep.subr.bf16.mxu0 0
        %397 = vmatpush1.bf16.xpose.msra.mxu0 0
        %398 = vmatprep.subr.bf16.mxu0 0
        %399 = vmatpush1.bf16.xpose.msra.mxu0 0
        %400 = vmatprep.subr.bf16.mxu0 0
        %401 = vmatpush1.bf16.xpose.msra.mxu0 0
        %402 = vmatprep.mubr.bf16.mxu0 0
        %403 = vmatmul.mubr.bf16.gmra.mrb[0].mxu0 %v365
        %v404 = vpop.f32.mrb[0].mxu0
        %v405 = vadd.f32 0.0, %v404
        %v406 = vpop.f32.mrb[0].mxu0
        %v407 = vpop.f32.mrb[0].mxu0
        %v408 = vpop.f32.mrb[0].mxu0
        %409 = vdwg.mxu0
        %v411 = vsel %vm317, %v307, 0
        %v414 = vsel %vm317, %v311, 0
        %416 = vmatprep.subr.bf16.mxu0 0
        %417 = vmatpush1.bf16.xpose.msra.mxu0 %v414
        %418 = vmatprep.subr.bf16.mxu0 0
        %419 = vmatpush1.bf16.xpose.msra.mxu0 0
        %420 = vmatprep.subr.bf16.mxu0 0
        %421 = vmatpush1.bf16.xpose.msra.mxu0 0
        %422 = vmatprep.subr.bf16.mxu0 0
        %423 = vmatpush1.bf16.xpose.msra.mxu0 0
        %424 = vmatprep.subr.bf16.mxu0 0
        %425 = vmatpush1.bf16.xpose.msra.mxu0 0
        %426 = vmatprep.subr.bf16.mxu0 0
        %427 = vmatpush1.bf16.xpose.msra.mxu0 0
        %428 = vmatprep.subr.bf16.mxu0 0
        %429 = vmatpush1.bf16.xpose.msra.mxu0 0
        %430 = vmatprep.subr.bf16.mxu0 0
        %431 = vmatpush1.bf16.xpose.msra.mxu0 0
        %432 = vmatprep.subr.bf16.mxu0 0
        %433 = vmatpush1.bf16.xpose.msra.mxu0 0
        %434 = vmatprep.subr.bf16.mxu0 0
        %435 = vmatpush1.bf16.xpose.msra.mxu0 0
        %436 = vmatprep.subr.bf16.mxu0 0
        %437 = vmatpush1.bf16.xpose.msra.mxu0 0
        %438 = vmatprep.subr.bf16.mxu0 0
        %439 = vmatpush1.bf16.xpose.msra.mxu0 0
        %440 = vmatprep.subr.bf16.mxu0 0
        %441 = vmatpush1.bf16.xpose.msra.mxu0 0
        %442 = vmatprep.subr.bf16.mxu0 0
        %443 = vmatpush1.bf16.xpose.msra.mxu0 0
        %444 = vmatprep.subr.bf16.mxu0 0
        %445 = vmatpush1.bf16.xpose.msra.mxu0 0
        %446 = vmatprep.subr.bf16.mxu0 0
        %447 = vmatpush1.bf16.xpose.msra.mxu0 0
        %448 = vmatprep.mubr.bf16.mxu0 0
        %449 = vmatmul.mubr.bf16.gmra.mrb[0].mxu0 %v411
        %v450 = vpop.f32.mrb[0].mxu0
        %v451 = vadd.f32 0.0, %v450
        %v452 = vpop.f32.mrb[0].mxu0
        %v453 = vpop.f32.mrb[0].mxu0
        %v454 = vpop.f32.mrb[0].mxu0
        %455 = vdwg.mxu0
        %v457 = vsel %vm317, %v308, 0
        %v460 = vsel %vm317, %v312, 0
        %462 = vmatprep.subr.bf16.mxu0 0
        %463 = vmatpush1.bf16.xpose.msra.mxu0 %v460
        %464 = vmatprep.subr.bf16.mxu0 0
        %465 = vmatpush1.bf16.xpose.msra.mxu0 0
        %466 = vmatprep.subr.bf16.mxu0 0
        %467 = vmatpush1.bf16.xpose.msra.mxu0 0
        %468 = vmatprep.subr.bf16.mxu0 0
        %469 = vmatpush1.bf16.xpose.msra.mxu0 0
        %470 = vmatprep.subr.bf16.mxu0 0
        %471 = vmatpush1.bf16.xpose.msra.mxu0 0
        %472 = vmatprep.subr.bf16.mxu0 0
        %473 = vmatpush1.bf16.xpose.msra.mxu0 0
        %474 = vmatprep.subr.bf16.mxu0 0
        %475 = vmatpush1.bf16.xpose.msra.mxu0 0
        %476 = vmatprep.subr.bf16.mxu0 0
        %477 = vmatpush1.bf16.xpose.msra.mxu0 0
        %478 = vmatprep.subr.bf16.mxu0 0
        %479 = vmatpush1.bf16.xpose.msra.mxu0 0
        %480 = vmatprep.subr.bf16.mxu0 0
        %481 = vmatpush1.bf16.xpose.msra.mxu0 0
        %482 = vmatprep.subr.bf16.mxu0 0
        %483 = vmatpush1.bf16.xpose.msra.mxu0 0
        %484 = vmatprep.subr.bf16.mxu0 0
        %485 = vmatpush1.bf16.xpose.msra.mxu0 0
        %486 = vmatprep.subr.bf16.mxu0 0
        %487 = vmatpush1.bf16.xpose.msra.mxu0 0
        %488 = vmatprep.subr.bf16.mxu0 0
        %489 = vmatpush1.bf16.xpose.msra.mxu0 0
        %490 = vmatprep.subr.bf16.mxu0 0
        %491 = vmatpush1.bf16.xpose.msra.mxu0 0
        %492 = vmatprep.subr.bf16.mxu0 0
        %493 = vmatpush1.bf16.xpose.msra.mxu0 0
        %494 = vmatprep.mubr.bf16.mxu0 0
        %495 = vmatmul.mubr.bf16.gmra.mrb[0].mxu0 %v457
        %v496 = vpop.f32.mrb[0].mxu0
        %v497 = vadd.f32 0.0, %v496
        %v498 = vpop.f32.mrb[0].mxu0
        %v499 = vpop.f32.mrb[0].mxu0
        %v500 = vpop.f32.mrb[0].mxu0
        %501 = vdwg.mxu0
        %v502 = vmul.f32 %v359, 0.17677669
        %v503 = vmul.f32 %v405, 0.17677669
        %v504 = vmul.f32 %v451, 0.17677669
        %v505 = vmul.f32 %v497, 0.17677669
        %vm506 = vcmask 64512
        %v507 = vsel %vm506, %v502, -inf
        %508 = vmax.xlane.f32.xlu0 %v507
        %v509 = vpop.xlane.xlu0 %508
        %v510 = vsel %vm506, %v503, -inf
        %511 = vmax.xlane.f32.xlu0 %v510
        %v512 = vpop.xlane.xlu0 %511
        %v513 = vsel %vm506, %v504, -inf
        %514 = vmax.xlane.f32.xlu0 %v513
        %v515 = vpop.xlane.xlu0 %514
        %v516 = vsel %vm506, %v505, -inf
        %517 = vmax.xlane.f32.xlu0 %v516
        %v518 = vpop.xlane.xlu0 %517
        %v519 = vsub.f32 %v502, %v509
        %v520 = vsub.f32 %v503, %v512
        %v521 = vsub.f32 %v504, %v515
        %v522 = vsub.f32 %v505, %v518
        %v523 = vmul.f32 %v519, 1.442695
        %v524 = vpow.pop %v523
        %v525 = vmul.f32 %v520, 1.442695
        %v526 = vpow.pop %v525
        %v527 = vmul.f32 %v521, 1.442695
        %v528 = vpow.pop %v527
        %v529 = vmul.f32 %v522, 1.442695
        %v530 = vpow.pop %v529
        %v531 = vsel %vm506, %v524, 0.0
        %532 = vadd.xlane.f32.xlu0 %v531
        %v533 = vpop.xlane.xlu0 %532
        %v534 = vsel %vm506, %v526, 0.0
        %535 = vadd.xlane.f32.xlu0 %v534
        %v536 = vpop.xlane.xlu0 %535
        %v537 = vsel %vm506, %v528, 0.0
        %538 = vadd.xlane.f32.xlu0 %v537
        %v539 = vpop.xlane.xlu0 %538
        %v540 = vsel %vm506, %v530, 0.0
        %541 = vadd.xlane.f32.xlu0 %v540
        %v542 = vpop.xlane.xlu0 %541
        %v543 = vrcp.pop %v533
        %v544 = vrcp.pop %v536
        %v545 = vrcp.pop %v539
        %v546 = vrcp.pop %v542
        %v547 = vmul.f32 %v524, %v543
        %v548 = vmul.f32 %v526, %v544
        %v549 = vmul.f32 %v528, %v545
        %v550 = vmul.f32 %v530, %v546
        %551 = vst.msk [vmem:[%s303] sm:$0xff] %vm506, %v547
        %552 = vst.msk [vmem:[%s303 + $0x8] sm:$0xff] %vm506, %v548
        %553 = vst.msk [vmem:[%s303 + $0x10] sm:$0xff] %vm506, %v549
        %554 = vst.msk [vmem:[%s303 + $0x18] sm:$0xff] %vm506, %v550
        %v555 = vpack.c.bf16 %v547, %v547
        %v556 = vpack.c.bf16 %v548, %v548
        %v557 = vpack.c.bf16 %v549, %v549
        %v558 = vpack.c.bf16 %v550, %v550
        %v560 = vsel %vm506, %v555, 0
        %vm562 = vcmask 1043456
        %v564 = vsel %vm562, %v313, 0
        %566 = vmatprep.subr.bf16.mxu0 0
        %567 = vmatpush1.bf16.msra.mxu0 %v564
        %568 = vmatprep.subr.bf16.mxu0 0
        %569 = vmatpush1.bf16.msra.mxu0 0
        %570 = vmatprep.subr.bf16.mxu0 0
        %571 = vmatpush1.bf16.msra.mxu0 0
        %572 = vmatprep.subr.bf16.mxu0 0
        %573 = vmatpush1.bf16.msra.mxu0 0
        %574 = vmatprep.subr.bf16.mxu0 0
        %575 = vmatpush1.bf16.msra.mxu0 0
        %576 = vmatprep.subr.bf16.mxu0 0
        %577 = vmatpush1.bf16.msra.mxu0 0
        %578 = vmatprep.subr.bf16.mxu0 0
        %579 = vmatpush1.bf16.msra.mxu0 0
        %580 = vmatprep.subr.bf16.mxu0 0
        %581 = vmatpush1.bf16.msra.mxu0 0
        %582 = vmatprep.subr.bf16.mxu0 0
        %583 = vmatpush1.bf16.msra.mxu0 0
        %584 = vmatprep.subr.bf16.mxu0 0
        %585 = vmatpush1.bf16.msra.mxu0 0
        %586 = vmatprep.subr.bf16.mxu0 0
        %587 = vmatpush1.bf16.msra.mxu0 0
        %588 = vmatprep.subr.bf16.mxu0 0
        %589 = vmatpush1.bf16.msra.mxu0 0
        %590 = vmatprep.subr.bf16.mxu0 0
        %591 = vmatpush1.bf16.msra.mxu0 0
        %592 = vmatprep.subr.bf16.mxu0 0
        %593 = vmatpush1.bf16.msra.mxu0 0
        %594 = vmatprep.subr.bf16.mxu0 0
        %595 = vmatpush1.bf16.msra.mxu0 0
        %596 = vmatprep.subr.bf16.mxu0 0
        %597 = vmatpush1.bf16.msra.mxu0 0
        %598 = vmatprep.mubr.bf16.mxu0 0
        %599 = vmatmul.mubr.bf16.gmra.mrb[0].mxu0 %v560
        %v600 = vpop.f32.mrb[0].mxu0
        %v601 = vadd.f32 0.0, %v600
        %v602 = vpop.f32.mrb[0].mxu0
        %v603 = vpop.f32.mrb[0].mxu0
        %v604 = vpop.f32.mrb[0].mxu0
        %605 = vdwg.mxu0
        %v607 = vsel %vm506, %v556, 0
        %v610 = vsel %vm562, %v314, 0
        %612 = vmatprep.subr.bf16.mxu0 0
        %613 = vmatpush1.bf16.msra.mxu0 %v610
        %614 = vmatprep.subr.bf16.mxu0 0
        %615 = vmatpush1.bf16.msra.mxu0 0
        %616 = vmatprep.subr.bf16.mxu0 0
        %617 = vmatpush1.bf16.msra.mxu0 0
        %618 = vmatprep.subr.bf16.mxu0 0
        %619 = vmatpush1.bf16.msra.mxu0 0
        %620 = vmatprep.subr.bf16.mxu0 0
        %621 = vmatpush1.bf16.msra.mxu0 0
        %622 = vmatprep.subr.bf16.mxu0 0
        %623 = vmatpush1.bf16.msra.mxu0 0
        %624 = vmatprep.subr.bf16.mxu0 0
        %625 = vmatpush1.bf16.msra.mxu0 0
        %626 = vmatprep.subr.bf16.mxu0 0
        %627 = vmatpush1.bf16.msra.mxu0 0
        %628 = vmatprep.subr.bf16.mxu0 0
        %629 = vmatpush1.bf16.msra.mxu0 0
        %630 = vmatprep.subr.bf16.mxu0 0
        %631 = vmatpush1.bf16.msra.mxu0 0
        %632 = vmatprep.subr.bf16.mxu0 0
        %633 = vmatpush1.bf16.msra.mxu0 0
        %634 = vmatprep.subr.bf16.mxu0 0
        %635 = vmatpush1.bf16.msra.mxu0 0
        %636 = vmatprep.subr.bf16.mxu0 0
        %637 = vmatpush1.bf16.msra.mxu0 0
        %638 = vmatprep.subr.bf16.mxu0 0
        %639 = vmatpush1.bf16.msra.mxu0 0
        %640 = vmatprep.subr.bf16.mxu0 0
        %641 = vmatpush1.bf16.msra.mxu0 0
        %642 = vmatprep.subr.bf16.mxu0 0
        %643 = vmatpush1.bf16.msra.mxu0 0
        %644 = vmatprep.mubr.bf16.mxu0 0
        %645 = vmatmul.mubr.bf16.gmra.mrb[0].mxu0 %v607
        %v646 = vpop.f32.mrb[0].mxu0
        %v647 = vadd.f32 0.0, %v646
        %v648 = vpop.f32.mrb[0].mxu0
        %v649 = vpop.f32.mrb[0].mxu0
        %v650 = vpop.f32.mrb[0].mxu0
        %651 = vdwg.mxu0
        %v653 = vsel %vm506, %v557, 0
        %v656 = vsel %vm562, %v315, 0
        %658 = vmatprep.subr.bf16.mxu0 0
        %659 = vmatpush1.bf16.msra.mxu0 %v656
        %660 = vmatprep.subr.bf16.mxu0 0
        %661 = vmatpush1.bf16.msra.mxu0 0
        %662 = vmatprep.subr.bf16.mxu0 0
        %663 = vmatpush1.bf16.msra.mxu0 0
        %664 = vmatprep.subr.bf16.mxu0 0
        %665 = vmatpush1.bf16.msra.mxu0 0
        %666 = vmatprep.subr.bf16.mxu0 0
        %667 = vmatpush1.bf16.msra.mxu0 0
        %668 = vmatprep.subr.bf16.mxu0 0
        %669 = vmatpush1.bf16.msra.mxu0 0
        %670 = vmatprep.subr.bf16.mxu0 0
        %671 = vmatpush1.bf16.msra.mxu0 0
        %672 = vmatprep.subr.bf16.mxu0 0
        %673 = vmatpush1.bf16.msra.mxu0 0
        %674 = vmatprep.subr.bf16.mxu0 0
        %675 = vmatpush1.bf16.msra.mxu0 0
        %676 = vmatprep.subr.bf16.mxu0 0
        %677 = vmatpush1.bf16.msra.mxu0 0
        %678 = vmatprep.subr.bf16.mxu0 0
        %679 = vmatpush1.bf16.msra.mxu0 0
        %680 = vmatprep.subr.bf16.mxu0 0
        %681 = vmatpush1.bf16.msra.mxu0 0
        %682 = vmatprep.subr.bf16.mxu0 0
        %683 = vmatpush1.bf16.msra.mxu0 0
        %684 = vmatprep.subr.bf16.mxu0 0
        %685 = vmatpush1.bf16.msra.mxu0 0
        %686 = vmatprep.subr.bf16.mxu0 0
        %687 = vmatpush1.bf16.msra.mxu0 0
        %688 = vmatprep.subr.bf16.mxu0 0
        %689 = vmatpush1.bf16.msra.mxu0 0
        %690 = vmatprep.mubr.bf16.mxu0 0
        %691 = vmatmul.mubr.bf16.gmra.mrb[0].mxu0 %v653
        %v692 = vpop.f32.mrb[0].mxu0
        %v693 = vadd.f32 0.0, %v692
        %v694 = vpop.f32.mrb[0].mxu0
        %v695 = vpop.f32.mrb[0].mxu0
        %v696 = vpop.f32.mrb[0].mxu0
        %697 = vdwg.mxu0
        %v699 = vsel %vm506, %v558, 0
        %v702 = vsel %vm562, %v316, 0
        %704 = vmatprep.subr.bf16.mxu0 0
        %705 = vmatpush1.bf16.msra.mxu0 %v702
        %706 = vmatprep.subr.bf16.mxu0 0
        %707 = vmatpush1.bf16.msra.mxu0 0
        %708 = vmatprep.subr.bf16.mxu0 0
        %709 = vmatpush1.bf16.msra.mxu0 0
        %710 = vmatprep.subr.bf16.mxu0 0
        %711 = vmatpush1.bf16.msra.mxu0 0
        %712 = vmatprep.subr.bf16.mxu0 0
        %713 = vmatpush1.bf16.msra.mxu0 0
        %714 = vmatprep.subr.bf16.mxu0 0
        %715 = vmatpush1.bf16.msra.mxu0 0
        %716 = vmatprep.subr.bf16.mxu0 0
        %717 = vmatpush1.bf16.msra.mxu0 0
        %718 = vmatprep.subr.bf16.mxu0 0
        %719 = vmatpush1.bf16.msra.mxu0 0
        %720 = vmatprep.subr.bf16.mxu0 0
        %721 = vmatpush1.bf16.msra.mxu0 0
        %722 = vmatprep.subr.bf16.mxu0 0
        %723 = vmatpush1.bf16.msra.mxu0 0
        %724 = vmatprep.subr.bf16.mxu0 0
        %725 = vmatpush1.bf16.msra.mxu0 0
        %726 = vmatprep.subr.bf16.mxu0 0
        %727 = vmatpush1.bf16.msra.mxu0 0
        %728 = vmatprep.subr.bf16.mxu0 0
        %729 = vmatpush1.bf16.msra.mxu0 0
        %730 = vmatprep.subr.bf16.mxu0 0
        %731 = vmatpush1.bf16.msra.mxu0 0
        %732 = vmatprep.subr.bf16.mxu0 0
        %733 = vmatpush1.bf16.msra.mxu0 0
        %734 = vmatprep.subr.bf16.mxu0 0
        %735 = vmatpush1.bf16.msra.mxu0 0
        %736 = vmatprep.mubr.bf16.mxu0 0
        %737 = vmatmul.mubr.bf16.gmra.mrb[0].mxu0 %v699
        %v738 = vpop.f32.mrb[0].mxu0
        %v739 = vadd.f32 0.0, %v738
        %v740 = vpop.f32.mrb[0].mxu0
        %v741 = vpop.f32.mrb[0].mxu0
        %v742 = vpop.f32.mrb[0].mxu0
        %743 = vdwg.mxu0
        %v744 = vpack.c.bf16 %v601, %v601
        %v745 = vpack.c.bf16 %v647, %v647
        %v746 = vpack.c.bf16 %v693, %v693
        %v747 = vpack.c.bf16 %v739, %v739
        %vm748 = vcmask 257024
        %749 = vst.msk [vmem:[%s296] sm:$0xf] %vm748, %v744
        %750 = vst.msk [vmem:[%s296 + $0x4] sm:$0xf] %vm748, %v745
        %751 = vst.msk [vmem:[%s296 + $0x8] sm:$0xf] %vm748, %v746
        %752 = vst.msk [vmem:[%s296 + $0xc] sm:$0xf] %vm748, %v747
        %s753 = sand.u32 %s114, 1
        %s754 = scalar_lea.sflag [#allocation4], %s753
        %s755 = sand.u32 %s114, 1
        %s756 = smul.addr %s755, 16
        %s757 = scalar_lea.vmem [#allocation8], %s756
        %s758 = sand.u32 %s140, 1
        %s759 = scalar_lea.sflag [#allocation10], %s758
        %s760 = sand.u32 %s140, 1
        %s761 = smul.addr %s760, 32
        %s762 = scalar_lea.vmem [#allocation9], %s761
        // Predicated region
        $region45: #{encoder_layer_forward.4} parent=31 // pred_check
          %p763 = pneg %p124
        $region46: #{encoder_layer_forward.4} parent=31 // pred_check_branch
          %765 = sbr.rel (%p763) target = $region48
        $region47: #{encoder_layer_forward.4} parent=31 // pred_region
          %s767 = ssub.s32 256, 256
          %768 = vsyncadd %s754, %s767
          %s769 = smul.addr %s28, 4
          %s770 = smul.addr %s769, 64
          %s771 = scalar_lea.hbm %s3, %s770
          %s772 = sshll.u32 %s757, 4
          %s773 = int_to_ptr.vmem [resolvable:$true] %s772
          %778 = dma.vmem_to_hbm [thread:$0]  %s773, 256, %s771, %s754, 64, 64, 4
        $region48: #{encoder_layer_forward.4} parent=31 // pred_fallthru
          _
        // Predicated region
        $region49: #{encoder_layer_forward.4} parent=31 // pred_check
          %p779 = pneg %p150
        $region50: #{encoder_layer_forward.4} parent=31 // pred_check_branch
          %781 = sbr.rel (%p779) target = $region52
        $region51: #{encoder_layer_forward.4} parent=31 // pred_region
          %s783 = ssub.s32 512, 512
          %784 = vsyncadd %s759, %s783
          %s785 = smul.addr %s28, 4
          %s786 = smul.addr %s785, 128
          %s787 = scalar_lea.hbm %s4, %s786
          %s788 = sshll.u32 %s762, 4
          %s789 = int_to_ptr.vmem [resolvable:$true] %s788
          %794 = dma.vmem_to_hbm [thread:$0]  %s789, 512, %s787, %s759, 128, 128, 8
        $region52: #{encoder_layer_forward.4} parent=31 // pred_fallthru
          _
      $region32: #{encoder_layer_forward.4} parent=5 // pred_fallthru
        _
      %p795 = scmp.le.s32.totalorder 2, %s23
      // Predicated region
      $region53: #{encoder_layer_forward.4} parent=5 // pred_check
        %p796 = pneg %p795
      $region54: #{encoder_layer_forward.4} parent=5 // pred_check_branch
        %798 = sbr.rel (%p796) target = $region56
      $region55: #{encoder_layer_forward.4} parent=5 // pred_region
        %s799 = ssub.s32 %s23, 2
        // Predicated region
        $region57: #{encoder_layer_forward.4} parent=55 // pred_check
          %p800 = pneg %p130
        $region58: #{encoder_layer_forward.4} parent=55 // pred_check_branch
          %802 = sbr.rel (%p800) target = $region60
        $region59: #{encoder_layer_forward.4} parent=55 // pred_region
          %s803 = sand.u32 %s115, 1
          %s804 = scalar_lea.sflag [#allocation4], %s803
          %s805 = sand.u32 %s115, 1
          %s806 = smul.addr %s805, 16
          %s807 = scalar_lea.vmem [#allocation8], %s806
          %808 = dma.done %s804, 256
        $region60: #{encoder_layer_forward.4} parent=55 // pred_fallthru
          _
        // Predicated region
        $region61: #{encoder_layer_forward.4} parent=55 // pred_check
          %p809 = pneg %p156
        $region62: #{encoder_layer_forward.4} parent=55 // pred_check_branch
          %811 = sbr.rel (%p809) target = $region64
        $region63: #{encoder_layer_forward.4} parent=55 // pred_region
          %s812 = sand.u32 %s141, 1
          %s813 = scalar_lea.sflag [#allocation10], %s812
          %s814 = sand.u32 %s141, 1
          %s815 = smul.addr %s814, 32
          %s816 = scalar_lea.vmem [#allocation9], %s815
          %817 = dma.done %s813, 512
        $region64: #{encoder_layer_forward.4} parent=55 // pred_fallthru
          _
      $region56: #{encoder_layer_forward.4} parent=5 // pred_fallthru
        _
    $region6: #{encoder_layer_forward.4} parent=1 // loop_footer
      %s27 = sadd.s32 1, %s23
    $region7: #{encoder_layer_forward.4} parent=1 // loop_footer_branch
      %22 = sbr.rel target = $region3
    $region8: #{encoder_layer_forward.4} parent=1 // loop_exit
      _
    %818 = vsyncpa [#allocation3], 1
    %s819 = scalar_lea.sflag [#allocation3], 1
    %820 = vsyncpa %s819, 1
    %821 = vsyncpa [#allocation6], 1
    %s822 = scalar_lea.sflag [#allocation6], 1
    %823 = vsyncpa %s822, 1
    %824 = vsyncpa [#allocation4], 1
    %s825 = scalar_lea.sflag [#allocation4], 1
    %826 = vsyncpa %s825, 1
    %827 = vsyncpa [#allocation10], 1
    %s828 = scalar_lea.sflag [#allocation10], 1
    %829 = vsyncpa %s828, 1

// kernel: encoder_layer_forward.5
$region0: #{encoder_layer_forward.5}
  #allocation0 [shape = 'u32[]', space=smem, size = 0x4, offset = 0x4, fixed_abs, tag = 'smem constant byte address 0x4 - core index']
  #allocation1 [shape = 'u32[144,128]{1,0:T(1,128)}', space=vmem, size = 0x12000, scoped, tag = 'internal scratch']
  %s0 = inlined_call_operand.hbm [shape: f32[2,8,128], index: 0, kind: input, shape index: {}]
  %s1 = inlined_call_operand.hbm [shape: bf16[2,8,128], index: 1, kind: input, shape index: {}]
  %s2 = inlined_call_operand.hbm [shape: bf16[128,128], index: 2, kind: input, shape index: {}]
  %s3 = inlined_call_operand.hbm [shape: f32[1,128], index: 3, kind: input, shape index: {}]
  %s4 = inlined_call_operand.hbm [shape: f32[1,128], index: 4, kind: input, shape index: {}]
  %s5 = inlined_call_operand.hbm [shape: f32[1,128], index: 5, kind: input, shape index: {}]
  %s6 = inlined_call_operand.hbm [shape: bf16[128,256], index: 6, kind: input, shape index: {}]
  %s7 = inlined_call_operand.hbm [shape: f32[1,256], index: 7, kind: input, shape index: {}]
  %s8 = inlined_call_operand.hbm [shape: bf16[256,128], index: 8, kind: input, shape index: {}]
  %s9 = inlined_call_operand.hbm [shape: f32[1,128], index: 9, kind: input, shape index: {}]
  %s10 = inlined_call_operand.hbm [shape: f32[1,128], index: 10, kind: input, shape index: {}]
  %s11 = inlined_call_operand.hbm [shape: f32[1,128], index: 11, kind: input, shape index: {}]
  %s12 = inlined_call_operand.hbm [shape: f32[2,8,128], index: 12, kind: output, shape index: {}]
  %s13 = sld [smem:[#allocation0]]
  $region129: #{encoder_layer_forward.5} parent=0
    _
  %s15 = ssub.s32 1, %s13
  %s16 = scalar_select 0, %s15, %s13
  $region1: #{encoder_layer_forward.5} parent=0
    #allocation2 [shape = 'u8[8192]{0}', space=vmem, size = 0x2000, scoped, tag = 'input window, operand 0']
    #allocation3 [shape = 's32[2]{0}', space=sflag, size = 0x8, scoped, tag = 'scoped memory for encoder_layer_forward.5']
    #allocation4 [shape = 's32[2]{0}', space=sflag, size = 0x8, scoped, tag = 'scoped memory for encoder_layer_forward.5']
    #allocation5 [shape = 'u8[4096]{0}', space=vmem, size = 0x1000, scoped, tag = 'input window, operand 1']
    #allocation6 [shape = 's32[2]{0}', space=sflag, size = 0x8, scoped, tag = 'scoped memory for encoder_layer_forward.5']
    #allocation7 [shape = 'u8[32768]{0}', space=vmem, size = 0x8000, scoped, tag = 'input window, operand 2, single buffered']
    #allocation8 [shape = 'u8[512]{0}', space=vmem, size = 0x400, scoped, tag = 'input window, operand 3, single buffered']
    #allocation9 [shape = 's32[1]{0}', space=sflag, size = 0x4, scoped, tag = 'scoped memory for encoder_layer_forward.5']
    #allocation10 [shape = 'u8[512]{0}', space=vmem, size = 0x400, scoped, tag = 'input window, operand 4, single buffered']
    #allocation11 [shape = 'u8[512]{0}', space=vmem, size = 0x400, scoped, tag = 'input window, operand 5, single buffered']
    #allocation12 [shape = 's32[1]{0}', space=sflag, size = 0x4, scoped, tag = 'scoped memory for encoder_layer_forward.5']
    #allocation13 [shape = 'u8[65536]{0}', space=vmem, size = 0x10000, scoped, tag = 'input window, operand 6, single buffered']
    #allocation14 [shape = 'u8[1024]{0}', space=vmem, size = 0x400, scoped, tag = 'input window, operand 7, single buffered']
    #allocation15 [shape = 's32[1]{0}', space=sflag, size = 0x4, scoped, tag = 'scoped memory for encoder_layer_forward.5']
    #allocation16 [shape = 'u8[65536]{0}', space=vmem, size = 0x10000, scoped, tag = 'input window, operand 8, single buffered']
    #allocation17 [shape = 'u8[512]{0}', space=vmem, size = 0x400, scoped, tag = 'input window, operand 9, single buffered']
    #allocation18 [shape = 's32[1]{0}', space=sflag, size = 0x4, scoped, tag = 'scoped memory for encoder_layer_forward.5']
    #allocation19 [shape = 'u8[512]{0}', space=vmem, size = 0x400, scoped, tag = 'input window, operand 10, single buffered']
    #allocation20 [shape = 'u8[512]{0}', space=vmem, size = 0x400, scoped, tag = 'input window, operand 11, single buffered']
    #allocation21 [shape = 's32[1]{0}', space=sflag, size = 0x4, scoped, tag = 'scoped memory for encoder_layer_forward.5']
    #allocation22 [shape = 'u8[8192]{0}', space=vmem, size = 0x2000, scoped, tag = 'output window, operand 0']
    %17 = vsyncpa [#allocation3], 0
    %s18 = scalar_lea.sflag [#allocation3], 1
    %19 = vsyncpa %s18, 0
    %20 = vsyncpa [#allocation6], 0
    %s21 = scalar_lea.sflag [#allocation6], 1
    %22 = vsyncpa %s21, 0
    %23 = vsyncpa [#allocation9], 0
    %24 = vsyncpa [#allocation12], 0
    %25 = vsyncpa [#allocation15], 0
    %26 = vsyncpa [#allocation18], 0
    %27 = vsyncpa [#allocation21], 0
    %28 = vsyncpa [#allocation4], 0
    %s29 = scalar_lea.sflag [#allocation4], 1
    %30 = vsyncpa %s29, 0
    loop: start=0, step=1, limit=4
    $region2: #{encoder_layer_forward.5} parent=1 // loop_pre_header
      _
    $region3: #{encoder_layer_forward.5} parent=1 // loop_header
      %s32 = sphi 0, %s36
      %p33 = scmp.ge.s32.totalorder %s32, 4
      %s42 = sphi 0, %s44
      %s45 = sphi 0, %s42
      %s46 = sphi 0, %s45
      %s62 = sphi 0, %s46
      %s68 = sphi 0, %s70
      %s71 = sphi 0, %s68
      %s72 = sphi 0, %s71
      %s88 = sphi 0, %s72
      %s92 = sphi 0, %s92
      %s94 = sphi 0, %s92
      %s95 = sphi 0, %s94
      %s109 = sphi 0, %s95
      %s113 = sphi 0, %s113
      %s115 = sphi 0, %s113
      %s116 = sphi 0, %s115
      %s130 = sphi 0, %s116
      %s134 = sphi 0, %s134
      %s136 = sphi 0, %s134
      %s137 = sphi 0, %s136
      %s151 = sphi 0, %s137
      %s155 = sphi 0, %s155
      %s157 = sphi 0, %s155
      %s158 = sphi 0, %s157
      %s172 = sphi 0, %s158
      %s176 = sphi 0, %s176
      %s178 = sphi 0, %s176
      %s179 = sphi 0, %s178
      %s193 = sphi 0, %s179
      %s197 = sphi 0, %s197
      %s199 = sphi 0, %s197
      %s200 = sphi 0, %s199
      %s214 = sphi 0, %s200
      %s218 = sphi 0, %s218
      %s220 = sphi 0, %s218
      %s221 = sphi 0, %s220
      %s235 = sphi 0, %s221
      %s239 = sphi 0, %s239
      %s241 = sphi 0, %s239
      %s242 = sphi 0, %s241
      %s256 = sphi 0, %s242
      %s260 = sphi 0, %s260
      %s262 = sphi 0, %s260
      %s263 = sphi 0, %s262
      %s277 = sphi 0, %s263
      %s281 = sphi 0, %s281
      %s283 = sphi 0, %s281
      %s284 = sphi 0, %s283
      %s298 = sphi 0, %s284
      %s304 = sphi 0, %s306
      %s307 = sphi 0, %s304
      %s308 = sphi 0, %s307
      %s324 = sphi 0, %s308
    $region4: #{encoder_layer_forward.5} parent=1 // loop_header_branch
      %35 = sbr.rel (%p33) target = $region8
    $region5: #{encoder_layer_forward.5} parent=1 // loop_body
      %s37 = ssub.s32 %s32, 1
      %s38 = ssub.s32 %s32, 2
      %s39 = sadd.s32 %s32, 1
      %s40 = ssub.s32 %s32, %s39
      %p41 = scmp.eq.s32.totalorder %s40, 0
      %s43 = sadd.s32 %s42, 1
      %s44 = scalar_select %p41, %s42, %s43
      %p47 = pneg %p41
      %p48 = scmp.eq.s32.totalorder %s32, 1
      %p49 = por %p47, %p48
      %p50 = scmp.ne.s32.totalorder %s42, %s45
      %p51 = scmp.eq.s32.totalorder %s32, 0
      %p52 = por %p50, %p51
      %p53 = scmp.ne.s32.totalorder %s42, %s45
      %p54 = scmp.eq.s32.totalorder %s37, 1
      %p55 = por %p53, %p54
      %p56 = scmp.ne.s32.totalorder %s45, %s46
      %p57 = scmp.eq.s32.totalorder %s37, 0
      %p58 = por %p56, %p57
      %p59 = scmp.ne.s32.totalorder %s45, %s46
      %p60 = scmp.eq.s32.totalorder %s38, 1
      %p61 = por %p59, %p60
      %p63 = scmp.ne.s32.totalorder %s46, %s62
      %p64 = scmp.eq.s32.totalorder %s38, 0
      %p65 = por %p63, %p64
      %s66 = ssub.s32 %s32, %s39
      %p67 = scmp.eq.s32.totalorder %s66, 0
      %s69 = sadd.s32 %s68, 1
      %s70 = scalar_select %p67, %s68, %s69
      %p73 = pneg %p67
      %p74 = scmp.eq.s32.totalorder %s32, 1
      %p75 = por %p73, %p74
      %p76 = scmp.ne.s32.totalorder %s68, %s71
      %p77 = scmp.eq.s32.totalorder %s32, 0
      %p78 = por %p76, %p77
      %p79 = scmp.ne.s32.totalorder %s68, %s71
      %p80 = scmp.eq.s32.totalorder %s37, 1
      %p81 = por %p79, %p80
      %p82 = scmp.ne.s32.totalorder %s71, %s72
      %p83 = scmp.eq.s32.totalorder %s37, 0
      %p84 = por %p82, %p83
      %p85 = scmp.ne.s32.totalorder %s71, %s72
      %p86 = scmp.eq.s32.totalorder %s38, 1
      %p87 = por %p85, %p86
      %p89 = scmp.ne.s32.totalorder %s72, %s88
      %p90 = scmp.eq.s32.totalorder %s38, 0
      %p91 = por %p89, %p90
      %s93 = sadd.s32 %s92, 1
      %p96 = scmp.eq.s32.totalorder %s32, 1
      %p97 = scmp.ne.s32.totalorder %s92, %s94
      %p98 = scmp.eq.s32.totalorder %s32, 0
      %p99 = por %p97, %p98
      %p100 = scmp.ne.s32.totalorder %s92, %s94
      %p101 = scmp.eq.s32.totalorder %s37, 1
      %p102 = por %p100, %p101
      %p103 = scmp.ne.s32.totalorder %s94, %s95
      %p104 = scmp.eq.s32.totalorder %s37, 0
      %p105 = por %p103, %p104
      %p106 = scmp.ne.s32.totalorder %s94, %s95
      %p107 = scmp.eq.s32.totalorder %s38, 1
      %p108 = por %p106, %p107
      %p110 = scmp.ne.s32.totalorder %s95, %s109
      %p111 = scmp.eq.s32.totalorder %s38, 0
      %p112 = por %p110, %p111
      %s114 = sadd.s32 %s113, 1
      %p117 = scmp.eq.s32.totalorder %s32, 1
      %p118 = scmp.ne.s32.totalorder %s113, %s115
      %p119 = scmp.eq.s32.totalorder %s32, 0
      %p120 = por %p118, %p119
      %p121 = scmp.ne.s32.totalorder %s113, %s115
      %p122 = scmp.eq.s32.totalorder %s37, 1
      %p123 = por %p121, %p122
      %p124 = scmp.ne.s32.totalorder %s115, %s116
      %p125 = scmp.eq.s32.totalorder %s37, 0
      %p126 = por %p124, %p125
      %p127 = scmp.ne.s32.totalorder %s115, %s116
      %p128 = scmp.eq.s32.totalorder %s38, 1
      %p129 = por %p127, %p128
      %p131 = scmp.ne.s32.totalorder %s116, %s130
      %p132 = scmp.eq.s32.totalorder %s38, 0
      %p133 = por %p131, %p132
      %s135 = sadd.s32 %s134, 1
      %p138 = scmp.eq.s32.totalorder %s32, 1
      %p139 = scmp.ne.s32.totalorder %s134, %s136
      %p140 = scmp.eq.s32.totalorder %s32, 0
      %p141 = por %p139, %p140
      %p142 = scmp.ne.s32.totalorder %s134, %s136
      %p143 = scmp.eq.s32.totalorder %s37, 1
      %p144 = por %p142, %p143
      %p145 = scmp.ne.s32.totalorder %s136, %s137
      %p146 = scmp.eq.s32.totalorder %s37, 0
      %p147 = por %p145, %p146
      %p148 = scmp.ne.s32.totalorder %s136, %s137
      %p149 = scmp.eq.s32.totalorder %s38, 1
      %p150 = por %p148, %p149
      %p152 = scmp.ne.s32.totalorder %s137, %s151
      %p153 = scmp.eq.s32.totalorder %s38, 0
      %p154 = por %p152, %p153
      %s156 = sadd.s32 %s155, 1
      %p159 = scmp.eq.s32.totalorder %s32, 1
      %p160 = scmp.ne.s32.totalorder %s155, %s157
      %p161 = scmp.eq.s32.totalorder %s32, 0
      %p162 = por %p160, %p161
      %p163 = scmp.ne.s32.totalorder %s155, %s157
      %p164 = scmp.eq.s32.totalorder %s37, 1
      %p165 = por %p163, %p164
      %p166 = scmp.ne.s32.totalorder %s157, %s158
      %p167 = scmp.eq.s32.totalorder %s37, 0
      %p168 = por %p166, %p167
      %p169 = scmp.ne.s32.totalorder %s157, %s158
      %p170 = scmp.eq.s32.totalorder %s38, 1
      %p171 = por %p169, %p170
      %p173 = scmp.ne.s32.totalorder %s158, %s172
      %p174 = scmp.eq.s32.totalorder %s38, 0
      %p175 = por %p173, %p174
      %s177 = sadd.s32 %s176, 1
      %p180 = scmp.eq.s32.totalorder %s32, 1
      %p181 = scmp.ne.s32.totalorder %s176, %s178
      %p182 = scmp.eq.s32.totalorder %s32, 0
      %p183 = por %p181, %p182
      %p184 = scmp.ne.s32.totalorder %s176, %s178
      %p185 = scmp.eq.s32.totalorder %s37, 1
      %p186 = por %p184, %p185
      %p187 = scmp.ne.s32.totalorder %s178, %s179
      %p188 = scmp.eq.s32.totalorder %s37, 0
      %p189 = por %p187, %p188
      %p190 = scmp.ne.s32.totalorder %s178, %s179
      %p191 = scmp.eq.s32.totalorder %s38, 1
      %p192 = por %p190, %p191
      %p194 = scmp.ne.s32.totalorder %s179, %s193
      %p195 = scmp.eq.s32.totalorder %s38, 0
      %p196 = por %p194, %p195
      %s198 = sadd.s32 %s197, 1
      %p201 = scmp.eq.s32.totalorder %s32, 1
      %p202 = scmp.ne.s32.totalorder %s197, %s199
      %p203 = scmp.eq.s32.totalorder %s32, 0
      %p204 = por %p202, %p203
      %p205 = scmp.ne.s32.totalorder %s197, %s199
      %p206 = scmp.eq.s32.totalorder %s37, 1
      %p207 = por %p205, %p206
      %p208 = scmp.ne.s32.totalorder %s199, %s200
      %p209 = scmp.eq.s32.totalorder %s37, 0
      %p210 = por %p208, %p209
      %p211 = scmp.ne.s32.totalorder %s199, %s200
      %p212 = scmp.eq.s32.totalorder %s38, 1
      %p213 = por %p211, %p212
      %p215 = scmp.ne.s32.totalorder %s200, %s214
      %p216 = scmp.eq.s32.totalorder %s38, 0
      %p217 = por %p215, %p216
      %s219 = sadd.s32 %s218, 1
      %p222 = scmp.eq.s32.totalorder %s32, 1
      %p223 = scmp.ne.s32.totalorder %s218, %s220
      %p224 = scmp.eq.s32.totalorder %s32, 0
      %p225 = por %p223, %p224
      %p226 = scmp.ne.s32.totalorder %s218, %s220
      %p227 = scmp.eq.s32.totalorder %s37, 1
      %p228 = por %p226, %p227
      %p229 = scmp.ne.s32.totalorder %s220, %s221
      %p230 = scmp.eq.s32.totalorder %s37, 0
      %p231 = por %p229, %p230
      %p232 = scmp.ne.s32.totalorder %s220, %s221
      %p233 = scmp.eq.s32.totalorder %s38, 1
      %p234 = por %p232, %p233
      %p236 = scmp.ne.s32.totalorder %s221, %s235
      %p237 = scmp.eq.s32.totalorder %s38, 0
      %p238 = por %p236, %p237
      %s240 = sadd.s32 %s239, 1
      %p243 = scmp.eq.s32.totalorder %s32, 1
      %p244 = scmp.ne.s32.totalorder %s239, %s241
      %p245 = scmp.eq.s32.totalorder %s32, 0
      %p246 = por %p244, %p245
      %p247 = scmp.ne.s32.totalorder %s239, %s241
      %p248 = scmp.eq.s32.totalorder %s37, 1
      %p249 = por %p247, %p248
      %p250 = scmp.ne.s32.totalorder %s241, %s242
      %p251 = scmp.eq.s32.totalorder %s37, 0
      %p252 = por %p250, %p251
      %p253 = scmp.ne.s32.totalorder %s241, %s242
      %p254 = scmp.eq.s32.totalorder %s38, 1
      %p255 = por %p253, %p254
      %p257 = scmp.ne.s32.totalorder %s242, %s256
      %p258 = scmp.eq.s32.totalorder %s38, 0
      %p259 = por %p257, %p258
      %s261 = sadd.s32 %s260, 1
      %p264 = scmp.eq.s32.totalorder %s32, 1
      %p265 = scmp.ne.s32.totalorder %s260, %s262
      %p266 = scmp.eq.s32.totalorder %s32, 0
      %p267 = por %p265, %p266
      %p268 = scmp.ne.s32.totalorder %s260, %s262
      %p269 = scmp.eq.s32.totalorder %s37, 1
      %p270 = por %p268, %p269
      %p271 = scmp.ne.s32.totalorder %s262, %s263
      %p272 = scmp.eq.s32.totalorder %s37, 0
      %p273 = por %p271, %p272
      %p274 = scmp.ne.s32.totalorder %s262, %s263
      %p275 = scmp.eq.s32.totalorder %s38, 1
      %p276 = por %p274, %p275
      %p278 = scmp.ne.s32.totalorder %s263, %s277
      %p279 = scmp.eq.s32.totalorder %s38, 0
      %p280 = por %p278, %p279
      %s282 = sadd.s32 %s281, 1
      %p285 = scmp.eq.s32.totalorder %s32, 1
      %p286 = scmp.ne.s32.totalorder %s281, %s283
      %p287 = scmp.eq.s32.totalorder %s32, 0
      %p288 = por %p286, %p287
      %p289 = scmp.ne.s32.totalorder %s281, %s283
      %p290 = scmp.eq.s32.totalorder %s37, 1
      %p291 = por %p289, %p290
      %p292 = scmp.ne.s32.totalorder %s283, %s284
      %p293 = scmp.eq.s32.totalorder %s37, 0
      %p294 = por %p292, %p293
      %p295 = scmp.ne.s32.totalorder %s283, %s284
      %p296 = scmp.eq.s32.totalorder %s38, 1
      %p297 = por %p295, %p296
      %p299 = scmp.ne.s32.totalorder %s284, %s298
      %p300 = scmp.eq.s32.totalorder %s38, 0
      %p301 = por %p299, %p300
      %s302 = ssub.s32 %s32, %s39
      %p303 = scmp.eq.s32.totalorder %s302, 0
      %s305 = sadd.s32 %s304, 1
      %s306 = scalar_select %p303, %s304, %s305
      %p309 = pneg %p303
      %p310 = scmp.eq.s32.totalorder %s32, 1
      %p311 = por %p309, %p310
      %p312 = scmp.ne.s32.totalorder %s304, %s307
      %p313 = scmp.eq.s32.totalorder %s32, 0
      %p314 = por %p312, %p313
      %p315 = scmp.ne.s32.totalorder %s304, %s307
      %p316 = scmp.eq.s32.totalorder %s37, 1
      %p317 = por %p315, %p316
      %p318 = scmp.ne.s32.totalorder %s307, %s308
      %p319 = scmp.eq.s32.totalorder %s37, 0
      %p320 = por %p318, %p319
      %p321 = scmp.ne.s32.totalorder %s307, %s308
      %p322 = scmp.eq.s32.totalorder %s38, 1
      %p323 = por %p321, %p322
      %p325 = scmp.ne.s32.totalorder %s308, %s324
      %p326 = scmp.eq.s32.totalorder %s38, 0
      %p327 = por %p325, %p326
      %p328 = scmp.le.s32.totalorder 1, %s32
      %p329 = scmp.lt.s32.totalorder %s32, 3
      %p330 = pnand %p328, %p329
      %p331 = pneg %p330
      // Predicated region
      $region9: #{encoder_layer_forward.5} parent=5 // pred_check
        _
      $region10: #{encoder_layer_forward.5} parent=5 // pred_check_branch
        %333 = sbr.rel (%p330) target = $region12
      $region11: #{encoder_layer_forward.5} parent=5 // pred_region
        %s334 = ssub.s32 %s32, 1
        // Predicated region
        $region13: #{encoder_layer_forward.5} parent=11 // pred_check
          %p335 = pneg %p105
        $region14: #{encoder_layer_forward.5} parent=11 // pred_check_branch
          %337 = sbr.rel (%p335) target = $region16
        $region15: #{encoder_layer_forward.5} parent=11 // pred_region
          %s339 = ssub.s32 1024, 1024
          %340 = vsyncadd [#allocation6], %s339
          %s341 = sshll.u32 [#allocation7], 4
          %s342 = int_to_ptr.vmem [resolvable:$true] %s341
          %347 = dma.hbm_to_vmem [thread:$0]  %s2, 1024, %s342, [#allocation6], 64, 64, 4
        $region16: #{encoder_layer_forward.5} parent=11 // pred_fallthru
          _
        // Predicated region
        $region17: #{encoder_layer_forward.5} parent=11 // pred_check
          %p348 = pneg %p126
        $region18: #{encoder_layer_forward.5} parent=11 // pred_check_branch
          %350 = sbr.rel (%p348) target = $region20
        $region19: #{encoder_layer_forward.5} parent=11 // pred_region
          %s352 = ssub.s32 16, 16
          %353 = vsyncadd [#allocation9], %s352
          %s355 = sshll.u32 [#allocation8], 4
          %s356 = int_to_ptr.vmem [resolvable:$true] %s355
          %358 = dma.hbm_to_vmem [thread:$0]  %s3, 16, %s356, [#allocation9]
        $region20: #{encoder_layer_forward.5} parent=11 // pred_fallthru
          _
        // Predicated region
        $region21: #{encoder_layer_forward.5} parent=11 // pred_check
          %p359 = pneg %p147
        $region22: #{encoder_layer_forward.5} parent=11 // pred_check_branch
          %361 = sbr.rel (%p359) target = $region24
        $region23: #{encoder_layer_forward.5} parent=11 // pred_region
          %s363 = ssub.s32 16, 16
          %364 = vsyncadd [#allocation9], %s363
          %s366 = sshll.u32 [#allocation10], 4
          %s367 = int_to_ptr.vmem [resolvable:$true] %s366
          %369 = dma.hbm_to_vmem [thread:$0]  %s4, 16, %s367, [#allocation9]
        $region24: #{encoder_layer_forward.5} parent=11 // pred_fallthru
          _
        // Predicated region
        $region25: #{encoder_layer_forward.5} parent=11 // pred_check
          %p370 = pneg %p168
        $region26: #{encoder_layer_forward.5} parent=11 // pred_check_branch
          %372 = sbr.rel (%p370) target = $region28
        $region27: #{encoder_layer_forward.5} parent=11 // pred_region
          %s374 = ssub.s32 16, 16
          %375 = vsyncadd [#allocation12], %s374
          %s377 = sshll.u32 [#allocation11], 4
          %s378 = int_to_ptr.vmem [resolvable:$true] %s377
          %380 = dma.hbm_to_vmem [thread:$0]  %s5, 16, %s378, [#allocation12]
        $region28: #{encoder_layer_forward.5} parent=11 // pred_fallthru
          _
        // Predicated region
        $region29: #{encoder_layer_forward.5} parent=11 // pred_check
          %p381 = pneg %p189
        $region30: #{encoder_layer_forward.5} parent=11 // pred_check_branch
          %383 = sbr.rel (%p381) target = $region32
        $region31: #{encoder_layer_forward.5} parent=11 // pred_region
          %s385 = ssub.s32 2048, 2048
          %386 = vsyncadd [#allocation12], %s385
          %s387 = sshll.u32 [#allocation13], 4
          %s388 = int_to_ptr.vmem [resolvable:$true] %s387
          %393 = dma.hbm_to_vmem [thread:$0]  %s6, 2048, %s388, [#allocation12], 128, 128, 8
        $region32: #{encoder_layer_forward.5} parent=11 // pred_fallthru
          _
        // Predicated region
        $region33: #{encoder_layer_forward.5} parent=11 // pred_check
          %p394 = pneg %p210
        $region34: #{encoder_layer_forward.5} parent=11 // pred_check_branch
          %396 = sbr.rel (%p394) target = $region36
        $region35: #{encoder_layer_forward.5} parent=11 // pred_region
          %s398 = ssub.s32 32, 32
          %399 = vsyncadd [#allocation15], %s398
          %s401 = sshll.u32 [#allocation14], 4
          %s402 = int_to_ptr.vmem [resolvable:$true] %s401
          %404 = dma.hbm_to_vmem [thread:$0]  %s7, 32, %s402, [#allocation15]
        $region36: #{encoder_layer_forward.5} parent=11 // pred_fallthru
          _
        // Predicated region
        $region37: #{encoder_layer_forward.5} parent=11 // pred_check
          %p405 = pneg %p231
        $region38: #{encoder_layer_forward.5} parent=11 // pred_check_branch
          %407 = sbr.rel (%p405) target = $region40
        $region39: #{encoder_layer_forward.5} parent=11 // pred_region
          %s409 = ssub.s32 2048, 2048
          %410 = vsyncadd [#allocation15], %s409
          %s411 = sshll.u32 [#allocation16], 4
          %s412 = int_to_ptr.vmem [resolvable:$true] %s411
          %417 = dma.hbm_to_vmem [thread:$0]  %s8, 2048, %s412, [#allocation15], 64, 64, 4
        $region40: #{encoder_layer_forward.5} parent=11 // pred_fallthru
          _
        // Predicated region
        $region41: #{encoder_layer_forward.5} parent=11 // pred_check
          %p418 = pneg %p252
        $region42: #{encoder_layer_forward.5} parent=11 // pred_check_branch
          %420 = sbr.rel (%p418) target = $region44
        $region43: #{encoder_layer_forward.5} parent=11 // pred_region
          %s422 = ssub.s32 16, 16
          %423 = vsyncadd [#allocation18], %s422
          %s425 = sshll.u32 [#allocation17], 4
          %s426 = int_to_ptr.vmem [resolvable:$true] %s425
          %428 = dma.hbm_to_vmem [thread:$0]  %s9, 16, %s426, [#allocation18]
        $region44: #{encoder_layer_forward.5} parent=11 // pred_fallthru
          _
        // Predicated region
        $region45: #{encoder_layer_forward.5} parent=11 // pred_check
          %p429 = pneg %p273
        $region46: #{encoder_layer_forward.5} parent=11 // pred_check_branch
          %431 = sbr.rel (%p429) target = $region48
        $region47: #{encoder_layer_forward.5} parent=11 // pred_region
          %s433 = ssub.s32 16, 16
          %434 = vsyncadd [#allocation18], %s433
          %s436 = sshll.u32 [#allocation19], 4
          %s437 = int_to_ptr.vmem [resolvable:$true] %s436
          %439 = dma.hbm_to_vmem [thread:$0]  %s10, 16, %s437, [#allocation18]
        $region48: #{encoder_layer_forward.5} parent=11 // pred_fallthru
          _
        // Predicated region
        $region49: #{encoder_layer_forward.5} parent=11 // pred_check
          %p440 = pneg %p294
        $region50: #{encoder_layer_forward.5} parent=11 // pred_check_branch
          %442 = sbr.rel (%p440) target = $region52
        $region51: #{encoder_layer_forward.5} parent=11 // pred_region
          %s444 = ssub.s32 16, 16
          %445 = vsyncadd [#allocation21], %s444
          %s447 = sshll.u32 [#allocation20], 4
          %s448 = int_to_ptr.vmem [resolvable:$true] %s447
          %450 = dma.hbm_to_vmem [thread:$0]  %s11, 16, %s448, [#allocation21]
        $region52: #{encoder_layer_forward.5} parent=11 // pred_fallthru
          _
      $region12: #{encoder_layer_forward.5} parent=5 // pred_fallthru
        _
      %p451 = scmp.lt.s32.totalorder %s32, 2
      // Predicated region
      $region53: #{encoder_layer_forward.5} parent=5 // pred_check
        %p452 = pneg %p451
      $region54: #{encoder_layer_forward.5} parent=5 // pred_check_branch
        %454 = sbr.rel (%p452) target = $region56
      $region55: #{encoder_layer_forward.5} parent=5 // pred_region
        // Predicated region
        $region57: #{encoder_layer_forward.5} parent=55 // pred_check
          %p455 = pneg %p52
        $region58: #{encoder_layer_forward.5} parent=55 // pred_check_branch
          %457 = sbr.rel (%p455) target = $region60
        $region59: #{encoder_layer_forward.5} parent=55 // pred_region
          %s458 = sand.u32 %s42, 1
          %s459 = scalar_lea.sflag [#allocation3], %s458
          %s460 = sand.u32 %s42, 1
          %s461 = smul.addr %s460, 8
          %s462 = scalar_lea.vmem [#allocation2], %s461
          %s464 = ssub.s32 128, 128
          %465 = vsyncadd %s459, %s464
          %s466 = smul.addr %s32, 128
          %s467 = scalar_lea.hbm %s0, %s466
          %s469 = sshll.u32 %s462, 4
          %s470 = int_to_ptr.vmem [resolvable:$true] %s469
          %472 = dma.hbm_to_vmem [thread:$0]  %s467, 128, %s470, %s459
        $region60: #{encoder_layer_forward.5} parent=55 // pred_fallthru
          _
        // Predicated region
        $region61: #{encoder_layer_forward.5} parent=55 // pred_check
          %p473 = pneg %p78
        $region62: #{encoder_layer_forward.5} parent=55 // pred_check_branch
          %475 = sbr.rel (%p473) target = $region64
        $region63: #{encoder_layer_forward.5} parent=55 // pred_region
          %s476 = sand.u32 %s32, 1
          %s477 = scalar_lea.sflag [#allocation6], %s476
          %s478 = sand.u32 %s68, 1
          %s479 = smul.addr %s478, 4
          %s480 = scalar_lea.vmem [#allocation5], %s479
          %s482 = ssub.s32 64, 64
          %483 = vsyncadd %s477, %s482
          %s484 = smul.addr %s32, 64
          %s485 = scalar_lea.hbm %s1, %s484
          %s487 = sshll.u32 %s480, 4
          %s488 = int_to_ptr.vmem [resolvable:$true] %s487
          %490 = dma.hbm_to_vmem [thread:$0]  %s485, 64, %s488, %s477
        $region64: #{encoder_layer_forward.5} parent=55 // pred_fallthru
          _
      $region56: #{encoder_layer_forward.5} parent=5 // pred_fallthru
        _
      %p491 = scmp.le.s32.totalorder 1, %s32
      %p492 = scmp.lt.s32.totalorder %s32, 3
      %p493 = pnand %p491, %p492
      %p494 = pneg %p493
      // Predicated region
      $region65: #{encoder_layer_forward.5} parent=5 // pred_check
        _
      $region66: #{encoder_layer_forward.5} parent=5 // pred_check_branch
        %496 = sbr.rel (%p493) target = $region68
      $region67: #{encoder_layer_forward.5} parent=5 // pred_region
        %s497 = ssub.s32 %s32, 1
        %s498 = sand.u32 %s45, 1
        %s499 = scalar_lea.sflag [#allocation3], %s498
        %s500 = sand.u32 %s45, 1
        %s501 = smul.addr %s500, 8
        %s502 = scalar_lea.vmem [#allocation2], %s501
        // Predicated region
        $region69: #{encoder_layer_forward.5} parent=67 // pred_check
          %p503 = pneg %p58
        $region70: #{encoder_layer_forward.5} parent=67 // pred_check_branch
          %505 = sbr.rel (%p503) target = $region72
        $region71: #{encoder_layer_forward.5} parent=67 // pred_region
          %506 = dma.done %s499, 128
        $region72: #{encoder_layer_forward.5} parent=67 // pred_fallthru
          _
        %s507 = sand.u32 %s37, 1
        %s508 = scalar_lea.sflag [#allocation6], %s507
        %s509 = sand.u32 %s71, 1
        %s510 = smul.addr %s509, 4
        %s511 = scalar_lea.vmem [#allocation5], %s510
        // Predicated region
        $region73: #{encoder_layer_forward.5} parent=67 // pred_check
          %p512 = pneg %p84
        $region74: #{encoder_layer_forward.5} parent=67 // pred_check_branch
          %514 = sbr.rel (%p512) target = $region76
        $region75: #{encoder_layer_forward.5} parent=67 // pred_region
          %515 = dma.done %s508, 64
        $region76: #{encoder_layer_forward.5} parent=67 // pred_fallthru
          _
        // Predicated region
        $region77: #{encoder_layer_forward.5} parent=67 // pred_check
          %p516 = pneg %p105
        $region78: #{encoder_layer_forward.5} parent=67 // pred_check_branch
          %518 = sbr.rel (%p516) target = $region80
        $region79: #{encoder_layer_forward.5} parent=67 // pred_region
          %519 = dma.done [#allocation6], 1024
        $region80: #{encoder_layer_forward.5} parent=67 // pred_fallthru
          _
        // Predicated region
        $region81: #{encoder_layer_forward.5} parent=67 // pred_check
          %p520 = pneg %p126
        $region82: #{encoder_layer_forward.5} parent=67 // pred_check_branch
          %522 = sbr.rel (%p520) target = $region84
        $region83: #{encoder_layer_forward.5} parent=67 // pred_region
          %523 = dma.done [#allocation9], 16
        $region84: #{encoder_layer_forward.5} parent=67 // pred_fallthru
          _
        // Predicated region
        $region85: #{encoder_layer_forward.5} parent=67 // pred_check
          %p524 = pneg %p147
        $region86: #{encoder_layer_forward.5} parent=67 // pred_check_branch
          %526 = sbr.rel (%p524) target = $region88
        $region87: #{encoder_layer_forward.5} parent=67 // pred_region
          %527 = dma.done [#allocation9], 16
        $region88: #{encoder_layer_forward.5} parent=67 // pred_fallthru
          _
        // Predicated region
        $region89: #{encoder_layer_forward.5} parent=67 // pred_check
          %p528 = pneg %p168
        $region90: #{encoder_layer_forward.5} parent=67 // pred_check_branch
          %530 = sbr.rel (%p528) target = $region92
        $region91: #{encoder_layer_forward.5} parent=67 // pred_region
          %531 = dma.done [#allocation12], 16
        $region92: #{encoder_layer_forward.5} parent=67 // pred_fallthru
          _
        // Predicated region
        $region93: #{encoder_layer_forward.5} parent=67 // pred_check
          %p532 = pneg %p189
        $region94: #{encoder_layer_forward.5} parent=67 // pred_check_branch
          %534 = sbr.rel (%p532) target = $region96
        $region95: #{encoder_layer_forward.5} parent=67 // pred_region
          %535 = dma.done [#allocation12], 2048
        $region96: #{encoder_layer_forward.5} parent=67 // pred_fallthru
          _
        // Predicated region
        $region97: #{encoder_layer_forward.5} parent=67 // pred_check
          %p536 = pneg %p210
        $region98: #{encoder_layer_forward.5} parent=67 // pred_check_branch
          %538 = sbr.rel (%p536) target = $region100
        $region99: #{encoder_layer_forward.5} parent=67 // pred_region
          %539 = dma.done [#allocation15], 32
        $region100: #{encoder_layer_forward.5} parent=67 // pred_fallthru
          _
        // Predicated region
        $region101: #{encoder_layer_forward.5} parent=67 // pred_check
          %p540 = pneg %p231
        $region102: #{encoder_layer_forward.5} parent=67 // pred_check_branch
          %542 = sbr.rel (%p540) target = $region104
        $region103: #{encoder_layer_forward.5} parent=67 // pred_region
          %543 = dma.done [#allocation15], 2048
        $region104: #{encoder_layer_forward.5} parent=67 // pred_fallthru
          _
        // Predicated region
        $region105: #{encoder_layer_forward.5} parent=67 // pred_check
          %p544 = pneg %p252
        $region106: #{encoder_layer_forward.5} parent=67 // pred_check_branch
          %546 = sbr.rel (%p544) target = $region108
        $region107: #{encoder_layer_forward.5} parent=67 // pred_region
          %547 = dma.done [#allocation18], 16
        $region108: #{encoder_layer_forward.5} parent=67 // pred_fallthru
          _
        // Predicated region
        $region109: #{encoder_layer_forward.5} parent=67 // pred_check
          %p548 = pneg %p273
        $region110: #{encoder_layer_forward.5} parent=67 // pred_check_branch
          %550 = sbr.rel (%p548) target = $region112
        $region111: #{encoder_layer_forward.5} parent=67 // pred_region
          %551 = dma.done [#allocation18], 16
        $region112: #{encoder_layer_forward.5} parent=67 // pred_fallthru
          _
        // Predicated region
        $region113: #{encoder_layer_forward.5} parent=67 // pred_check
          %p552 = pneg %p294
        $region114: #{encoder_layer_forward.5} parent=67 // pred_check_branch
          %554 = sbr.rel (%p552) target = $region116
        $region115: #{encoder_layer_forward.5} parent=67 // pred_region
          %555 = dma.done [#allocation21], 16
        $region116: #{encoder_layer_forward.5} parent=67 // pred_fallthru
          _
        %s556 = sand.u32 %s45, 1
        %s557 = scalar_lea.sflag [#allocation3], %s556
        %s558 = sand.u32 %s45, 1
        %s559 = smul.addr %s558, 8
        %s560 = scalar_lea.vmem [#allocation2], %s559
        %p561 = pneg %p58
        %p562 = pneg %p55
        %s563 = sand.u32 %s37, 1
        %s564 = scalar_lea.sflag [#allocation6], %s563
        %s565 = sand.u32 %s71, 1
        %s566 = smul.addr %s565, 4
        %s567 = scalar_lea.vmem [#allocation5], %s566
        %p568 = pneg %p84
        %p569 = pneg %p81
        %p570 = pneg %p105
        %p571 = pneg %p102
        %p572 = pneg %p126
        %p573 = pneg %p123
        %p574 = pneg %p147
        %p575 = pneg %p144
        %p576 = pneg %p168
        %p577 = pneg %p165
        %p578 = pneg %p189
        %p579 = pneg %p186
        %p580 = pneg %p210
        %p581 = pneg %p207
        %p582 = pneg %p231
        %p583 = pneg %p228
        %p584 = pneg %p252
        %p585 = pneg %p249
        %p586 = pneg %p273
        %p587 = pneg %p270
        %p588 = pneg %p294
        %p589 = pneg %p291
        %p590 = pneg %p320
        %p591 = pneg %p317
        %s592 = sand.u32 %s307, 1
        %s593 = scalar_lea.sflag [#allocation4], %s592
        %s594 = sand.u32 %s307, 1
        %s595 = smul.addr %s594, 8
        %s596 = scalar_lea.vmem [#allocation22], %s595
        %v598 = vld [vmem:[%s502] sm:$0xff]
        %v599 = vld [vmem:[%s511] sm:$0xf]
        %v600 = vld [vmem:[#allocation7] sm:$0xf]
        %v601 = vld [vmem:[#allocation7 + $0x4] sm:$0xf]
        %v602 = vld [vmem:[#allocation7 + $0x8] sm:$0xf]
        %v603 = vld [vmem:[#allocation7 + $0xc] sm:$0xf]
        %v604 = vld [vmem:[#allocation7 + $0x10] sm:$0xf]
        %v605 = vld [vmem:[#allocation7 + $0x14] sm:$0xf]
        %v606 = vld [vmem:[#allocation7 + $0x18] sm:$0xf]
        %v607 = vld [vmem:[#allocation7 + $0x1c] sm:$0xf]
        %v608 = vld [vmem:[#allocation7 + $0x20] sm:$0xf]
        %v609 = vld [vmem:[#allocation7 + $0x24] sm:$0xf]
        %v610 = vld [vmem:[#allocation7 + $0x28] sm:$0xf]
        %v611 = vld [vmem:[#allocation7 + $0x2c] sm:$0xf]
        %v612 = vld [vmem:[#allocation7 + $0x30] sm:$0xf]
        %v613 = vld [vmem:[#allocation7 + $0x34] sm:$0xf]
        %v614 = vld [vmem:[#allocation7 + $0x38] sm:$0xf]
        %v615 = vld [vmem:[#allocation7 + $0x3c] sm:$0xf]
        %v616 = vld [vmem:[#allocation8] sm:$0x1]
        %v618 = vlaneseq
        %v619 = vshrl.u32 %v618, 7
        %v620 = vsub.s32 0, %v619
        %v621 = vrot.slane %v616, %v620
        %v639 = vunpack.c.l.b16 %v600
        %v640 = vunpack.c.l.b16 %v601
        %v641 = vunpack.c.l.b16 %v602
        %v642 = vunpack.c.l.b16 %v603
        %v643 = vunpack.c.l.b16 %v604
        %v644 = vunpack.c.l.b16 %v605
        %v645 = vunpack.c.l.b16 %v606
        %v646 = vunpack.c.l.b16 %v607
        %v647 = vunpack.c.l.b16 %v608
        %v648 = vunpack.c.l.b16 %v609
        %v649 = vunpack.c.l.b16 %v610
        %v650 = vunpack.c.l.b16 %v611
        %v651 = vunpack.c.l.b16 %v612
        %v652 = vunpack.c.l.b16 %v613
        %v653 = vunpack.c.l.b16 %v614
        %v654 = vunpack.c.l.b16 %v615
        %v655 = vpack.c.b16 %v640, %v639
        %v656 = vpack.c.b16 %v642, %v641
        %v657 = vpack.c.b16 %v644, %v643
        %v658 = vpack.c.b16 %v646, %v645
        %v659 = vpack.c.b16 %v648, %v647
        %v660 = vpack.c.b16 %v650, %v649
        %v661 = vpack.c.b16 %v652, %v651
        %v662 = vpack.c.b16 %v654, %v653
        %671 = vmatprep.subr.bf16.mxu0 0
        %672 = vmatpush1.bf16.msra.mxu0 %v655
        %673 = vmatprep.subr.bf16.mxu0 0
        %674 = vmatpush1.bf16.msra.mxu0 %v656
        %675 = vmatprep.subr.bf16.mxu0 0
        %676 = vmatpush1.bf16.msra.mxu0 %v657
        %677 = vmatprep.subr.bf16.mxu0 0
        %678 = vmatpush1.bf16.msra.mxu0 %v658
        %679 = vmatprep.subr.bf16.mxu0 0
        %680 = vmatpush1.bf16.msra.mxu0 %v659
        %681 = vmatprep.subr.bf16.mxu0 0
        %682 = vmatpush1.bf16.msra.mxu0 %v660
        %683 = vmatprep.subr.bf16.mxu0 0
        %684 = vmatpush1.bf16.msra.mxu0 %v661
        %685 = vmatprep.subr.bf16.mxu0 0
        %686 = vmatpush1.bf16.msra.mxu0 %v662
        %687 = vmatprep.subr.bf16.mxu0 0
        %688 = vmatpush1.bf16.msra.mxu0 0
        %689 = vmatprep.subr.bf16.mxu0 0
        %690 = vmatpush1.bf16.msra.mxu0 0
        %691 = vmatprep.subr.bf16.mxu0 0
        %692 = vmatpush1.bf16.msra.mxu0 0
        %693 = vmatprep.subr.bf16.mxu0 0
        %694 = vmatpush1.bf16.msra.mxu0 0
        %695 = vmatprep.subr.bf16.mxu0 0
        %696 = vmatpush1.bf16.msra.mxu0 0
        %697 = vmatprep.subr.bf16.mxu0 0
        %698 = vmatpush1.bf16.msra.mxu0 0
        %699 = vmatprep.subr.bf16.mxu0 0
        %700 = vmatpush1.bf16.msra.mxu0 0
        %701 = vmatprep.subr.bf16.mxu0 0
        %702 = vmatpush1.bf16.msra.mxu0 0
        %703 = vmatprep.mubr.bf16.mxu0 0
        %704 = vmatmul.mubr.bf16.gmra.mrb[0].mxu0 %v599
        %v705 = vpop.f32.mrb[0].mxu0
        %v706 = vadd.f32 %v621, %v705
        %v707 = vpop.f32.mrb[0].mxu0
        %v708 = vpop.f32.mrb[0].mxu0
        %v709 = vpop.f32.mrb[0].mxu0
        %710 = vdwg.mxu0
        %v711 = vadd.f32 %v598, %v706
        %v712 = vld [vmem:[#allocation10] sm:$0x1]
        %v713 = vld [vmem:[#allocation11] sm:$0x1]
        %714 = vadd.xlane.f32.xlu0 %v711
        %v715 = vpop.xlane.xlu0 %714
        %v716 = vrcp.pop 128.0
        %v717 = vmul.f32 %v715, %v716
        %v718 = vsub.f32 %v711, %v717
        %v719 = vmul.f32 %v718, %v718
        %720 = vadd.xlane.f32.xlu0 %v719
        %v721 = vpop.xlane.xlu0 %720
        %v722 = vmul.f32 %v721, %v716
        %v723 = vadd.f32 %v722, 1e-05
        %v724 = vrsqrt.pop %v723
        %v725 = vmul.f32 %v718, %v724
        %v727 = vlaneseq
        %v728 = vshrl.u32 %v727, 7
        %v729 = vsub.s32 0, %v728
        %v730 = vrot.slane %v712, %v729
        %v732 = vmul.f32 %v725, %v730
        %v734 = vlaneseq
        %v735 = vshrl.u32 %v734, 7
        %v736 = vsub.s32 0, %v735
        %v737 = vrot.slane %v713, %v736
        %v739 = vadd.f32 %v732, %v737
        %v740 = vpack.c.bf16 %v739, %v739
        %v741 = vld [vmem:[#allocation13] sm:$0xff]
        %v742 = vld [vmem:[#allocation13 + $0x8] sm:$0xff]
        %v743 = vld [vmem:[#allocation13 + $0x10] sm:$0xff]
        %v744 = vld [vmem:[#allocation13 + $0x18] sm:$0xff]
        %v745 = vld [vmem:[#allocation13 + $0x20] sm:$0xff]
        %v746 = vld [vmem:[#allocation13 + $0x28] sm:$0xff]
        %v747 = vld [vmem:[#allocation13 + $0x30] sm:$0xff]
        %v748 = vld [vmem:[#allocation13 + $0x38] sm:$0xff]
        %v749 = vld [vmem:[#allocation13 + $0x40] sm:$0xff]
        %v750 = vld [vmem:[#allocation13 + $0x48] sm:$0xff]
        %v751 = vld [vmem:[#allocation13 + $0x50] sm:$0xff]
        %v752 = vld [vmem:[#allocation13 + $0x58] sm:$0xff]
        %v753 = vld [vmem:[#allocation13 + $0x60] sm:$0xff]
        %v754 = vld [vmem:[#allocation13 + $0x68] sm:$0xff]
        %v755 = vld [vmem:[#allocation13 + $0x70] sm:$0xff]
        %v756 = vld [vmem:[#allocation13 + $0x78] sm:$0xff]
        %v757 = vld [vmem:[#allocation14] sm:$0x3]
        %v759 = vlaneseq
        %v760 = vshrl.u32 %v759, 7
        %v761 = vsub.s32 0, %v760
        %v762 = vrot.slane %v757, %v761
        %v763 = vlaneseq
        %v764 = vshrl.u32 %v763, 7
        %v765 = vsub.s32 1, %v764
        %v766 = vrot.slane %v757, %v765
        %v785 = vunpack.c.l.b16 %v741
        %v786 = vunpack.c.h.b16 %v741
        %v787 = vunpack.c.l.b16 %v742
        %v788 = vunpack.c.h.b16 %v742
        %v789 = vunpack.c.l.b16 %v743
        %v790 = vunpack.c.h.b16 %v743
        %v791 = vunpack.c.l.b16 %v744
        %v792 = vunpack.c.h.b16 %v744
        %v793 = vunpack.c.l.b16 %v745
        %v794 = vunpack.c.h.b16 %v745
        %v795 = vunpack.c.l.b16 %v746
        %v796 = vunpack.c.h.b16 %v746
        %v797 = vunpack.c.l.b16 %v747
        %v798 = vunpack.c.h.b16 %v747
        %v799 = vunpack.c.l.b16 %v748
        %v800 = vunpack.c.h.b16 %v748
        %v801 = vunpack.c.l.b16 %v749
        %v802 = vunpack.c.h.b16 %v749
        %v803 = vunpack.c.l.b16 %v750
        %v804 = vunpack.c.h.b16 %v750
        %v805 = vunpack.c.l.b16 %v751
        %v806 = vunpack.c.h.b16 %v751
        %v807 = vunpack.c.l.b16 %v752
        %v808 = vunpack.c.h.b16 %v752
        %v809 = vunpack.c.l.b16 %v753
        %v810 = vunpack.c.h.b16 %v753
        %v811 = vunpack.c.l.b16 %v754
        %v812 = vunpack.c.h.b16 %v754
        %v813 = vunpack.c.l.b16 %v755
        %v814 = vunpack.c.h.b16 %v755
        %v815 = vunpack.c.l.b16 %v756
        %v816 = vunpack.c.h.b16 %v756
        %v817 = vpack.c.b16 %v787, %v785
        %v818 = vpack.c.b16 %v788, %v786
        %v819 = vpack.c.b16 %v791, %v789
        %v820 = vpack.c.b16 %v792, %v790
        %v821 = vpack.c.b16 %v795, %v793
        %v822 = vpack.c.b16 %v796, %v794
        %v823 = vpack.c.b16 %v799, %v797
        %v824 = vpack.c.b16 %v800, %v798
        %v825 = vpack.c.b16 %v803, %v801
        %v826 = vpack.c.b16 %v804, %v802
        %v827 = vpack.c.b16 %v807, %v805
        %v828 = vpack.c.b16 %v808, %v806
        %v829 = vpack.c.b16 %v811, %v809
        %v830 = vpack.c.b16 %v812, %v810
        %v831 = vpack.c.b16 %v815, %v813
        %v832 = vpack.c.b16 %v816, %v814
        %849 = vmatprep.subr.bf16.mxu0 %v818
        %850 = vmatpush1.bf16.msra.mxu0 %v817
        %851 = vmatprep.subr.bf16.mxu0 %v820
        %852 = vmatpush1.bf16.msra.mxu0 %v819
        %853 = vmatprep.subr.bf16.mxu0 %v822
        %854 = vmatpush1.bf16.msra.mxu0 %v821
        %855 = vmatprep.subr.bf16.mxu0 %v824
        %856 = vmatpush1.bf16.msra.mxu0 %v823
        %857 = vmatprep.subr.bf16.mxu0 %v826
        %858 = vmatpush1.bf16.msra.mxu0 %v825
        %859 = vmatprep.subr.bf16.mxu0 %v828
        %860 = vmatpush1.bf16.msra.mxu0 %v827
        %861 = vmatprep.subr.bf16.mxu0 %v830
        %862 = vmatpush1.bf16.msra.mxu0 %v829
        %863 = vmatprep.subr.bf16.mxu0 %v832
        %864 = vmatpush1.bf16.msra.mxu0 %v831
        %865 = vmatprep.subr.bf16.mxu0 0
        %866 = vmatpush1.bf16.msra.mxu0 0
        %867 = vmatprep.subr.bf16.mxu0 0
        %868 = vmatpush1.bf16.msra.mxu0 0
        %869 = vmatprep.subr.bf16.mxu0 0
        %870 = vmatpush1.bf16.msra.mxu0 0
        %871 = vmatprep.subr.bf16.mxu0 0
        %872 = vmatpush1.bf16.msra.mxu0 0
        %873 = vmatprep.subr.bf16.mxu0 0
        %874 = vmatpush1.bf16.msra.mxu0 0
        %875 = vmatprep.subr.bf16.mxu0 0
        %876 = vmatpush1.bf16.msra.mxu0 0
        %877 = vmatprep.subr.bf16.mxu0 0
        %878 = vmatpush1.bf16.msra.mxu0 0
        %879 = vmatprep.subr.bf16.mxu0 0
        %880 = vmatpush1.bf16.msra.mxu0 0
        %881 = vmatprep.mubr.bf16.mxu0 0
        %882 = vmatmul.mubr.bf16.gmra.mrb[0].mxu0 %v740
        %v883 = vpop.f32.mrb[0].mxu0
        %v884 = vadd.f32 %v762, %v883
        %v885 = vpop.f32.mrb[0].mxu0
        %v886 = vadd.f32 %v766, %v885
        %v887 = vpop.f32.mrb[0].mxu0
        %v888 = vpop.f32.mrb[0].mxu0
        %889 = vdwg.mxu0
        %v890 = vmax.f32 %v884, 0.0
        %v891 = vmax.f32 %v886, 0.0
        %v892 = vpack.c.bf16 %v890, %v890
        %v893 = vpack.c.bf16 %v891, %v891
        %v894 = vld [vmem:[#allocation16] sm:$0xf]
        %v895 = vld [vmem:[#allocation16 + $0x4] sm:$0xf]
        %v896 = vld [vmem:[#allocation16 + $0x8] sm:$0xf]
        %v897 = vld [vmem:[#allocation16 + $0xc] sm:$0xf]
        %v898 = vld [vmem:[#allocation16 + $0x10] sm:$0xf]
        %v899 = vld [vmem:[#allocation16 + $0x14] sm:$0xf]
        %v900 = vld [vmem:[#allocation16 + $0x18] sm:$0xf]
        %v901 = vld [vmem:[#allocation16 + $0x1c] sm:$0xf]
        %v902 = vld [vmem:[#allocation16 + $0x20] sm:$0xf]
        %v903 = vld [vmem:[#allocation16 + $0x24] sm:$0xf]
        %v904 = vld [vmem:[#allocation16 + $0x28] sm:$0xf]
        %v905 = vld [vmem:[#allocation16 + $0x2c] sm:$0xf]
        %v906 = vld [vmem:[#allocation16 + $0x30] sm:$0xf]
        %v907 = vld [vmem:[#allocation16 + $0x34] sm:$0xf]
        %v908 = vld [vmem:[#allocation16 + $0x38] sm:$0xf]
        %v909 = vld [vmem:[#allocation16 + $0x3c] sm:$0xf]
        %v910 = vld [vmem:[#allocation16 + $0x40] sm:$0xf]
        %v911 = vld [vmem:[#allocation16 + $0x44] sm:$0xf]
        %v912 = vld [vmem:[#allocation16 + $0x48] sm:$0xf]
        %v913 = vld [vmem:[#allocation16 + $0x4c] sm:$0xf]
        %v914 = vld [vmem:[#allocation16 + $0x50] sm:$0xf]
        %v915 = vld [vmem:[#allocation16 + $0x54] sm:$0xf]
        %v916 = vld [vmem:[#allocation16 + $0x58] sm:$0xf]
        %v917 = vld [vmem:[#allocation16 + $0x5c] sm:$0xf]
        %v918 = vld [vmem:[#allocation16 + $0x60] sm:$0xf]
        %v919 = vld [vmem:[#allocation16 + $0x64] sm:$0xf]
        %v920 = vld [vmem:[#allocation16 + $0x68] sm:$0xf]
        %v921 = vld [vmem:[#allocation16 + $0x6c] sm:$0xf]
        %v922 = vld [vmem:[#allocation16 + $0x70] sm:$0xf]
        %v923 = vld [vmem:[#allocation16 + $0x74] sm:$0xf]
        %v924 = vld [vmem:[#allocation16 + $0x78] sm:$0xf]
        %v925 = vld [vmem:[#allocation16 + $0x7c] sm:$0xf]
        %v926 = vld [vmem:[#allocation17] sm:$0x1]
        %v928 = vlaneseq
        %v929 = vshrl.u32 %v928, 7
        %v930 = vsub.s32 0, %v929
        %v931 = vrot.slane %v926, %v930
        %v965 = vunpack.c.l.b16 %v894
        %v966 = vunpack.c.l.b16 %v895
        %v967 = vunpack.c.l.b16 %v896
        %v968 = vunpack.c.l.b16 %v897
        %v969 = vunpack.c.l.b16 %v898
        %v970 = vunpack.c.l.b16 %v899
        %v971 = vunpack.c.l.b16 %v900
        %v972 = vunpack.c.l.b16 %v901
        %v973 = vunpack.c.l.b16 %v902
        %v974 = vunpack.c.l.b16 %v903
        %v975 = vunpack.c.l.b16 %v904
        %v976 = vunpack.c.l.b16 %v905
        %v977 = vunpack.c.l.b16 %v906
        %v978 = vunpack.c.l.b16 %v907
        %v979 = vunpack.c.l.b16 %v908
        %v980 = vunpack.c.l.b16 %v909
        %v981 = vunpack.c.l.b16 %v910
        %v982 = vunpack.c.l.b16 %v911
        %v983 = vunpack.c.l.b16 %v912
        %v984 = vunpack.c.l.b16 %v913
        %v985 = vunpack.c.l.b16 %v914
        %v986 = vunpack.c.l.b16 %v915
        %v987 = vunpack.c.l.b16 %v916
        %v988 = vunpack.c.l.b16 %v917
        %v989 = vunpack.c.l.b16 %v918
        %v990 = vunpack.c.l.b16 %v919
        %v991 = vunpack.c.l.b16 %v920
        %v992 = vunpack.c.l.b16 %v921
        %v993 = vunpack.c.l.b16 %v922
        %v994 = vunpack.c.l.b16 %v923
        %v995 = vunpack.c.l.b16 %v924
        %v996 = vunpack.c.l.b16 %v925
        %v997 = vpack.c.b16 %v966, %v965
        %v998 = vpack.c.b16 %v968, %v967
        %v999 = vpack.c.b16 %v970, %v969
        %v1000 = vpack.c.b16 %v972, %v971
        %v1001 = vpack.c.b16 %v974, %v973
        %v1002 = vpack.c.b16 %v976, %v975
        %v1003 = vpack.c.b16 %v978, %v977
        %v1004 = vpack.c.b16 %v980, %v979
        %v1005 = vpack.c.b16 %v982, %v981
        %v1006 = vpack.c.b16 %v984, %v983
        %v1007 = vpack.c.b16 %v986, %v985
        %v1008 = vpack.c.b16 %v988, %v987
        %v1009 = vpack.c.b16 %v990, %v989
        %v1010 = vpack.c.b16 %v992, %v991
        %v1011 = vpack.c.b16 %v994, %v993
        %v1012 = vpack.c.b16 %v996, %v995
        %1029 = vmatprep.subr.bf16.mxu0 0
        %1030 = vmatpush1.bf16.msra.mxu0 %v997
        %1031 = vmatprep.subr.bf16.mxu0 0
        %1032 = vmatpush1.bf16.msra.mxu0 %v998
        %1033 = vmatprep.subr.bf16.mxu0 0
        %1034 = vmatpush1.bf16.msra.mxu0 %v999
        %1035 = vmatprep.subr.bf16.mxu0 0
        %1036 = vmatpush1.bf16.msra.mxu0 %v1000
        %1037 = vmatprep.subr.bf16.mxu0 0
        %1038 = vmatpush1.bf16.msra.mxu0 %v1001
        %1039 = vmatprep.subr.bf16.mxu0 0
        %1040 = vmatpush1.bf16.msra.mxu0 %v1002
        %1041 = vmatprep.subr.bf16.mxu0 0
        %1042 = vmatpush1.bf16.msra.mxu0 %v1003
        %1043 = vmatprep.subr.bf16.mxu0 0
        %1044 = vmatpush1.bf16.msra.mxu0 %v1004
        %1045 = vmatprep.subr.bf16.mxu0 0
        %1046 = vmatpush1.bf16.msra.mxu0 %v1005
        %1047 = vmatprep.subr.bf16.mxu0 0
        %1048 = vmatpush1.bf16.msra.mxu0 %v1006
        %1049 = vmatprep.subr.bf16.mxu0 0
        %1050 = vmatpush1.bf16.msra.mxu0 %v1007
        %1051 = vmatprep.subr.bf16.mxu0 0
        %1052 = vmatpush1.bf16.msra.mxu0 %v1008
        %1053 = vmatprep.subr.bf16.mxu0 0
        %1054 = vmatpush1.bf16.msra.mxu0 %v1009
        %1055 = vmatprep.subr.bf16.mxu0 0
        %1056 = vmatpush1.bf16.msra.mxu0 %v1010
        %1057 = vmatprep.subr.bf16.mxu0 0
        %1058 = vmatpush1.bf16.msra.mxu0 %v1011
        %1059 = vmatprep.subr.bf16.mxu0 0
        %1060 = vmatpush1.bf16.msra.mxu0 %v1012
        %1061 = vmatprep.mubr.bf16.mxu0 %v893
        %1062 = vmatmul.mubr.bf16.gmra.mrb[0].mxu0 %v892
        %v1063 = vpop.f32.mrb[0].mxu0
        %v1064 = vadd.f32 %v931, %v1063
        %v1065 = vpop.f32.mrb[0].mxu0
        %v1066 = vpop.f32.mrb[0].mxu0
        %v1067 = vpop.f32.mrb[0].mxu0
        %1068 = vdwg.mxu0
        %v1069 = vadd.f32 %v739, %v1064
        %v1070 = vld [vmem:[#allocation19] sm:$0x1]
        %v1071 = vld [vmem:[#allocation20] sm:$0x1]
        %1072 = vadd.xlane.f32.xlu0 %v1069
        %v1073 = vpop.xlane.xlu0 %1072
        %v1074 = vmul.f32 %v1073, %v716
        %v1075 = vsub.f32 %v1069, %v1074
        %v1076 = vmul.f32 %v1075, %v1075
        %1077 = vadd.xlane.f32.xlu0 %v1076
        %v1078 = vpop.xlane.xlu0 %1077
        %v1079 = vmul.f32 %v1078, %v716
        %v1080 = vadd.f32 %v1079, 1e-05
        %v1081 = vrsqrt.pop %v1080
        %v1082 = vmul.f32 %v1075, %v1081
        %v1084 = vlaneseq
        %v1085 = vshrl.u32 %v1084, 7
        %v1086 = vsub.s32 0, %v1085
        %v1087 = vrot.slane %v1070, %v1086
        %v1089 = vmul.f32 %v1082, %v1087
        %v1091 = vlaneseq
        %v1092 = vshrl.u32 %v1091, 7
        %v1093 = vsub.s32 0, %v1092
        %v1094 = vrot.slane %v1071, %v1093
        %v1096 = vadd.f32 %v1089, %v1094
        %1097 = vst [vmem:[%s596] sm:$0xff] %v1096
        %s1098 = sand.u32 %s307, 1
        %s1099 = scalar_lea.sflag [#allocation4], %s1098
        %s1100 = sand.u32 %s307, 1
        %s1101 = smul.addr %s1100, 8
        %s1102 = scalar_lea.vmem [#allocation22], %s1101
        // Predicated region
        $region117: #{encoder_layer_forward.5} parent=67 // pred_check
          %p1103 = pneg %p317
        $region118: #{encoder_layer_forward.5} parent=67 // pred_check_branch
          %1105 = sbr.rel (%p1103) target = $region120
        $region119: #{encoder_layer_forward.5} parent=67 // pred_region
          %s1107 = ssub.s32 128, 128
          %1108 = vsyncadd %s1099, %s1107
          %s1109 = smul.addr %s37, 128
          %s1110 = scalar_lea.hbm %s12, %s1109
          %s1112 = sshll.u32 %s1102, 4
          %s1113 = int_to_ptr.vmem [resolvable:$true] %s1112
          %1115 = dma.vmem_to_hbm [thread:$0]  %s1113, 128, %s1110, %s1099
        $region120: #{encoder_layer_forward.5} parent=67 // pred_fallthru
          _
      $region68: #{encoder_layer_forward.5} parent=5 // pred_fallthru
        _
      %p1116 = scmp.le.s32.totalorder 2, %s32
      // Predicated region
      $region121: #{encoder_layer_forward.5} parent=5 // pred_check
        %p1117 = pneg %p1116
      $region122: #{encoder_layer_forward.5} parent=5 // pred_check_branch
        %1119 = sbr.rel (%p1117) target = $region124
      $region123: #{encoder_layer_forward.5} parent=5 // pred_region
        %s1120 = ssub.s32 %s32, 2
        // Predicated region
        $region125: #{encoder_layer_forward.5} parent=123 // pred_check
          %p1121 = pneg %p323
        $region126: #{encoder_layer_forward.5} parent=123 // pred_check_branch
          %1123 = sbr.rel (%p1121) target = $region128
        $region127: #{encoder_layer_forward.5} parent=123 // pred_region
          %s1124 = sand.u32 %s308, 1
          %s1125 = scalar_lea.sflag [#allocation4], %s1124
          %s1126 = sand.u32 %s308, 1
          %s1127 = smul.addr %s1126, 8
          %s1128 = scalar_lea.vmem [#allocation22], %s1127
          %1129 = dma.done %s1125, 128
        $region128: #{encoder_layer_forward.5} parent=123 // pred_fallthru
          _
      $region124: #{encoder_layer_forward.5} parent=5 // pred_fallthru
        _
    $region6: #{encoder_layer_forward.5} parent=1 // loop_footer
      %s36 = sadd.s32 1, %s32
    $region7: #{encoder_layer_forward.5} parent=1 // loop_footer_branch
      %31 = sbr.rel target = $region3
    $region8: #{encoder_layer_forward.5} parent=1 // loop_exit
      _
    %1130 = vsyncpa [#allocation3], 1
    %s1131 = scalar_lea.sflag [#allocation3], 1
    %1132 = vsyncpa %s1131, 1
    %1133 = vsyncpa [#allocation6], 1
    %s1134 = scalar_lea.sflag [#allocation6], 1
    %1135 = vsyncpa %s1134, 1
    %1136 = vsyncpa [#allocation9], 1
    %1137 = vsyncpa [#allocation12], 1
    %1138 = vsyncpa [#allocation15], 1
    %1139 = vsyncpa [#allocation18], 1
    %1140 = vsyncpa [#allocation21], 1
    %1141 = vsyncpa [#allocation4], 1
    %s1142 = scalar_lea.sflag [#allocation4], 1
    %1143 = vsyncpa %s1142, 1

</llo_original>
